<compile_context>
chip_gen: v7x
topology: tpu7x:2x2x1
jax: 0.10.0
libtpu: 0.0.40
codegen_flags: <defaults>
</compile_context>

<pallas_src>
import jax
import jax.numpy as jnp
from jax.experimental import pallas as pl
from jax.experimental.pallas import tpu as pltpu

BN_EPS = 1e-5


def _head_kernel(x_ref, w_ref, scale_ref, shift_ref, feat_ref, f_ref):
    # x_ref:     (1, C, HW)  one batch element's feature map, fp32, NCHW order
    # w_ref:     (N, C)      1x1 conv weight, bf16 (PyTorch layout, no transpose)
    # scale_ref: (C, 1)      folded BN scale = gamma * rsqrt(var + eps), fp32
    # shift_ref: (C, 1)      folded BN shift = beta - mean * scale,      fp32
    # feat_ref:  (1, C, 1)   bnneck output (fp32)
    # f_ref:     (1, N, HW)  1x1 conv output, NCHW order (fp32)
    x = x_ref[0]                                                   # (C, HW) f32

    # --- global average pool: lane-axis reduce (XLU), fp32 throughout ---
    gap = jnp.mean(x, axis=-1, keepdims=True)                      # (C, 1) f32

    # --- bnneck (eval-mode BN), affine pre-folded in the wrapper ---
    feat_ref[0] = gap * scale_ref[...] + shift_ref[...]            # (C, 1) f32

    # --- 1x1 conv == (N, C) @ (C, HW) on the MXU, bf16 operands / fp32 acc ---
    xb = x.astype(jnp.bfloat16)                                    # VPU cast
    f_ref[0] = jnp.dot(w_ref[...], xb,
                       preferred_element_type=jnp.float32).astype(f_ref.dtype)


def baseline_head(feat_map_nchw, conv_w, bn_gamma, bn_beta, bn_mean, bn_var):
    """feat_map_nchw: (B, C, H, W) fp32; conv_w: (num_classes, C) fp32 (1x1 conv).

    Returns (feat, f): feat (B, C) fp32, f (B, num_classes, H, W) fp32."""
    B, C, H, W = feat_map_nchw.shape
    N = conv_w.shape[0]
    HW = H * W

    # NCHW-native: only a (free, contiguous) reshape — no transposes, no cast.
    x = feat_map_nchw.reshape(B, C, HW)                            # (B, C, HW) f32
    w = conv_w.astype(jnp.bfloat16)                                # (N, C), cast once

    # Fold BN affine once on the host side (fp32).
    scale = (bn_gamma * jax.lax.rsqrt(bn_var + BN_EPS)).reshape(C, 1)
    shift = (bn_beta - bn_mean * scale[:, 0]).reshape(C, 1)

    feat_c1, f_flat = pl.pallas_call(
        _head_kernel,
        out_shape=(
            jax.ShapeDtypeStruct((B, C, 1), jnp.float32),    # feat (squeezed later)
            jax.ShapeDtypeStruct((B, N, HW), jnp.float32),   # f, NCHW order
        ),
        grid_spec=pltpu.PrefetchScalarGridSpec(
            num_scalar_prefetch=0,
            grid=(B,),
            in_specs=[
                pl.BlockSpec((1, C, HW), lambda b: (b, 0, 0)),   # x
                pl.BlockSpec((N, C), lambda b: (0, 0)),          # conv weight (shared)
                pl.BlockSpec((C, 1), lambda b: (0, 0)),          # BN scale
                pl.BlockSpec((C, 1), lambda b: (0, 0)),          # BN shift
            ],
            out_specs=[
                pl.BlockSpec((1, C, 1), lambda b: (b, 0, 0)),    # feat
                pl.BlockSpec((1, N, HW), lambda b: (b, 0, 0)),   # f (lane-dense HW)
            ],
        ),
        compiler_params=pltpu.CompilerParams(
            dimension_semantics=("parallel",),      # shards over 2 TCs on v7x
            vmem_limit_bytes=32 * 1024 * 1024,      # safe on v5e/v6e/v7x
        ),
    )(x, w, scale, shift)

    feat = feat_c1.reshape(B, C)              # contiguous squeeze — free
    f = f_flat.reshape(B, N, H, W)            # contiguous reshape — free
    return feat, f


if __name__ == "__main__":
    # Shapes consistent with the module: in_planes = 2048 after layer4,
    # typical reid spatial map 16x8 (HW = 128 -> lane-dense f output).
    B, C, H, W = 2, 2048, 16, 8
    NUM_CLASSES = 128

    key = jax.random.PRNGKey(0)
    k_x, k_w, k_g, k_b, k_m, k_v = jax.random.split(key, 6)

    # Synthetic backbone output (backbone source not provided).
    feat_map = jax.random.normal(k_x, (B, C, H, W), dtype=jnp.float32)

    # conv1: Conv2d(in_planes, num_classes, k=1, bias=False)
    conv_w = (jax.random.normal(k_w, (NUM_CLASSES, C), dtype=jnp.float32)
              * (1.0 / jnp.sqrt(C)))

    # bnneck BatchNorm1d(in_planes), eval mode. Kaiming init would be
    # gamma=1/beta=0, mean=0/var=1; use perturbed values to exercise the
    # folded-affine path (same forward semantics).
    bn_gamma = 1.0 + 0.1 * jax.random.normal(k_g, (C,), jnp.float32)
    bn_beta = 0.05 * jax.random.normal(k_b, (C,), jnp.float32)
    bn_mean = 0.1 * jax.random.normal(k_m, (C,), jnp.float32)
    bn_var = 0.5 + jax.random.uniform(k_v, (C,), jnp.float32)

    feat, f = baseline_head(feat_map, conv_w, bn_gamma, bn_beta, bn_mean, bn_var)
    jax.block_until_ready((feat, f))

    # References in plain JAX.
    # GAP / BN path: exact fp32 (kernel keeps x fp32 for this path).
    gap_ref = jnp.mean(feat_map, axis=(2, 3))                            # (B, C)
    feat_ref = (gap_ref - bn_mean) / jnp.sqrt(bn_var + BN_EPS) * bn_gamma + bn_beta
    # Conv path: against the same bf16-quantized operands the MXU consumes,
    # fp32 accumulation.
    xq = feat_map.astype(jnp.bfloat16).astype(jnp.float32)
    wq = conv_w.astype(jnp.bfloat16).astype(jnp.float32)
    f_ref = jnp.einsum("nc,bchw->bnhw", wq, xq,
                       precision=jax.lax.Precision.HIGHEST)

    assert feat.shape == (B, C) and f.shape == (B, NUM_CLASSES, H, W)
    assert jnp.allclose(feat, feat_ref, atol=1e-4, rtol=1e-4)
    assert jnp.allclose(f, f_ref, atol=1e-3, rtol=1e-3)

    print("KERNEL_OK")
</pallas_src>

<mosaic_0001>
module attributes {stable_mosaic.version = 11 : i64} {
  func.func @_head_kernel(%arg0: i32, %arg1: memref<1x2048x128xf32, #tpu.memory_space<vmem>>, %arg2: memref<128x2048xbf16, #tpu.memory_space<vmem>>, %arg3: memref<2048x1xf32, #tpu.memory_space<vmem>>, %arg4: memref<2048x1xf32, #tpu.memory_space<vmem>>, %arg5: memref<1x2048x1xf32, #tpu.memory_space<vmem>>, %arg6: memref<1x128x128xf32, #tpu.memory_space<vmem>>) attributes {dimension_semantics = [#tpu.dimension_semantics<parallel>], iteration_bounds = array<i64: 2>, scalar_prefetch = 0 : i64, scratch_operands = 0 : i64, tpu.core_type = #tpu.core_type<tc>, window_params = [{transform_indices = @transform_0, window_bounds = array<i64: 1, 2048, 128>}, {pipeline_mode = #tpu.pipeline_mode<synchronous>, transform_indices = @transform_1, window_bounds = array<i64: 128, 2048>}, {pipeline_mode = #tpu.pipeline_mode<synchronous>, transform_indices = @transform_2, window_bounds = array<i64: 2048, 1>}, {pipeline_mode = #tpu.pipeline_mode<synchronous>, transform_indices = @transform_3, window_bounds = array<i64: 2048, 1>}, {transform_indices = @transform_4, window_bounds = array<i64: 1, 2048, 1>}, {transform_indices = @transform_5, window_bounds = array<i64: 1, 128, 128>}]} {
    %c0 = arith.constant 0 : index
    %c0_0 = arith.constant 0 : index
    %c0_1 = arith.constant 0 : index
    %0 = vector.load %arg1[%c0, %c0_0, %c0_1] : memref<1x2048x128xf32, #tpu.memory_space<vmem>>, vector<1x2048x128xf32>
    %1 = vector.shape_cast %0 : vector<1x2048x128xf32> to vector<2048x128xf32>
    %cst = arith.constant dense<0.000000e+00> : vector<2048xf32>
    %2 = vector.multi_reduction <add>, %1, %cst [1] : vector<2048x128xf32> to vector<2048xf32>
    %3 = vector.shape_cast %2 : vector<2048xf32> to vector<2048x1xf32>
    %cst_2 = arith.constant 1.280000e+02 : f32
    %4 = vector.broadcast %cst_2 : f32 to vector<2048x1xf32>
    %5 = arith.divf %3, %4 : vector<2048x1xf32>
    %c0_3 = arith.constant 0 : index
    %c0_4 = arith.constant 0 : index
    %6 = vector.load %arg3[%c0_3, %c0_4] : memref<2048x1xf32, #tpu.memory_space<vmem>>, vector<2048x1xf32>
    %7 = arith.mulf %5, %6 : vector<2048x1xf32>
    %c0_5 = arith.constant 0 : index
    %c0_6 = arith.constant 0 : index
    %8 = vector.load %arg4[%c0_5, %c0_6] : memref<2048x1xf32, #tpu.memory_space<vmem>>, vector<2048x1xf32>
    %9 = arith.addf %7, %8 : vector<2048x1xf32>
    %c0_7 = arith.constant 0 : index
    %c0_8 = arith.constant 0 : index
    %c0_9 = arith.constant 0 : index
    %10 = vector.load %arg5[%c0_7, %c0_8, %c0_9] : memref<1x2048x1xf32, #tpu.memory_space<vmem>>, vector<1x2048x1xf32>
    %11 = vector.shape_cast %10 : vector<1x2048x1xf32> to vector<2048x1xf32>
    %12 = vector.shape_cast %9 : vector<2048x1xf32> to vector<1x2048x1xf32>
    tpu.vector_store %arg5[%c0_7, %c0_8, %c0_9], %12 {strides = array<i32>} : memref<1x2048x1xf32, #tpu.memory_space<vmem>>, vector<1x2048x1xf32>,
    %13 = arith.truncf %1 : vector<2048x128xf32> to vector<2048x128xbf16>
    %c0_10 = arith.constant 0 : index
    %c0_11 = arith.constant 0 : index
    %14 = vector.load %arg2[%c0_10, %c0_11] : memref<128x2048xbf16, #tpu.memory_space<vmem>>, vector<128x2048xbf16>
    %cst_12 = arith.constant dense<0.000000e+00> : vector<128x128xf32>
    %15 = tpu.matmul %14, %13, %cst_12 {dimension_numbers = #tpu.dot_dimension_numbers<[1], [0], [0], [1], [0, 0, 1, 1], [], []>} : vector<128x2048xbf16>, vector<2048x128xbf16>, vector<128x128xf32> -> vector<128x128xf32>
    %c0_13 = arith.constant 0 : index
    %c0_14 = arith.constant 0 : index
    %c0_15 = arith.constant 0 : index
    %16 = vector.load %arg6[%c0_13, %c0_14, %c0_15] : memref<1x128x128xf32, #tpu.memory_space<vmem>>, vector<1x128x128xf32>
    %17 = vector.shape_cast %16 : vector<1x128x128xf32> to vector<128x128xf32>
    %18 = vector.shape_cast %15 : vector<128x128xf32> to vector<1x128x128xf32>
    tpu.vector_store %arg6[%c0_13, %c0_14, %c0_15], %18 {strides = array<i32>} : memref<1x128x128xf32, #tpu.memory_space<vmem>>, vector<1x128x128xf32>,
    return
  }
  func.func @transform_0(%arg0: i32) -> (i32, i32, i32) {
    %c0_i32 = arith.constant 0 : i32
    %c0_i32_0 = arith.constant 0 : i32
    %c0_i32_1 = arith.constant 0 : i32
    return %arg0, %c0_i32, %c0_i32_0 : i32, i32, i32
  }
  func.func @transform_1(%arg0: i32) -> (i32, i32) {
    %c0_i32 = arith.constant 0 : i32
    %c0_i32_0 = arith.constant 0 : i32
    %c0_i32_1 = arith.constant 0 : i32
    return %c0_i32, %c0_i32_0 : i32, i32
  }
  func.func @transform_2(%arg0: i32) -> (i32, i32) {
    %c0_i32 = arith.constant 0 : i32
    %c0_i32_0 = arith.constant 0 : i32
    %c0_i32_1 = arith.constant 0 : i32
    return %c0_i32, %c0_i32_0 : i32, i32
  }
  func.func @transform_3(%arg0: i32) -> (i32, i32) {
    %c0_i32 = arith.constant 0 : i32
    %c0_i32_0 = arith.constant 0 : i32
    %c0_i32_1 = arith.constant 0 : i32
    return %c0_i32, %c0_i32_0 : i32, i32
  }
  func.func @transform_4(%arg0: i32) -> (i32, i32, i32) {
    %c0_i32 = arith.constant 0 : i32
    %c0_i32_0 = arith.constant 0 : i32
    %c0_i32_1 = arith.constant 0 : i32
    return %arg0, %c0_i32, %c0_i32_0 : i32, i32, i32
  }
  func.func @transform_5(%arg0: i32) -> (i32, i32, i32) {
    %c0_i32 = arith.constant 0 : i32
    %c0_i32_0 = arith.constant 0 : i32
    %c0_i32_1 = arith.constant 0 : i32
    return %arg0, %c0_i32, %c0_i32_0 : i32, i32, i32
  }
}

</mosaic_0001>

<llo_original>
// kernel: tpu_custom_call.1
$region0: #{tpu_custom_call.1}
  #allocation0 [shape = 'u32[]', space=smem, size = 0x4, offset = 0x4, fixed_abs, tag = 'smem constant byte address 0x4 - core index']
  #allocation1 [shape = 'u32[144,128]{1,0:T(1,128)}', space=vmem, size = 0x12000, scoped, tag = 'internal scratch']
  %s0 = inlined_call_operand.vmem [shape: f32[2,2048,128], index: 0, kind: input, shape index: {}]
  %s1 = inlined_call_operand.hbm [shape: bf16[128,2048], index: 1, kind: input, shape index: {}]
  %s2 = inlined_call_operand.vmem [shape: f32[2048,1], index: 2, kind: input, shape index: {}]
  %s3 = inlined_call_operand.vmem [shape: f32[2048,1], index: 3, kind: input, shape index: {}]
  %s4 = inlined_call_operand.vmem [shape: f32[2,2048,1], index: 4, kind: output, shape index: {0}]
  %s5 = inlined_call_operand.hbm [shape: f32[2,128,128], index: 5, kind: output, shape index: {1}]
  %6 = xla_tuple %s4, %s5
  %s7 = sld [smem:[#allocation0]]
  $region61: #{tpu_custom_call.1} parent=0
    _
  %s9 = ssub.s32 1, %s7
  %s10 = scalar_select 0, %s9, %s7
  $region1: #{tpu_custom_call.1} parent=0
    #allocation2 [shape = 'u8[524288]{0}', space=vmem, size = 0x80000, scoped, tag = 'input window, operand 1, single buffered']
    #allocation3 [shape = 's32[2]{0}', space=sflag, size = 0x8, scoped, tag = 'scoped memory for tpu_custom_call.1']
    #allocation4 [shape = 's32[2]{0}', space=sflag, size = 0x8, scoped, tag = 'scoped memory for tpu_custom_call.1']
    #allocation5 [shape = 'u8[131072]{0}', space=vmem, size = 0x20000, scoped, tag = 'output window, operand 1']
    %11 = vsyncpa [#allocation3], 0
    %12 = vsyncpa [#allocation4], 0
    %s13 = scalar_lea.sflag [#allocation4], 1
    %14 = vsyncpa %s13, 0
    loop: start=0, step=1, limit=4
    $region2: #{tpu_custom_call.1} parent=1 // loop_pre_header
      _
    $region3: #{tpu_custom_call.1} parent=1 // loop_header
      %s16 = sphi 0, %s20
      %p17 = scmp.ge.s32.totalorder %s16, 4
      %s26 = sphi 0, %s28
      %s29 = sphi 0, %s26
      %s30 = sphi 0, %s29
      %s46 = sphi 0, %s30
      %s50 = sphi 0, %s50
      %s52 = sphi 0, %s50
      %s53 = sphi 0, %s52
      %s67 = sphi 0, %s53
      %s71 = sphi 0, %s71
      %s73 = sphi 0, %s71
      %s74 = sphi 0, %s73
      %s88 = sphi 0, %s74
      %s92 = sphi 0, %s92
      %s94 = sphi 0, %s92
      %s95 = sphi 0, %s94
      %s109 = sphi 0, %s95
      %s115 = sphi 0, %s117
      %s118 = sphi 0, %s115
      %s119 = sphi 0, %s118
      %s135 = sphi 0, %s119
      %s141 = sphi 0, %s143
      %s144 = sphi 0, %s141
      %s145 = sphi 0, %s144
      %s161 = sphi 0, %s145
    $region4: #{tpu_custom_call.1} parent=1 // loop_header_branch
      %19 = sbr.rel (%p17) target = $region8
    $region5: #{tpu_custom_call.1} parent=1 // loop_body
      %s21 = ssub.s32 %s16, 1
      %s22 = ssub.s32 %s16, 2
      %s23 = sadd.s32 %s16, 1
      %s24 = ssub.s32 %s16, %s23
      %p25 = scmp.eq.s32.totalorder %s24, 0
      %s27 = sadd.s32 %s26, 1
      %s28 = scalar_select %p25, %s26, %s27
      %p31 = pneg %p25
      %p32 = scmp.eq.s32.totalorder %s16, 1
      %p33 = por %p31, %p32
      %p34 = scmp.ne.s32.totalorder %s26, %s29
      %p35 = scmp.eq.s32.totalorder %s16, 0
      %p36 = por %p34, %p35
      %p37 = scmp.ne.s32.totalorder %s26, %s29
      %p38 = scmp.eq.s32.totalorder %s21, 1
      %p39 = por %p37, %p38
      %p40 = scmp.ne.s32.totalorder %s29, %s30
      %p41 = scmp.eq.s32.totalorder %s21, 0
      %p42 = por %p40, %p41
      %p43 = scmp.ne.s32.totalorder %s29, %s30
      %p44 = scmp.eq.s32.totalorder %s22, 1
      %p45 = por %p43, %p44
      %p47 = scmp.ne.s32.totalorder %s30, %s46
      %p48 = scmp.eq.s32.totalorder %s22, 0
      %p49 = por %p47, %p48
      %s51 = sadd.s32 %s50, 1
      %p54 = scmp.eq.s32.totalorder %s16, 1
      %p55 = scmp.ne.s32.totalorder %s50, %s52
      %p56 = scmp.eq.s32.totalorder %s16, 0
      %p57 = por %p55, %p56
      %p58 = scmp.ne.s32.totalorder %s50, %s52
      %p59 = scmp.eq.s32.totalorder %s21, 1
      %p60 = por %p58, %p59
      %p61 = scmp.ne.s32.totalorder %s52, %s53
      %p62 = scmp.eq.s32.totalorder %s21, 0
      %p63 = por %p61, %p62
      %p64 = scmp.ne.s32.totalorder %s52, %s53
      %p65 = scmp.eq.s32.totalorder %s22, 1
      %p66 = por %p64, %p65
      %p68 = scmp.ne.s32.totalorder %s53, %s67
      %p69 = scmp.eq.s32.totalorder %s22, 0
      %p70 = por %p68, %p69
      %s72 = sadd.s32 %s71, 1
      %p75 = scmp.eq.s32.totalorder %s16, 1
      %p76 = scmp.ne.s32.totalorder %s71, %s73
      %p77 = scmp.eq.s32.totalorder %s16, 0
      %p78 = por %p76, %p77
      %p79 = scmp.ne.s32.totalorder %s71, %s73
      %p80 = scmp.eq.s32.totalorder %s21, 1
      %p81 = por %p79, %p80
      %p82 = scmp.ne.s32.totalorder %s73, %s74
      %p83 = scmp.eq.s32.totalorder %s21, 0
      %p84 = por %p82, %p83
      %p85 = scmp.ne.s32.totalorder %s73, %s74
      %p86 = scmp.eq.s32.totalorder %s22, 1
      %p87 = por %p85, %p86
      %p89 = scmp.ne.s32.totalorder %s74, %s88
      %p90 = scmp.eq.s32.totalorder %s22, 0
      %p91 = por %p89, %p90
      %s93 = sadd.s32 %s92, 1
      %p96 = scmp.eq.s32.totalorder %s16, 1
      %p97 = scmp.ne.s32.totalorder %s92, %s94
      %p98 = scmp.eq.s32.totalorder %s16, 0
      %p99 = por %p97, %p98
      %p100 = scmp.ne.s32.totalorder %s92, %s94
      %p101 = scmp.eq.s32.totalorder %s21, 1
      %p102 = por %p100, %p101
      %p103 = scmp.ne.s32.totalorder %s94, %s95
      %p104 = scmp.eq.s32.totalorder %s21, 0
      %p105 = por %p103, %p104
      %p106 = scmp.ne.s32.totalorder %s94, %s95
      %p107 = scmp.eq.s32.totalorder %s22, 1
      %p108 = por %p106, %p107
      %p110 = scmp.ne.s32.totalorder %s95, %s109
      %p111 = scmp.eq.s32.totalorder %s22, 0
      %p112 = por %p110, %p111
      %s113 = ssub.s32 %s16, %s23
      %p114 = scmp.eq.s32.totalorder %s113, 0
      %s116 = sadd.s32 %s115, 1
      %s117 = scalar_select %p114, %s115, %s116
      %p120 = pneg %p114
      %p121 = scmp.eq.s32.totalorder %s16, 1
      %p122 = por %p120, %p121
      %p123 = scmp.ne.s32.totalorder %s115, %s118
      %p124 = scmp.eq.s32.totalorder %s16, 0
      %p125 = por %p123, %p124
      %p126 = scmp.ne.s32.totalorder %s115, %s118
      %p127 = scmp.eq.s32.totalorder %s21, 1
      %p128 = por %p126, %p127
      %p129 = scmp.ne.s32.totalorder %s118, %s119
      %p130 = scmp.eq.s32.totalorder %s21, 0
      %p131 = por %p129, %p130
      %p132 = scmp.ne.s32.totalorder %s118, %s119
      %p133 = scmp.eq.s32.totalorder %s22, 1
      %p134 = por %p132, %p133
      %p136 = scmp.ne.s32.totalorder %s119, %s135
      %p137 = scmp.eq.s32.totalorder %s22, 0
      %p138 = por %p136, %p137
      %s139 = ssub.s32 %s16, %s23
      %p140 = scmp.eq.s32.totalorder %s139, 0
      %s142 = sadd.s32 %s141, 1
      %s143 = scalar_select %p140, %s141, %s142
      %p146 = pneg %p140
      %p147 = scmp.eq.s32.totalorder %s16, 1
      %p148 = por %p146, %p147
      %p149 = scmp.ne.s32.totalorder %s141, %s144
      %p150 = scmp.eq.s32.totalorder %s16, 0
      %p151 = por %p149, %p150
      %p152 = scmp.ne.s32.totalorder %s141, %s144
      %p153 = scmp.eq.s32.totalorder %s21, 1
      %p154 = por %p152, %p153
      %p155 = scmp.ne.s32.totalorder %s144, %s145
      %p156 = scmp.eq.s32.totalorder %s21, 0
      %p157 = por %p155, %p156
      %p158 = scmp.ne.s32.totalorder %s144, %s145
      %p159 = scmp.eq.s32.totalorder %s22, 1
      %p160 = por %p158, %p159
      %p162 = scmp.ne.s32.totalorder %s145, %s161
      %p163 = scmp.eq.s32.totalorder %s22, 0
      %p164 = por %p162, %p163
      %p165 = scmp.le.s32.totalorder 1, %s16
      %p166 = scmp.lt.s32.totalorder %s16, 3
      %p167 = pnand %p165, %p166
      %p168 = pneg %p167
      // Predicated region
      $region9: #{tpu_custom_call.1} parent=5 // pred_check
        _
      $region10: #{tpu_custom_call.1} parent=5 // pred_check_branch
        %170 = sbr.rel (%p167) target = $region12
      $region11: #{tpu_custom_call.1} parent=5 // pred_region
        %s171 = ssub.s32 %s16, 1
        // Predicated region
        $region13: #{tpu_custom_call.1} parent=11 // pred_check
          %p172 = pneg %p63
        $region14: #{tpu_custom_call.1} parent=11 // pred_check_branch
          %174 = sbr.rel (%p172) target = $region16
        $region15: #{tpu_custom_call.1} parent=11 // pred_region
          %s176 = ssub.s32 16384, 16384
          %177 = vsyncadd [#allocation3], %s176
          %s178 = sshll.u32 [#allocation2], 4
          %s179 = int_to_ptr.vmem [resolvable:$true] %s178
          %184 = dma.hbm_to_vmem [thread:$0]  %s1, 16384, %s179, [#allocation3], 1024, 1024, 64
        $region16: #{tpu_custom_call.1} parent=11 // pred_fallthru
          _
        // Predicated region
        $region17: #{tpu_custom_call.1} parent=11 // pred_check
          %p185 = pneg %p84
        $region18: #{tpu_custom_call.1} parent=11 // pred_check_branch
          %187 = sbr.rel (%p185) target = $region20
        $region19: #{tpu_custom_call.1} parent=11 // pred_region
          _
        $region20: #{tpu_custom_call.1} parent=11 // pred_fallthru
          _
        // Predicated region
        $region21: #{tpu_custom_call.1} parent=11 // pred_check
          %p188 = pneg %p105
        $region22: #{tpu_custom_call.1} parent=11 // pred_check_branch
          %190 = sbr.rel (%p188) target = $region24
        $region23: #{tpu_custom_call.1} parent=11 // pred_region
          _
        $region24: #{tpu_custom_call.1} parent=11 // pred_fallthru
          _
      $region12: #{tpu_custom_call.1} parent=5 // pred_fallthru
        _
      %p191 = scmp.lt.s32.totalorder %s16, 2
      // Predicated region
      $region25: #{tpu_custom_call.1} parent=5 // pred_check
        %p192 = pneg %p191
      $region26: #{tpu_custom_call.1} parent=5 // pred_check_branch
        %194 = sbr.rel (%p192) target = $region28
      $region27: #{tpu_custom_call.1} parent=5 // pred_region
        // Predicated region
        $region29: #{tpu_custom_call.1} parent=27 // pred_check
          %p195 = pneg %p36
        $region30: #{tpu_custom_call.1} parent=27 // pred_check_branch
          %197 = sbr.rel (%p195) target = $region32
        $region31: #{tpu_custom_call.1} parent=27 // pred_region
          %p198 = scmp.lt.s32.totalorder %s16, 1
          %s199 = scalar_select %p198, %s16, 1
          %s200 = smul.addr %s199, 256
          %s201 = smul.addr %s200, 8
          %s202 = scalar_lea.vmem %s0, %s201
        $region32: #{tpu_custom_call.1} parent=27 // pred_fallthru
          _
      $region28: #{tpu_custom_call.1} parent=5 // pred_fallthru
        _
      %p203 = scmp.le.s32.totalorder 1, %s16
      %p204 = scmp.lt.s32.totalorder %s16, 3
      %p205 = pnand %p203, %p204
      %p206 = pneg %p205
      // Predicated region
      $region33: #{tpu_custom_call.1} parent=5 // pred_check
        _
      $region34: #{tpu_custom_call.1} parent=5 // pred_check_branch
        %208 = sbr.rel (%p205) target = $region36
      $region35: #{tpu_custom_call.1} parent=5 // pred_region
        %s209 = ssub.s32 %s16, 1
        // Predicated region
        $region37: #{tpu_custom_call.1} parent=35 // pred_check
          %p210 = pneg %p63
        $region38: #{tpu_custom_call.1} parent=35 // pred_check_branch
          %212 = sbr.rel (%p210) target = $region40
        $region39: #{tpu_custom_call.1} parent=35 // pred_region
          %213 = dma.done [#allocation3], 16384
        $region40: #{tpu_custom_call.1} parent=35 // pred_fallthru
          _
        %p214 = scmp.lt.s32.totalorder %s21, 1
        %s215 = scalar_select %p214, %s21, 1
        %s216 = smul.addr %s215, 256
        %s217 = smul.addr %s216, 8
        %s218 = scalar_lea.vmem %s0, %s217
        %p219 = pneg %p42
        %p220 = pneg %p39
        %p221 = pneg %p63
        %p222 = pneg %p60
        %p223 = pneg %p84
        %p224 = pneg %p81
        %p225 = pneg %p105
        %p226 = pneg %p102
        %p227 = pneg %p131
        %p228 = pneg %p128
        %p229 = scmp.lt.s32.totalorder %s21, 1
        %s230 = scalar_select %p229, %s21, 1
        %s231 = smul.addr %s230, 256
        %s232 = smul.addr %s231, 8
        %s233 = scalar_lea.vmem %s4, %s232
        %p234 = pneg %p157
        %p235 = pneg %p154
        %s236 = sand.u32 %s144, 1
        %s237 = scalar_lea.sflag [#allocation4], %s236
        %s238 = sand.u32 %s144, 1
        %s239 = smul.addr %s238, 128
        %s240 = scalar_lea.vmem [#allocation5], %s239
        %p241 = scmp.lt.s32.totalorder %s21, 1
        %s242 = scalar_select %p241, %s21, 1
        %s243 = smul.addr %s242, 256
        %s244 = smul.addr %s243, 8
        %s245 = scalar_lea.vmem %s0, %s244
        %p246 = scmp.lt.s32.totalorder %s21, 1
        %s247 = scalar_select %p246, %s21, 1
        %s248 = smul.addr %s247, 256
        %s249 = smul.addr %s248, 8
        %s250 = scalar_lea.vmem %s4, %s249
        %v252 = vld [vmem:[%s245] sm:$0xff]
        %v253 = vld [vmem:[%s245 + $0x8] sm:$0xff]
        %v254 = vld [vmem:[%s245 + $0x10] sm:$0xff]
        %v255 = vld [vmem:[%s245 + $0x18] sm:$0xff]
        %v256 = vld [vmem:[%s245 + $0x20] sm:$0xff]
        %v257 = vld [vmem:[%s245 + $0x28] sm:$0xff]
        %v258 = vld [vmem:[%s245 + $0x30] sm:$0xff]
        %v259 = vld [vmem:[%s245 + $0x38] sm:$0xff]
        %v260 = vld [vmem:[%s245 + $0x40] sm:$0xff]
        %v261 = vld [vmem:[%s245 + $0x48] sm:$0xff]
        %v262 = vld [vmem:[%s245 + $0x50] sm:$0xff]
        %v263 = vld [vmem:[%s245 + $0x58] sm:$0xff]
        %v264 = vld [vmem:[%s245 + $0x60] sm:$0xff]
        %v265 = vld [vmem:[%s245 + $0x68] sm:$0xff]
        %v266 = vld [vmem:[%s245 + $0x70] sm:$0xff]
        %v267 = vld [vmem:[%s245 + $0x78] sm:$0xff]
        %v268 = vld [vmem:[%s245 + $0x80] sm:$0xff]
        %v269 = vld [vmem:[%s245 + $0x88] sm:$0xff]
        %v270 = vld [vmem:[%s245 + $0x90] sm:$0xff]
        %v271 = vld [vmem:[%s245 + $0x98] sm:$0xff]
        %v272 = vld [vmem:[%s245 + $0xa0] sm:$0xff]
        %v273 = vld [vmem:[%s245 + $0xa8] sm:$0xff]
        %v274 = vld [vmem:[%s245 + $0xb0] sm:$0xff]
        %v275 = vld [vmem:[%s245 + $0xb8] sm:$0xff]
        %v276 = vld [vmem:[%s245 + $0xc0] sm:$0xff]
        %v277 = vld [vmem:[%s245 + $0xc8] sm:$0xff]
        %v278 = vld [vmem:[%s245 + $0xd0] sm:$0xff]
        %v279 = vld [vmem:[%s245 + $0xd8] sm:$0xff]
        %v280 = vld [vmem:[%s245 + $0xe0] sm:$0xff]
        %v281 = vld [vmem:[%s245 + $0xe8] sm:$0xff]
        %v282 = vld [vmem:[%s245 + $0xf0] sm:$0xff]
        %v283 = vld [vmem:[%s245 + $0xf8] sm:$0xff]
        %v284 = vld [vmem:[%s245 + $0x100] sm:$0xff]
        %v285 = vld [vmem:[%s245 + $0x108] sm:$0xff]
        %v286 = vld [vmem:[%s245 + $0x110] sm:$0xff]
        %v287 = vld [vmem:[%s245 + $0x118] sm:$0xff]
        %v288 = vld [vmem:[%s245 + $0x120] sm:$0xff]
        %v289 = vld [vmem:[%s245 + $0x128] sm:$0xff]
        %v290 = vld [vmem:[%s245 + $0x130] sm:$0xff]
        %v291 = vld [vmem:[%s245 + $0x138] sm:$0xff]
        %v292 = vld [vmem:[%s245 + $0x140] sm:$0xff]
        %v293 = vld [vmem:[%s245 + $0x148] sm:$0xff]
        %v294 = vld [vmem:[%s245 + $0x150] sm:$0xff]
        %v295 = vld [vmem:[%s245 + $0x158] sm:$0xff]
        %v296 = vld [vmem:[%s245 + $0x160] sm:$0xff]
        %v297 = vld [vmem:[%s245 + $0x168] sm:$0xff]
        %v298 = vld [vmem:[%s245 + $0x170] sm:$0xff]
        %v299 = vld [vmem:[%s245 + $0x178] sm:$0xff]
        %v300 = vld [vmem:[%s245 + $0x180] sm:$0xff]
        %v301 = vld [vmem:[%s245 + $0x188] sm:$0xff]
        %v302 = vld [vmem:[%s245 + $0x190] sm:$0xff]
        %v303 = vld [vmem:[%s245 + $0x198] sm:$0xff]
        %v304 = vld [vmem:[%s245 + $0x1a0] sm:$0xff]
        %v305 = vld [vmem:[%s245 + $0x1a8] sm:$0xff]
        %v306 = vld [vmem:[%s245 + $0x1b0] sm:$0xff]
        %v307 = vld [vmem:[%s245 + $0x1b8] sm:$0xff]
        %v308 = vld [vmem:[%s245 + $0x1c0] sm:$0xff]
        %v309 = vld [vmem:[%s245 + $0x1c8] sm:$0xff]
        %v310 = vld [vmem:[%s245 + $0x1d0] sm:$0xff]
        %v311 = vld [vmem:[%s245 + $0x1d8] sm:$0xff]
        %v312 = vld [vmem:[%s245 + $0x1e0] sm:$0xff]
        %v313 = vld [vmem:[%s245 + $0x1e8] sm:$0xff]
        %v314 = vld [vmem:[%s245 + $0x1f0] sm:$0xff]
        %v315 = vld [vmem:[%s245 + $0x1f8] sm:$0xff]
        %v316 = vld [vmem:[%s245 + $0x200] sm:$0xff]
        %v317 = vld [vmem:[%s245 + $0x208] sm:$0xff]
        %v318 = vld [vmem:[%s245 + $0x210] sm:$0xff]
        %v319 = vld [vmem:[%s245 + $0x218] sm:$0xff]
        %v320 = vld [vmem:[%s245 + $0x220] sm:$0xff]
        %v321 = vld [vmem:[%s245 + $0x228] sm:$0xff]
        %v322 = vld [vmem:[%s245 + $0x230] sm:$0xff]
        %v323 = vld [vmem:[%s245 + $0x238] sm:$0xff]
        %v324 = vld [vmem:[%s245 + $0x240] sm:$0xff]
        %v325 = vld [vmem:[%s245 + $0x248] sm:$0xff]
        %v326 = vld [vmem:[%s245 + $0x250] sm:$0xff]
        %v327 = vld [vmem:[%s245 + $0x258] sm:$0xff]
        %v328 = vld [vmem:[%s245 + $0x260] sm:$0xff]
        %v329 = vld [vmem:[%s245 + $0x268] sm:$0xff]
        %v330 = vld [vmem:[%s245 + $0x270] sm:$0xff]
        %v331 = vld [vmem:[%s245 + $0x278] sm:$0xff]
        %v332 = vld [vmem:[%s245 + $0x280] sm:$0xff]
        %v333 = vld [vmem:[%s245 + $0x288] sm:$0xff]
        %v334 = vld [vmem:[%s245 + $0x290] sm:$0xff]
        %v335 = vld [vmem:[%s245 + $0x298] sm:$0xff]
        %v336 = vld [vmem:[%s245 + $0x2a0] sm:$0xff]
        %v337 = vld [vmem:[%s245 + $0x2a8] sm:$0xff]
        %v338 = vld [vmem:[%s245 + $0x2b0] sm:$0xff]
        %v339 = vld [vmem:[%s245 + $0x2b8] sm:$0xff]
        %v340 = vld [vmem:[%s245 + $0x2c0] sm:$0xff]
        %v341 = vld [vmem:[%s245 + $0x2c8] sm:$0xff]
        %v342 = vld [vmem:[%s245 + $0x2d0] sm:$0xff]
        %v343 = vld [vmem:[%s245 + $0x2d8] sm:$0xff]
        %v344 = vld [vmem:[%s245 + $0x2e0] sm:$0xff]
        %v345 = vld [vmem:[%s245 + $0x2e8] sm:$0xff]
        %v346 = vld [vmem:[%s245 + $0x2f0] sm:$0xff]
        %v347 = vld [vmem:[%s245 + $0x2f8] sm:$0xff]
        %v348 = vld [vmem:[%s245 + $0x300] sm:$0xff]
        %v349 = vld [vmem:[%s245 + $0x308] sm:$0xff]
        %v350 = vld [vmem:[%s245 + $0x310] sm:$0xff]
        %v351 = vld [vmem:[%s245 + $0x318] sm:$0xff]
        %v352 = vld [vmem:[%s245 + $0x320] sm:$0xff]
        %v353 = vld [vmem:[%s245 + $0x328] sm:$0xff]
        %v354 = vld [vmem:[%s245 + $0x330] sm:$0xff]
        %v355 = vld [vmem:[%s245 + $0x338] sm:$0xff]
        %v356 = vld [vmem:[%s245 + $0x340] sm:$0xff]
        %v357 = vld [vmem:[%s245 + $0x348] sm:$0xff]
        %v358 = vld [vmem:[%s245 + $0x350] sm:$0xff]
        %v359 = vld [vmem:[%s245 + $0x358] sm:$0xff]
        %v360 = vld [vmem:[%s245 + $0x360] sm:$0xff]
        %v361 = vld [vmem:[%s245 + $0x368] sm:$0xff]
        %v362 = vld [vmem:[%s245 + $0x370] sm:$0xff]
        %v363 = vld [vmem:[%s245 + $0x378] sm:$0xff]
        %v364 = vld [vmem:[%s245 + $0x380] sm:$0xff]
        %v365 = vld [vmem:[%s245 + $0x388] sm:$0xff]
        %v366 = vld [vmem:[%s245 + $0x390] sm:$0xff]
        %v367 = vld [vmem:[%s245 + $0x398] sm:$0xff]
        %v368 = vld [vmem:[%s245 + $0x3a0] sm:$0xff]
        %v369 = vld [vmem:[%s245 + $0x3a8] sm:$0xff]
        %v370 = vld [vmem:[%s245 + $0x3b0] sm:$0xff]
        %v371 = vld [vmem:[%s245 + $0x3b8] sm:$0xff]
        %v372 = vld [vmem:[%s245 + $0x3c0] sm:$0xff]
        %v373 = vld [vmem:[%s245 + $0x3c8] sm:$0xff]
        %v374 = vld [vmem:[%s245 + $0x3d0] sm:$0xff]
        %v375 = vld [vmem:[%s245 + $0x3d8] sm:$0xff]
        %v376 = vld [vmem:[%s245 + $0x3e0] sm:$0xff]
        %v377 = vld [vmem:[%s245 + $0x3e8] sm:$0xff]
        %v378 = vld [vmem:[%s245 + $0x3f0] sm:$0xff]
        %v379 = vld [vmem:[%s245 + $0x3f8] sm:$0xff]
        %v380 = vld [vmem:[%s245 + $0x400] sm:$0xff]
        %v381 = vld [vmem:[%s245 + $0x408] sm:$0xff]
        %v382 = vld [vmem:[%s245 + $0x410] sm:$0xff]
        %v383 = vld [vmem:[%s245 + $0x418] sm:$0xff]
        %v384 = vld [vmem:[%s245 + $0x420] sm:$0xff]
        %v385 = vld [vmem:[%s245 + $0x428] sm:$0xff]
        %v386 = vld [vmem:[%s245 + $0x430] sm:$0xff]
        %v387 = vld [vmem:[%s245 + $0x438] sm:$0xff]
        %v388 = vld [vmem:[%s245 + $0x440] sm:$0xff]
        %v389 = vld [vmem:[%s245 + $0x448] sm:$0xff]
        %v390 = vld [vmem:[%s245 + $0x450] sm:$0xff]
        %v391 = vld [vmem:[%s245 + $0x458] sm:$0xff]
        %v392 = vld [vmem:[%s245 + $0x460] sm:$0xff]
        %v393 = vld [vmem:[%s245 + $0x468] sm:$0xff]
        %v394 = vld [vmem:[%s245 + $0x470] sm:$0xff]
        %v395 = vld [vmem:[%s245 + $0x478] sm:$0xff]
        %v396 = vld [vmem:[%s245 + $0x480] sm:$0xff]
        %v397 = vld [vmem:[%s245 + $0x488] sm:$0xff]
        %v398 = vld [vmem:[%s245 + $0x490] sm:$0xff]
        %v399 = vld [vmem:[%s245 + $0x498] sm:$0xff]
        %v400 = vld [vmem:[%s245 + $0x4a0] sm:$0xff]
        %v401 = vld [vmem:[%s245 + $0x4a8] sm:$0xff]
        %v402 = vld [vmem:[%s245 + $0x4b0] sm:$0xff]
        %v403 = vld [vmem:[%s245 + $0x4b8] sm:$0xff]
        %v404 = vld [vmem:[%s245 + $0x4c0] sm:$0xff]
        %v405 = vld [vmem:[%s245 + $0x4c8] sm:$0xff]
        %v406 = vld [vmem:[%s245 + $0x4d0] sm:$0xff]
        %v407 = vld [vmem:[%s245 + $0x4d8] sm:$0xff]
        %v408 = vld [vmem:[%s245 + $0x4e0] sm:$0xff]
        %v409 = vld [vmem:[%s245 + $0x4e8] sm:$0xff]
        %v410 = vld [vmem:[%s245 + $0x4f0] sm:$0xff]
        %v411 = vld [vmem:[%s245 + $0x4f8] sm:$0xff]
        %v412 = vld [vmem:[%s245 + $0x500] sm:$0xff]
        %v413 = vld [vmem:[%s245 + $0x508] sm:$0xff]
        %v414 = vld [vmem:[%s245 + $0x510] sm:$0xff]
        %v415 = vld [vmem:[%s245 + $0x518] sm:$0xff]
        %v416 = vld [vmem:[%s245 + $0x520] sm:$0xff]
        %v417 = vld [vmem:[%s245 + $0x528] sm:$0xff]
        %v418 = vld [vmem:[%s245 + $0x530] sm:$0xff]
        %v419 = vld [vmem:[%s245 + $0x538] sm:$0xff]
        %v420 = vld [vmem:[%s245 + $0x540] sm:$0xff]
        %v421 = vld [vmem:[%s245 + $0x548] sm:$0xff]
        %v422 = vld [vmem:[%s245 + $0x550] sm:$0xff]
        %v423 = vld [vmem:[%s245 + $0x558] sm:$0xff]
        %v424 = vld [vmem:[%s245 + $0x560] sm:$0xff]
        %v425 = vld [vmem:[%s245 + $0x568] sm:$0xff]
        %v426 = vld [vmem:[%s245 + $0x570] sm:$0xff]
        %v427 = vld [vmem:[%s245 + $0x578] sm:$0xff]
        %v428 = vld [vmem:[%s245 + $0x580] sm:$0xff]
        %v429 = vld [vmem:[%s245 + $0x588] sm:$0xff]
        %v430 = vld [vmem:[%s245 + $0x590] sm:$0xff]
        %v431 = vld [vmem:[%s245 + $0x598] sm:$0xff]
        %v432 = vld [vmem:[%s245 + $0x5a0] sm:$0xff]
        %v433 = vld [vmem:[%s245 + $0x5a8] sm:$0xff]
        %v434 = vld [vmem:[%s245 + $0x5b0] sm:$0xff]
        %v435 = vld [vmem:[%s245 + $0x5b8] sm:$0xff]
        %v436 = vld [vmem:[%s245 + $0x5c0] sm:$0xff]
        %v437 = vld [vmem:[%s245 + $0x5c8] sm:$0xff]
        %v438 = vld [vmem:[%s245 + $0x5d0] sm:$0xff]
        %v439 = vld [vmem:[%s245 + $0x5d8] sm:$0xff]
        %v440 = vld [vmem:[%s245 + $0x5e0] sm:$0xff]
        %v441 = vld [vmem:[%s245 + $0x5e8] sm:$0xff]
        %v442 = vld [vmem:[%s245 + $0x5f0] sm:$0xff]
        %v443 = vld [vmem:[%s245 + $0x5f8] sm:$0xff]
        %v444 = vld [vmem:[%s245 + $0x600] sm:$0xff]
        %v445 = vld [vmem:[%s245 + $0x608] sm:$0xff]
        %v446 = vld [vmem:[%s245 + $0x610] sm:$0xff]
        %v447 = vld [vmem:[%s245 + $0x618] sm:$0xff]
        %v448 = vld [vmem:[%s245 + $0x620] sm:$0xff]
        %v449 = vld [vmem:[%s245 + $0x628] sm:$0xff]
        %v450 = vld [vmem:[%s245 + $0x630] sm:$0xff]
        %v451 = vld [vmem:[%s245 + $0x638] sm:$0xff]
        %v452 = vld [vmem:[%s245 + $0x640] sm:$0xff]
        %v453 = vld [vmem:[%s245 + $0x648] sm:$0xff]
        %v454 = vld [vmem:[%s245 + $0x650] sm:$0xff]
        %v455 = vld [vmem:[%s245 + $0x658] sm:$0xff]
        %v456 = vld [vmem:[%s245 + $0x660] sm:$0xff]
        %v457 = vld [vmem:[%s245 + $0x668] sm:$0xff]
        %v458 = vld [vmem:[%s245 + $0x670] sm:$0xff]
        %v459 = vld [vmem:[%s245 + $0x678] sm:$0xff]
        %v460 = vld [vmem:[%s245 + $0x680] sm:$0xff]
        %v461 = vld [vmem:[%s245 + $0x688] sm:$0xff]
        %v462 = vld [vmem:[%s245 + $0x690] sm:$0xff]
        %v463 = vld [vmem:[%s245 + $0x698] sm:$0xff]
        %v464 = vld [vmem:[%s245 + $0x6a0] sm:$0xff]
        %v465 = vld [vmem:[%s245 + $0x6a8] sm:$0xff]
        %v466 = vld [vmem:[%s245 + $0x6b0] sm:$0xff]
        %v467 = vld [vmem:[%s245 + $0x6b8] sm:$0xff]
        %v468 = vld [vmem:[%s245 + $0x6c0] sm:$0xff]
        %v469 = vld [vmem:[%s245 + $0x6c8] sm:$0xff]
        %v470 = vld [vmem:[%s245 + $0x6d0] sm:$0xff]
        %v471 = vld [vmem:[%s245 + $0x6d8] sm:$0xff]
        %v472 = vld [vmem:[%s245 + $0x6e0] sm:$0xff]
        %v473 = vld [vmem:[%s245 + $0x6e8] sm:$0xff]
        %v474 = vld [vmem:[%s245 + $0x6f0] sm:$0xff]
        %v475 = vld [vmem:[%s245 + $0x6f8] sm:$0xff]
        %v476 = vld [vmem:[%s245 + $0x700] sm:$0xff]
        %v477 = vld [vmem:[%s245 + $0x708] sm:$0xff]
        %v478 = vld [vmem:[%s245 + $0x710] sm:$0xff]
        %v479 = vld [vmem:[%s245 + $0x718] sm:$0xff]
        %v480 = vld [vmem:[%s245 + $0x720] sm:$0xff]
        %v481 = vld [vmem:[%s245 + $0x728] sm:$0xff]
        %v482 = vld [vmem:[%s245 + $0x730] sm:$0xff]
        %v483 = vld [vmem:[%s245 + $0x738] sm:$0xff]
        %v484 = vld [vmem:[%s245 + $0x740] sm:$0xff]
        %v485 = vld [vmem:[%s245 + $0x748] sm:$0xff]
        %v486 = vld [vmem:[%s245 + $0x750] sm:$0xff]
        %v487 = vld [vmem:[%s245 + $0x758] sm:$0xff]
        %v488 = vld [vmem:[%s245 + $0x760] sm:$0xff]
        %v489 = vld [vmem:[%s245 + $0x768] sm:$0xff]
        %v490 = vld [vmem:[%s245 + $0x770] sm:$0xff]
        %v491 = vld [vmem:[%s245 + $0x778] sm:$0xff]
        %v492 = vld [vmem:[%s245 + $0x780] sm:$0xff]
        %v493 = vld [vmem:[%s245 + $0x788] sm:$0xff]
        %v494 = vld [vmem:[%s245 + $0x790] sm:$0xff]
        %v495 = vld [vmem:[%s245 + $0x798] sm:$0xff]
        %v496 = vld [vmem:[%s245 + $0x7a0] sm:$0xff]
        %v497 = vld [vmem:[%s245 + $0x7a8] sm:$0xff]
        %v498 = vld [vmem:[%s245 + $0x7b0] sm:$0xff]
        %v499 = vld [vmem:[%s245 + $0x7b8] sm:$0xff]
        %v500 = vld [vmem:[%s245 + $0x7c0] sm:$0xff]
        %v501 = vld [vmem:[%s245 + $0x7c8] sm:$0xff]
        %v502 = vld [vmem:[%s245 + $0x7d0] sm:$0xff]
        %v503 = vld [vmem:[%s245 + $0x7d8] sm:$0xff]
        %v504 = vld [vmem:[%s245 + $0x7e0] sm:$0xff]
        %v505 = vld [vmem:[%s245 + $0x7e8] sm:$0xff]
        %v506 = vld [vmem:[%s245 + $0x7f0] sm:$0xff]
        %v507 = vld [vmem:[%s245 + $0x7f8] sm:$0xff]
        %508 = vadd.xlane.f32.xlu0 %v252
        %v509 = vpop.xlane.xlu0 %508
        %510 = vadd.xlane.f32.xlu0 %v253
        %v511 = vpop.xlane.xlu0 %510
        %512 = vadd.xlane.f32.xlu0 %v254
        %v513 = vpop.xlane.xlu0 %512
        %514 = vadd.xlane.f32.xlu0 %v255
        %v515 = vpop.xlane.xlu0 %514
        %516 = vadd.xlane.f32.xlu0 %v256
        %v517 = vpop.xlane.xlu0 %516
        %518 = vadd.xlane.f32.xlu0 %v257
        %v519 = vpop.xlane.xlu0 %518
        %520 = vadd.xlane.f32.xlu0 %v258
        %v521 = vpop.xlane.xlu0 %520
        %522 = vadd.xlane.f32.xlu0 %v259
        %v523 = vpop.xlane.xlu0 %522
        %524 = vadd.xlane.f32.xlu0 %v260
        %v525 = vpop.xlane.xlu0 %524
        %526 = vadd.xlane.f32.xlu0 %v261
        %v527 = vpop.xlane.xlu0 %526
        %528 = vadd.xlane.f32.xlu0 %v262
        %v529 = vpop.xlane.xlu0 %528
        %530 = vadd.xlane.f32.xlu0 %v263
        %v531 = vpop.xlane.xlu0 %530
        %532 = vadd.xlane.f32.xlu0 %v264
        %v533 = vpop.xlane.xlu0 %532
        %534 = vadd.xlane.f32.xlu0 %v265
        %v535 = vpop.xlane.xlu0 %534
        %536 = vadd.xlane.f32.xlu0 %v266
        %v537 = vpop.xlane.xlu0 %536
        %538 = vadd.xlane.f32.xlu0 %v267
        %v539 = vpop.xlane.xlu0 %538
        %540 = vadd.xlane.f32.xlu0 %v268
        %v541 = vpop.xlane.xlu0 %540
        %542 = vadd.xlane.f32.xlu0 %v269
        %v543 = vpop.xlane.xlu0 %542
        %544 = vadd.xlane.f32.xlu0 %v270
        %v545 = vpop.xlane.xlu0 %544
        %546 = vadd.xlane.f32.xlu0 %v271
        %v547 = vpop.xlane.xlu0 %546
        %548 = vadd.xlane.f32.xlu0 %v272
        %v549 = vpop.xlane.xlu0 %548
        %550 = vadd.xlane.f32.xlu0 %v273
        %v551 = vpop.xlane.xlu0 %550
        %552 = vadd.xlane.f32.xlu0 %v274
        %v553 = vpop.xlane.xlu0 %552
        %554 = vadd.xlane.f32.xlu0 %v275
        %v555 = vpop.xlane.xlu0 %554
        %556 = vadd.xlane.f32.xlu0 %v276
        %v557 = vpop.xlane.xlu0 %556
        %558 = vadd.xlane.f32.xlu0 %v277
        %v559 = vpop.xlane.xlu0 %558
        %560 = vadd.xlane.f32.xlu0 %v278
        %v561 = vpop.xlane.xlu0 %560
        %562 = vadd.xlane.f32.xlu0 %v279
        %v563 = vpop.xlane.xlu0 %562
        %564 = vadd.xlane.f32.xlu0 %v280
        %v565 = vpop.xlane.xlu0 %564
        %566 = vadd.xlane.f32.xlu0 %v281
        %v567 = vpop.xlane.xlu0 %566
        %568 = vadd.xlane.f32.xlu0 %v282
        %v569 = vpop.xlane.xlu0 %568
        %570 = vadd.xlane.f32.xlu0 %v283
        %v571 = vpop.xlane.xlu0 %570
        %572 = vadd.xlane.f32.xlu0 %v284
        %v573 = vpop.xlane.xlu0 %572
        %574 = vadd.xlane.f32.xlu0 %v285
        %v575 = vpop.xlane.xlu0 %574
        %576 = vadd.xlane.f32.xlu0 %v286
        %v577 = vpop.xlane.xlu0 %576
        %578 = vadd.xlane.f32.xlu0 %v287
        %v579 = vpop.xlane.xlu0 %578
        %580 = vadd.xlane.f32.xlu0 %v288
        %v581 = vpop.xlane.xlu0 %580
        %582 = vadd.xlane.f32.xlu0 %v289
        %v583 = vpop.xlane.xlu0 %582
        %584 = vadd.xlane.f32.xlu0 %v290
        %v585 = vpop.xlane.xlu0 %584
        %586 = vadd.xlane.f32.xlu0 %v291
        %v587 = vpop.xlane.xlu0 %586
        %588 = vadd.xlane.f32.xlu0 %v292
        %v589 = vpop.xlane.xlu0 %588
        %590 = vadd.xlane.f32.xlu0 %v293
        %v591 = vpop.xlane.xlu0 %590
        %592 = vadd.xlane.f32.xlu0 %v294
        %v593 = vpop.xlane.xlu0 %592
        %594 = vadd.xlane.f32.xlu0 %v295
        %v595 = vpop.xlane.xlu0 %594
        %596 = vadd.xlane.f32.xlu0 %v296
        %v597 = vpop.xlane.xlu0 %596
        %598 = vadd.xlane.f32.xlu0 %v297
        %v599 = vpop.xlane.xlu0 %598
        %600 = vadd.xlane.f32.xlu0 %v298
        %v601 = vpop.xlane.xlu0 %600
        %602 = vadd.xlane.f32.xlu0 %v299
        %v603 = vpop.xlane.xlu0 %602
        %604 = vadd.xlane.f32.xlu0 %v300
        %v605 = vpop.xlane.xlu0 %604
        %606 = vadd.xlane.f32.xlu0 %v301
        %v607 = vpop.xlane.xlu0 %606
        %608 = vadd.xlane.f32.xlu0 %v302
        %v609 = vpop.xlane.xlu0 %608
        %610 = vadd.xlane.f32.xlu0 %v303
        %v611 = vpop.xlane.xlu0 %610
        %612 = vadd.xlane.f32.xlu0 %v304
        %v613 = vpop.xlane.xlu0 %612
        %614 = vadd.xlane.f32.xlu0 %v305
        %v615 = vpop.xlane.xlu0 %614
        %616 = vadd.xlane.f32.xlu0 %v306
        %v617 = vpop.xlane.xlu0 %616
        %618 = vadd.xlane.f32.xlu0 %v307
        %v619 = vpop.xlane.xlu0 %618
        %620 = vadd.xlane.f32.xlu0 %v308
        %v621 = vpop.xlane.xlu0 %620
        %622 = vadd.xlane.f32.xlu0 %v309
        %v623 = vpop.xlane.xlu0 %622
        %624 = vadd.xlane.f32.xlu0 %v310
        %v625 = vpop.xlane.xlu0 %624
        %626 = vadd.xlane.f32.xlu0 %v311
        %v627 = vpop.xlane.xlu0 %626
        %628 = vadd.xlane.f32.xlu0 %v312
        %v629 = vpop.xlane.xlu0 %628
        %630 = vadd.xlane.f32.xlu0 %v313
        %v631 = vpop.xlane.xlu0 %630
        %632 = vadd.xlane.f32.xlu0 %v314
        %v633 = vpop.xlane.xlu0 %632
        %634 = vadd.xlane.f32.xlu0 %v315
        %v635 = vpop.xlane.xlu0 %634
        %636 = vadd.xlane.f32.xlu0 %v316
        %v637 = vpop.xlane.xlu0 %636
        %638 = vadd.xlane.f32.xlu0 %v317
        %v639 = vpop.xlane.xlu0 %638
        %640 = vadd.xlane.f32.xlu0 %v318
        %v641 = vpop.xlane.xlu0 %640
        %642 = vadd.xlane.f32.xlu0 %v319
        %v643 = vpop.xlane.xlu0 %642
        %644 = vadd.xlane.f32.xlu0 %v320
        %v645 = vpop.xlane.xlu0 %644
        %646 = vadd.xlane.f32.xlu0 %v321
        %v647 = vpop.xlane.xlu0 %646
        %648 = vadd.xlane.f32.xlu0 %v322
        %v649 = vpop.xlane.xlu0 %648
        %650 = vadd.xlane.f32.xlu0 %v323
        %v651 = vpop.xlane.xlu0 %650
        %652 = vadd.xlane.f32.xlu0 %v324
        %v653 = vpop.xlane.xlu0 %652
        %654 = vadd.xlane.f32.xlu0 %v325
        %v655 = vpop.xlane.xlu0 %654
        %656 = vadd.xlane.f32.xlu0 %v326
        %v657 = vpop.xlane.xlu0 %656
        %658 = vadd.xlane.f32.xlu0 %v327
        %v659 = vpop.xlane.xlu0 %658
        %660 = vadd.xlane.f32.xlu0 %v328
        %v661 = vpop.xlane.xlu0 %660
        %662 = vadd.xlane.f32.xlu0 %v329
        %v663 = vpop.xlane.xlu0 %662
        %664 = vadd.xlane.f32.xlu0 %v330
        %v665 = vpop.xlane.xlu0 %664
        %666 = vadd.xlane.f32.xlu0 %v331
        %v667 = vpop.xlane.xlu0 %666
        %668 = vadd.xlane.f32.xlu0 %v332
        %v669 = vpop.xlane.xlu0 %668
        %670 = vadd.xlane.f32.xlu0 %v333
        %v671 = vpop.xlane.xlu0 %670
        %672 = vadd.xlane.f32.xlu0 %v334
        %v673 = vpop.xlane.xlu0 %672
        %674 = vadd.xlane.f32.xlu0 %v335
        %v675 = vpop.xlane.xlu0 %674
        %676 = vadd.xlane.f32.xlu0 %v336
        %v677 = vpop.xlane.xlu0 %676
        %678 = vadd.xlane.f32.xlu0 %v337
        %v679 = vpop.xlane.xlu0 %678
        %680 = vadd.xlane.f32.xlu0 %v338
        %v681 = vpop.xlane.xlu0 %680
        %682 = vadd.xlane.f32.xlu0 %v339
        %v683 = vpop.xlane.xlu0 %682
        %684 = vadd.xlane.f32.xlu0 %v340
        %v685 = vpop.xlane.xlu0 %684
        %686 = vadd.xlane.f32.xlu0 %v341
        %v687 = vpop.xlane.xlu0 %686
        %688 = vadd.xlane.f32.xlu0 %v342
        %v689 = vpop.xlane.xlu0 %688
        %690 = vadd.xlane.f32.xlu0 %v343
        %v691 = vpop.xlane.xlu0 %690
        %692 = vadd.xlane.f32.xlu0 %v344
        %v693 = vpop.xlane.xlu0 %692
        %694 = vadd.xlane.f32.xlu0 %v345
        %v695 = vpop.xlane.xlu0 %694
        %696 = vadd.xlane.f32.xlu0 %v346
        %v697 = vpop.xlane.xlu0 %696
        %698 = vadd.xlane.f32.xlu0 %v347
        %v699 = vpop.xlane.xlu0 %698
        %700 = vadd.xlane.f32.xlu0 %v348
        %v701 = vpop.xlane.xlu0 %700
        %702 = vadd.xlane.f32.xlu0 %v349
        %v703 = vpop.xlane.xlu0 %702
        %704 = vadd.xlane.f32.xlu0 %v350
        %v705 = vpop.xlane.xlu0 %704
        %706 = vadd.xlane.f32.xlu0 %v351
        %v707 = vpop.xlane.xlu0 %706
        %708 = vadd.xlane.f32.xlu0 %v352
        %v709 = vpop.xlane.xlu0 %708
        %710 = vadd.xlane.f32.xlu0 %v353
        %v711 = vpop.xlane.xlu0 %710
        %712 = vadd.xlane.f32.xlu0 %v354
        %v713 = vpop.xlane.xlu0 %712
        %714 = vadd.xlane.f32.xlu0 %v355
        %v715 = vpop.xlane.xlu0 %714
        %716 = vadd.xlane.f32.xlu0 %v356
        %v717 = vpop.xlane.xlu0 %716
        %718 = vadd.xlane.f32.xlu0 %v357
        %v719 = vpop.xlane.xlu0 %718
        %720 = vadd.xlane.f32.xlu0 %v358
        %v721 = vpop.xlane.xlu0 %720
        %722 = vadd.xlane.f32.xlu0 %v359
        %v723 = vpop.xlane.xlu0 %722
        %724 = vadd.xlane.f32.xlu0 %v360
        %v725 = vpop.xlane.xlu0 %724
        %726 = vadd.xlane.f32.xlu0 %v361
        %v727 = vpop.xlane.xlu0 %726
        %728 = vadd.xlane.f32.xlu0 %v362
        %v729 = vpop.xlane.xlu0 %728
        %730 = vadd.xlane.f32.xlu0 %v363
        %v731 = vpop.xlane.xlu0 %730
        %732 = vadd.xlane.f32.xlu0 %v364
        %v733 = vpop.xlane.xlu0 %732
        %734 = vadd.xlane.f32.xlu0 %v365
        %v735 = vpop.xlane.xlu0 %734
        %736 = vadd.xlane.f32.xlu0 %v366
        %v737 = vpop.xlane.xlu0 %736
        %738 = vadd.xlane.f32.xlu0 %v367
        %v739 = vpop.xlane.xlu0 %738
        %740 = vadd.xlane.f32.xlu0 %v368
        %v741 = vpop.xlane.xlu0 %740
        %742 = vadd.xlane.f32.xlu0 %v369
        %v743 = vpop.xlane.xlu0 %742
        %744 = vadd.xlane.f32.xlu0 %v370
        %v745 = vpop.xlane.xlu0 %744
        %746 = vadd.xlane.f32.xlu0 %v371
        %v747 = vpop.xlane.xlu0 %746
        %748 = vadd.xlane.f32.xlu0 %v372
        %v749 = vpop.xlane.xlu0 %748
        %750 = vadd.xlane.f32.xlu0 %v373
        %v751 = vpop.xlane.xlu0 %750
        %752 = vadd.xlane.f32.xlu0 %v374
        %v753 = vpop.xlane.xlu0 %752
        %754 = vadd.xlane.f32.xlu0 %v375
        %v755 = vpop.xlane.xlu0 %754
        %756 = vadd.xlane.f32.xlu0 %v376
        %v757 = vpop.xlane.xlu0 %756
        %758 = vadd.xlane.f32.xlu0 %v377
        %v759 = vpop.xlane.xlu0 %758
        %760 = vadd.xlane.f32.xlu0 %v378
        %v761 = vpop.xlane.xlu0 %760
        %762 = vadd.xlane.f32.xlu0 %v379
        %v763 = vpop.xlane.xlu0 %762
        %764 = vadd.xlane.f32.xlu0 %v380
        %v765 = vpop.xlane.xlu0 %764
        %766 = vadd.xlane.f32.xlu0 %v381
        %v767 = vpop.xlane.xlu0 %766
        %768 = vadd.xlane.f32.xlu0 %v382
        %v769 = vpop.xlane.xlu0 %768
        %770 = vadd.xlane.f32.xlu0 %v383
        %v771 = vpop.xlane.xlu0 %770
        %772 = vadd.xlane.f32.xlu0 %v384
        %v773 = vpop.xlane.xlu0 %772
        %774 = vadd.xlane.f32.xlu0 %v385
        %v775 = vpop.xlane.xlu0 %774
        %776 = vadd.xlane.f32.xlu0 %v386
        %v777 = vpop.xlane.xlu0 %776
        %778 = vadd.xlane.f32.xlu0 %v387
        %v779 = vpop.xlane.xlu0 %778
        %780 = vadd.xlane.f32.xlu0 %v388
        %v781 = vpop.xlane.xlu0 %780
        %782 = vadd.xlane.f32.xlu0 %v389
        %v783 = vpop.xlane.xlu0 %782
        %784 = vadd.xlane.f32.xlu0 %v390
        %v785 = vpop.xlane.xlu0 %784
        %786 = vadd.xlane.f32.xlu0 %v391
        %v787 = vpop.xlane.xlu0 %786
        %788 = vadd.xlane.f32.xlu0 %v392
        %v789 = vpop.xlane.xlu0 %788
        %790 = vadd.xlane.f32.xlu0 %v393
        %v791 = vpop.xlane.xlu0 %790
        %792 = vadd.xlane.f32.xlu0 %v394
        %v793 = vpop.xlane.xlu0 %792
        %794 = vadd.xlane.f32.xlu0 %v395
        %v795 = vpop.xlane.xlu0 %794
        %796 = vadd.xlane.f32.xlu0 %v396
        %v797 = vpop.xlane.xlu0 %796
        %798 = vadd.xlane.f32.xlu0 %v397
        %v799 = vpop.xlane.xlu0 %798
        %800 = vadd.xlane.f32.xlu0 %v398
        %v801 = vpop.xlane.xlu0 %800
        %802 = vadd.xlane.f32.xlu0 %v399
        %v803 = vpop.xlane.xlu0 %802
        %804 = vadd.xlane.f32.xlu0 %v400
        %v805 = vpop.xlane.xlu0 %804
        %806 = vadd.xlane.f32.xlu0 %v401
        %v807 = vpop.xlane.xlu0 %806
        %808 = vadd.xlane.f32.xlu0 %v402
        %v809 = vpop.xlane.xlu0 %808
        %810 = vadd.xlane.f32.xlu0 %v403
        %v811 = vpop.xlane.xlu0 %810
        %812 = vadd.xlane.f32.xlu0 %v404
        %v813 = vpop.xlane.xlu0 %812
        %814 = vadd.xlane.f32.xlu0 %v405
        %v815 = vpop.xlane.xlu0 %814
        %816 = vadd.xlane.f32.xlu0 %v406
        %v817 = vpop.xlane.xlu0 %816
        %818 = vadd.xlane.f32.xlu0 %v407
        %v819 = vpop.xlane.xlu0 %818
        %820 = vadd.xlane.f32.xlu0 %v408
        %v821 = vpop.xlane.xlu0 %820
        %822 = vadd.xlane.f32.xlu0 %v409
        %v823 = vpop.xlane.xlu0 %822
        %824 = vadd.xlane.f32.xlu0 %v410
        %v825 = vpop.xlane.xlu0 %824
        %826 = vadd.xlane.f32.xlu0 %v411
        %v827 = vpop.xlane.xlu0 %826
        %828 = vadd.xlane.f32.xlu0 %v412
        %v829 = vpop.xlane.xlu0 %828
        %830 = vadd.xlane.f32.xlu0 %v413
        %v831 = vpop.xlane.xlu0 %830
        %832 = vadd.xlane.f32.xlu0 %v414
        %v833 = vpop.xlane.xlu0 %832
        %834 = vadd.xlane.f32.xlu0 %v415
        %v835 = vpop.xlane.xlu0 %834
        %836 = vadd.xlane.f32.xlu0 %v416
        %v837 = vpop.xlane.xlu0 %836
        %838 = vadd.xlane.f32.xlu0 %v417
        %v839 = vpop.xlane.xlu0 %838
        %840 = vadd.xlane.f32.xlu0 %v418
        %v841 = vpop.xlane.xlu0 %840
        %842 = vadd.xlane.f32.xlu0 %v419
        %v843 = vpop.xlane.xlu0 %842
        %844 = vadd.xlane.f32.xlu0 %v420
        %v845 = vpop.xlane.xlu0 %844
        %846 = vadd.xlane.f32.xlu0 %v421
        %v847 = vpop.xlane.xlu0 %846
        %848 = vadd.xlane.f32.xlu0 %v422
        %v849 = vpop.xlane.xlu0 %848
        %850 = vadd.xlane.f32.xlu0 %v423
        %v851 = vpop.xlane.xlu0 %850
        %852 = vadd.xlane.f32.xlu0 %v424
        %v853 = vpop.xlane.xlu0 %852
        %854 = vadd.xlane.f32.xlu0 %v425
        %v855 = vpop.xlane.xlu0 %854
        %856 = vadd.xlane.f32.xlu0 %v426
        %v857 = vpop.xlane.xlu0 %856
        %858 = vadd.xlane.f32.xlu0 %v427
        %v859 = vpop.xlane.xlu0 %858
        %860 = vadd.xlane.f32.xlu0 %v428
        %v861 = vpop.xlane.xlu0 %860
        %862 = vadd.xlane.f32.xlu0 %v429
        %v863 = vpop.xlane.xlu0 %862
        %864 = vadd.xlane.f32.xlu0 %v430
        %v865 = vpop.xlane.xlu0 %864
        %866 = vadd.xlane.f32.xlu0 %v431
        %v867 = vpop.xlane.xlu0 %866
        %868 = vadd.xlane.f32.xlu0 %v432
        %v869 = vpop.xlane.xlu0 %868
        %870 = vadd.xlane.f32.xlu0 %v433
        %v871 = vpop.xlane.xlu0 %870
        %872 = vadd.xlane.f32.xlu0 %v434
        %v873 = vpop.xlane.xlu0 %872
        %874 = vadd.xlane.f32.xlu0 %v435
        %v875 = vpop.xlane.xlu0 %874
        %876 = vadd.xlane.f32.xlu0 %v436
        %v877 = vpop.xlane.xlu0 %876
        %878 = vadd.xlane.f32.xlu0 %v437
        %v879 = vpop.xlane.xlu0 %878
        %880 = vadd.xlane.f32.xlu0 %v438
        %v881 = vpop.xlane.xlu0 %880
        %882 = vadd.xlane.f32.xlu0 %v439
        %v883 = vpop.xlane.xlu0 %882
        %884 = vadd.xlane.f32.xlu0 %v440
        %v885 = vpop.xlane.xlu0 %884
        %886 = vadd.xlane.f32.xlu0 %v441
        %v887 = vpop.xlane.xlu0 %886
        %888 = vadd.xlane.f32.xlu0 %v442
        %v889 = vpop.xlane.xlu0 %888
        %890 = vadd.xlane.f32.xlu0 %v443
        %v891 = vpop.xlane.xlu0 %890
        %892 = vadd.xlane.f32.xlu0 %v444
        %v893 = vpop.xlane.xlu0 %892
        %894 = vadd.xlane.f32.xlu0 %v445
        %v895 = vpop.xlane.xlu0 %894
        %896 = vadd.xlane.f32.xlu0 %v446
        %v897 = vpop.xlane.xlu0 %896
        %898 = vadd.xlane.f32.xlu0 %v447
        %v899 = vpop.xlane.xlu0 %898
        %900 = vadd.xlane.f32.xlu0 %v448
        %v901 = vpop.xlane.xlu0 %900
        %902 = vadd.xlane.f32.xlu0 %v449
        %v903 = vpop.xlane.xlu0 %902
        %904 = vadd.xlane.f32.xlu0 %v450
        %v905 = vpop.xlane.xlu0 %904
        %906 = vadd.xlane.f32.xlu0 %v451
        %v907 = vpop.xlane.xlu0 %906
        %908 = vadd.xlane.f32.xlu0 %v452
        %v909 = vpop.xlane.xlu0 %908
        %910 = vadd.xlane.f32.xlu0 %v453
        %v911 = vpop.xlane.xlu0 %910
        %912 = vadd.xlane.f32.xlu0 %v454
        %v913 = vpop.xlane.xlu0 %912
        %914 = vadd.xlane.f32.xlu0 %v455
        %v915 = vpop.xlane.xlu0 %914
        %916 = vadd.xlane.f32.xlu0 %v456
        %v917 = vpop.xlane.xlu0 %916
        %918 = vadd.xlane.f32.xlu0 %v457
        %v919 = vpop.xlane.xlu0 %918
        %920 = vadd.xlane.f32.xlu0 %v458
        %v921 = vpop.xlane.xlu0 %920
        %922 = vadd.xlane.f32.xlu0 %v459
        %v923 = vpop.xlane.xlu0 %922
        %924 = vadd.xlane.f32.xlu0 %v460
        %v925 = vpop.xlane.xlu0 %924
        %926 = vadd.xlane.f32.xlu0 %v461
        %v927 = vpop.xlane.xlu0 %926
        %928 = vadd.xlane.f32.xlu0 %v462
        %v929 = vpop.xlane.xlu0 %928
        %930 = vadd.xlane.f32.xlu0 %v463
        %v931 = vpop.xlane.xlu0 %930
        %932 = vadd.xlane.f32.xlu0 %v464
        %v933 = vpop.xlane.xlu0 %932
        %934 = vadd.xlane.f32.xlu0 %v465
        %v935 = vpop.xlane.xlu0 %934
        %936 = vadd.xlane.f32.xlu0 %v466
        %v937 = vpop.xlane.xlu0 %936
        %938 = vadd.xlane.f32.xlu0 %v467
        %v939 = vpop.xlane.xlu0 %938
        %940 = vadd.xlane.f32.xlu0 %v468
        %v941 = vpop.xlane.xlu0 %940
        %942 = vadd.xlane.f32.xlu0 %v469
        %v943 = vpop.xlane.xlu0 %942
        %944 = vadd.xlane.f32.xlu0 %v470
        %v945 = vpop.xlane.xlu0 %944
        %946 = vadd.xlane.f32.xlu0 %v471
        %v947 = vpop.xlane.xlu0 %946
        %948 = vadd.xlane.f32.xlu0 %v472
        %v949 = vpop.xlane.xlu0 %948
        %950 = vadd.xlane.f32.xlu0 %v473
        %v951 = vpop.xlane.xlu0 %950
        %952 = vadd.xlane.f32.xlu0 %v474
        %v953 = vpop.xlane.xlu0 %952
        %954 = vadd.xlane.f32.xlu0 %v475
        %v955 = vpop.xlane.xlu0 %954
        %956 = vadd.xlane.f32.xlu0 %v476
        %v957 = vpop.xlane.xlu0 %956
        %958 = vadd.xlane.f32.xlu0 %v477
        %v959 = vpop.xlane.xlu0 %958
        %960 = vadd.xlane.f32.xlu0 %v478
        %v961 = vpop.xlane.xlu0 %960
        %962 = vadd.xlane.f32.xlu0 %v479
        %v963 = vpop.xlane.xlu0 %962
        %964 = vadd.xlane.f32.xlu0 %v480
        %v965 = vpop.xlane.xlu0 %964
        %966 = vadd.xlane.f32.xlu0 %v481
        %v967 = vpop.xlane.xlu0 %966
        %968 = vadd.xlane.f32.xlu0 %v482
        %v969 = vpop.xlane.xlu0 %968
        %970 = vadd.xlane.f32.xlu0 %v483
        %v971 = vpop.xlane.xlu0 %970
        %972 = vadd.xlane.f32.xlu0 %v484
        %v973 = vpop.xlane.xlu0 %972
        %974 = vadd.xlane.f32.xlu0 %v485
        %v975 = vpop.xlane.xlu0 %974
        %976 = vadd.xlane.f32.xlu0 %v486
        %v977 = vpop.xlane.xlu0 %976
        %978 = vadd.xlane.f32.xlu0 %v487
        %v979 = vpop.xlane.xlu0 %978
        %980 = vadd.xlane.f32.xlu0 %v488
        %v981 = vpop.xlane.xlu0 %980
        %982 = vadd.xlane.f32.xlu0 %v489
        %v983 = vpop.xlane.xlu0 %982
        %984 = vadd.xlane.f32.xlu0 %v490
        %v985 = vpop.xlane.xlu0 %984
        %986 = vadd.xlane.f32.xlu0 %v491
        %v987 = vpop.xlane.xlu0 %986
        %988 = vadd.xlane.f32.xlu0 %v492
        %v989 = vpop.xlane.xlu0 %988
        %990 = vadd.xlane.f32.xlu0 %v493
        %v991 = vpop.xlane.xlu0 %990
        %992 = vadd.xlane.f32.xlu0 %v494
        %v993 = vpop.xlane.xlu0 %992
        %994 = vadd.xlane.f32.xlu0 %v495
        %v995 = vpop.xlane.xlu0 %994
        %996 = vadd.xlane.f32.xlu0 %v496
        %v997 = vpop.xlane.xlu0 %996
        %998 = vadd.xlane.f32.xlu0 %v497
        %v999 = vpop.xlane.xlu0 %998
        %1000 = vadd.xlane.f32.xlu0 %v498
        %v1001 = vpop.xlane.xlu0 %1000
        %1002 = vadd.xlane.f32.xlu0 %v499
        %v1003 = vpop.xlane.xlu0 %1002
        %1004 = vadd.xlane.f32.xlu0 %v500
        %v1005 = vpop.xlane.xlu0 %1004
        %1006 = vadd.xlane.f32.xlu0 %v501
        %v1007 = vpop.xlane.xlu0 %1006
        %1008 = vadd.xlane.f32.xlu0 %v502
        %v1009 = vpop.xlane.xlu0 %1008
        %1010 = vadd.xlane.f32.xlu0 %v503
        %v1011 = vpop.xlane.xlu0 %1010
        %1012 = vadd.xlane.f32.xlu0 %v504
        %v1013 = vpop.xlane.xlu0 %1012
        %1014 = vadd.xlane.f32.xlu0 %v505
        %v1015 = vpop.xlane.xlu0 %1014
        %1016 = vadd.xlane.f32.xlu0 %v506
        %v1017 = vpop.xlane.xlu0 %1016
        %1018 = vadd.xlane.f32.xlu0 %v507
        %v1019 = vpop.xlane.xlu0 %1018
        %v1020 = vrcp.pop 128.0
        %v1021 = vmul.f32 %v509, %v1020
        %v1022 = vmul.f32 %v511, %v1020
        %v1023 = vmul.f32 %v513, %v1020
        %v1024 = vmul.f32 %v515, %v1020
        %v1025 = vmul.f32 %v517, %v1020
        %v1026 = vmul.f32 %v519, %v1020
        %v1027 = vmul.f32 %v521, %v1020
        %v1028 = vmul.f32 %v523, %v1020
        %v1029 = vmul.f32 %v525, %v1020
        %v1030 = vmul.f32 %v527, %v1020
        %v1031 = vmul.f32 %v529, %v1020
        %v1032 = vmul.f32 %v531, %v1020
        %v1033 = vmul.f32 %v533, %v1020
        %v1034 = vmul.f32 %v535, %v1020
        %v1035 = vmul.f32 %v537, %v1020
        %v1036 = vmul.f32 %v539, %v1020
        %v1037 = vmul.f32 %v541, %v1020
        %v1038 = vmul.f32 %v543, %v1020
        %v1039 = vmul.f32 %v545, %v1020
        %v1040 = vmul.f32 %v547, %v1020
        %v1041 = vmul.f32 %v549, %v1020
        %v1042 = vmul.f32 %v551, %v1020
        %v1043 = vmul.f32 %v553, %v1020
        %v1044 = vmul.f32 %v555, %v1020
        %v1045 = vmul.f32 %v557, %v1020
        %v1046 = vmul.f32 %v559, %v1020
        %v1047 = vmul.f32 %v561, %v1020
        %v1048 = vmul.f32 %v563, %v1020
        %v1049 = vmul.f32 %v565, %v1020
        %v1050 = vmul.f32 %v567, %v1020
        %v1051 = vmul.f32 %v569, %v1020
        %v1052 = vmul.f32 %v571, %v1020
        %v1053 = vmul.f32 %v573, %v1020
        %v1054 = vmul.f32 %v575, %v1020
        %v1055 = vmul.f32 %v577, %v1020
        %v1056 = vmul.f32 %v579, %v1020
        %v1057 = vmul.f32 %v581, %v1020
        %v1058 = vmul.f32 %v583, %v1020
        %v1059 = vmul.f32 %v585, %v1020
        %v1060 = vmul.f32 %v587, %v1020
        %v1061 = vmul.f32 %v589, %v1020
        %v1062 = vmul.f32 %v591, %v1020
        %v1063 = vmul.f32 %v593, %v1020
        %v1064 = vmul.f32 %v595, %v1020
        %v1065 = vmul.f32 %v597, %v1020
        %v1066 = vmul.f32 %v599, %v1020
        %v1067 = vmul.f32 %v601, %v1020
        %v1068 = vmul.f32 %v603, %v1020
        %v1069 = vmul.f32 %v605, %v1020
        %v1070 = vmul.f32 %v607, %v1020
        %v1071 = vmul.f32 %v609, %v1020
        %v1072 = vmul.f32 %v611, %v1020
        %v1073 = vmul.f32 %v613, %v1020
        %v1074 = vmul.f32 %v615, %v1020
        %v1075 = vmul.f32 %v617, %v1020
        %v1076 = vmul.f32 %v619, %v1020
        %v1077 = vmul.f32 %v621, %v1020
        %v1078 = vmul.f32 %v623, %v1020
        %v1079 = vmul.f32 %v625, %v1020
        %v1080 = vmul.f32 %v627, %v1020
        %v1081 = vmul.f32 %v629, %v1020
        %v1082 = vmul.f32 %v631, %v1020
        %v1083 = vmul.f32 %v633, %v1020
        %v1084 = vmul.f32 %v635, %v1020
        %v1085 = vmul.f32 %v637, %v1020
        %v1086 = vmul.f32 %v639, %v1020
        %v1087 = vmul.f32 %v641, %v1020
        %v1088 = vmul.f32 %v643, %v1020
        %v1089 = vmul.f32 %v645, %v1020
        %v1090 = vmul.f32 %v647, %v1020
        %v1091 = vmul.f32 %v649, %v1020
        %v1092 = vmul.f32 %v651, %v1020
        %v1093 = vmul.f32 %v653, %v1020
        %v1094 = vmul.f32 %v655, %v1020
        %v1095 = vmul.f32 %v657, %v1020
        %v1096 = vmul.f32 %v659, %v1020
        %v1097 = vmul.f32 %v661, %v1020
        %v1098 = vmul.f32 %v663, %v1020
        %v1099 = vmul.f32 %v665, %v1020
        %v1100 = vmul.f32 %v667, %v1020
        %v1101 = vmul.f32 %v669, %v1020
        %v1102 = vmul.f32 %v671, %v1020
        %v1103 = vmul.f32 %v673, %v1020
        %v1104 = vmul.f32 %v675, %v1020
        %v1105 = vmul.f32 %v677, %v1020
        %v1106 = vmul.f32 %v679, %v1020
        %v1107 = vmul.f32 %v681, %v1020
        %v1108 = vmul.f32 %v683, %v1020
        %v1109 = vmul.f32 %v685, %v1020
        %v1110 = vmul.f32 %v687, %v1020
        %v1111 = vmul.f32 %v689, %v1020
        %v1112 = vmul.f32 %v691, %v1020
        %v1113 = vmul.f32 %v693, %v1020
        %v1114 = vmul.f32 %v695, %v1020
        %v1115 = vmul.f32 %v697, %v1020
        %v1116 = vmul.f32 %v699, %v1020
        %v1117 = vmul.f32 %v701, %v1020
        %v1118 = vmul.f32 %v703, %v1020
        %v1119 = vmul.f32 %v705, %v1020
        %v1120 = vmul.f32 %v707, %v1020
        %v1121 = vmul.f32 %v709, %v1020
        %v1122 = vmul.f32 %v711, %v1020
        %v1123 = vmul.f32 %v713, %v1020
        %v1124 = vmul.f32 %v715, %v1020
        %v1125 = vmul.f32 %v717, %v1020
        %v1126 = vmul.f32 %v719, %v1020
        %v1127 = vmul.f32 %v721, %v1020
        %v1128 = vmul.f32 %v723, %v1020
        %v1129 = vmul.f32 %v725, %v1020
        %v1130 = vmul.f32 %v727, %v1020
        %v1131 = vmul.f32 %v729, %v1020
        %v1132 = vmul.f32 %v731, %v1020
        %v1133 = vmul.f32 %v733, %v1020
        %v1134 = vmul.f32 %v735, %v1020
        %v1135 = vmul.f32 %v737, %v1020
        %v1136 = vmul.f32 %v739, %v1020
        %v1137 = vmul.f32 %v741, %v1020
        %v1138 = vmul.f32 %v743, %v1020
        %v1139 = vmul.f32 %v745, %v1020
        %v1140 = vmul.f32 %v747, %v1020
        %v1141 = vmul.f32 %v749, %v1020
        %v1142 = vmul.f32 %v751, %v1020
        %v1143 = vmul.f32 %v753, %v1020
        %v1144 = vmul.f32 %v755, %v1020
        %v1145 = vmul.f32 %v757, %v1020
        %v1146 = vmul.f32 %v759, %v1020
        %v1147 = vmul.f32 %v761, %v1020
        %v1148 = vmul.f32 %v763, %v1020
        %v1149 = vmul.f32 %v765, %v1020
        %v1150 = vmul.f32 %v767, %v1020
        %v1151 = vmul.f32 %v769, %v1020
        %v1152 = vmul.f32 %v771, %v1020
        %v1153 = vmul.f32 %v773, %v1020
        %v1154 = vmul.f32 %v775, %v1020
        %v1155 = vmul.f32 %v777, %v1020
        %v1156 = vmul.f32 %v779, %v1020
        %v1157 = vmul.f32 %v781, %v1020
        %v1158 = vmul.f32 %v783, %v1020
        %v1159 = vmul.f32 %v785, %v1020
        %v1160 = vmul.f32 %v787, %v1020
        %v1161 = vmul.f32 %v789, %v1020
        %v1162 = vmul.f32 %v791, %v1020
        %v1163 = vmul.f32 %v793, %v1020
        %v1164 = vmul.f32 %v795, %v1020
        %v1165 = vmul.f32 %v797, %v1020
        %v1166 = vmul.f32 %v799, %v1020
        %v1167 = vmul.f32 %v801, %v1020
        %v1168 = vmul.f32 %v803, %v1020
        %v1169 = vmul.f32 %v805, %v1020
        %v1170 = vmul.f32 %v807, %v1020
        %v1171 = vmul.f32 %v809, %v1020
        %v1172 = vmul.f32 %v811, %v1020
        %v1173 = vmul.f32 %v813, %v1020
        %v1174 = vmul.f32 %v815, %v1020
        %v1175 = vmul.f32 %v817, %v1020
        %v1176 = vmul.f32 %v819, %v1020
        %v1177 = vmul.f32 %v821, %v1020
        %v1178 = vmul.f32 %v823, %v1020
        %v1179 = vmul.f32 %v825, %v1020
        %v1180 = vmul.f32 %v827, %v1020
        %v1181 = vmul.f32 %v829, %v1020
        %v1182 = vmul.f32 %v831, %v1020
        %v1183 = vmul.f32 %v833, %v1020
        %v1184 = vmul.f32 %v835, %v1020
        %v1185 = vmul.f32 %v837, %v1020
        %v1186 = vmul.f32 %v839, %v1020
        %v1187 = vmul.f32 %v841, %v1020
        %v1188 = vmul.f32 %v843, %v1020
        %v1189 = vmul.f32 %v845, %v1020
        %v1190 = vmul.f32 %v847, %v1020
        %v1191 = vmul.f32 %v849, %v1020
        %v1192 = vmul.f32 %v851, %v1020
        %v1193 = vmul.f32 %v853, %v1020
        %v1194 = vmul.f32 %v855, %v1020
        %v1195 = vmul.f32 %v857, %v1020
        %v1196 = vmul.f32 %v859, %v1020
        %v1197 = vmul.f32 %v861, %v1020
        %v1198 = vmul.f32 %v863, %v1020
        %v1199 = vmul.f32 %v865, %v1020
        %v1200 = vmul.f32 %v867, %v1020
        %v1201 = vmul.f32 %v869, %v1020
        %v1202 = vmul.f32 %v871, %v1020
        %v1203 = vmul.f32 %v873, %v1020
        %v1204 = vmul.f32 %v875, %v1020
        %v1205 = vmul.f32 %v877, %v1020
        %v1206 = vmul.f32 %v879, %v1020
        %v1207 = vmul.f32 %v881, %v1020
        %v1208 = vmul.f32 %v883, %v1020
        %v1209 = vmul.f32 %v885, %v1020
        %v1210 = vmul.f32 %v887, %v1020
        %v1211 = vmul.f32 %v889, %v1020
        %v1212 = vmul.f32 %v891, %v1020
        %v1213 = vmul.f32 %v893, %v1020
        %v1214 = vmul.f32 %v895, %v1020
        %v1215 = vmul.f32 %v897, %v1020
        %v1216 = vmul.f32 %v899, %v1020
        %v1217 = vmul.f32 %v901, %v1020
        %v1218 = vmul.f32 %v903, %v1020
        %v1219 = vmul.f32 %v905, %v1020
        %v1220 = vmul.f32 %v907, %v1020
        %v1221 = vmul.f32 %v909, %v1020
        %v1222 = vmul.f32 %v911, %v1020
        %v1223 = vmul.f32 %v913, %v1020
        %v1224 = vmul.f32 %v915, %v1020
        %v1225 = vmul.f32 %v917, %v1020
        %v1226 = vmul.f32 %v919, %v1020
        %v1227 = vmul.f32 %v921, %v1020
        %v1228 = vmul.f32 %v923, %v1020
        %v1229 = vmul.f32 %v925, %v1020
        %v1230 = vmul.f32 %v927, %v1020
        %v1231 = vmul.f32 %v929, %v1020
        %v1232 = vmul.f32 %v931, %v1020
        %v1233 = vmul.f32 %v933, %v1020
        %v1234 = vmul.f32 %v935, %v1020
        %v1235 = vmul.f32 %v937, %v1020
        %v1236 = vmul.f32 %v939, %v1020
        %v1237 = vmul.f32 %v941, %v1020
        %v1238 = vmul.f32 %v943, %v1020
        %v1239 = vmul.f32 %v945, %v1020
        %v1240 = vmul.f32 %v947, %v1020
        %v1241 = vmul.f32 %v949, %v1020
        %v1242 = vmul.f32 %v951, %v1020
        %v1243 = vmul.f32 %v953, %v1020
        %v1244 = vmul.f32 %v955, %v1020
        %v1245 = vmul.f32 %v957, %v1020
        %v1246 = vmul.f32 %v959, %v1020
        %v1247 = vmul.f32 %v961, %v1020
        %v1248 = vmul.f32 %v963, %v1020
        %v1249 = vmul.f32 %v965, %v1020
        %v1250 = vmul.f32 %v967, %v1020
        %v1251 = vmul.f32 %v969, %v1020
        %v1252 = vmul.f32 %v971, %v1020
        %v1253 = vmul.f32 %v973, %v1020
        %v1254 = vmul.f32 %v975, %v1020
        %v1255 = vmul.f32 %v977, %v1020
        %v1256 = vmul.f32 %v979, %v1020
        %v1257 = vmul.f32 %v981, %v1020
        %v1258 = vmul.f32 %v983, %v1020
        %v1259 = vmul.f32 %v985, %v1020
        %v1260 = vmul.f32 %v987, %v1020
        %v1261 = vmul.f32 %v989, %v1020
        %v1262 = vmul.f32 %v991, %v1020
        %v1263 = vmul.f32 %v993, %v1020
        %v1264 = vmul.f32 %v995, %v1020
        %v1265 = vmul.f32 %v997, %v1020
        %v1266 = vmul.f32 %v999, %v1020
        %v1267 = vmul.f32 %v1001, %v1020
        %v1268 = vmul.f32 %v1003, %v1020
        %v1269 = vmul.f32 %v1005, %v1020
        %v1270 = vmul.f32 %v1007, %v1020
        %v1271 = vmul.f32 %v1009, %v1020
        %v1272 = vmul.f32 %v1011, %v1020
        %v1273 = vmul.f32 %v1013, %v1020
        %v1274 = vmul.f32 %v1015, %v1020
        %v1275 = vmul.f32 %v1017, %v1020
        %v1276 = vmul.f32 %v1019, %v1020
        %v1277 = vld [vmem:[%s2] sm:$0xff]
        %v1278 = vld [vmem:[%s2 + $0x8] sm:$0xff]
        %v1279 = vld [vmem:[%s2 + $0x10] sm:$0xff]
        %v1280 = vld [vmem:[%s2 + $0x18] sm:$0xff]
        %v1281 = vld [vmem:[%s2 + $0x20] sm:$0xff]
        %v1282 = vld [vmem:[%s2 + $0x28] sm:$0xff]
        %v1283 = vld [vmem:[%s2 + $0x30] sm:$0xff]
        %v1284 = vld [vmem:[%s2 + $0x38] sm:$0xff]
        %v1285 = vld [vmem:[%s2 + $0x40] sm:$0xff]
        %v1286 = vld [vmem:[%s2 + $0x48] sm:$0xff]
        %v1287 = vld [vmem:[%s2 + $0x50] sm:$0xff]
        %v1288 = vld [vmem:[%s2 + $0x58] sm:$0xff]
        %v1289 = vld [vmem:[%s2 + $0x60] sm:$0xff]
        %v1290 = vld [vmem:[%s2 + $0x68] sm:$0xff]
        %v1291 = vld [vmem:[%s2 + $0x70] sm:$0xff]
        %v1292 = vld [vmem:[%s2 + $0x78] sm:$0xff]
        %v1293 = vld [vmem:[%s2 + $0x80] sm:$0xff]
        %v1294 = vld [vmem:[%s2 + $0x88] sm:$0xff]
        %v1295 = vld [vmem:[%s2 + $0x90] sm:$0xff]
        %v1296 = vld [vmem:[%s2 + $0x98] sm:$0xff]
        %v1297 = vld [vmem:[%s2 + $0xa0] sm:$0xff]
        %v1298 = vld [vmem:[%s2 + $0xa8] sm:$0xff]
        %v1299 = vld [vmem:[%s2 + $0xb0] sm:$0xff]
        %v1300 = vld [vmem:[%s2 + $0xb8] sm:$0xff]
        %v1301 = vld [vmem:[%s2 + $0xc0] sm:$0xff]
        %v1302 = vld [vmem:[%s2 + $0xc8] sm:$0xff]
        %v1303 = vld [vmem:[%s2 + $0xd0] sm:$0xff]
        %v1304 = vld [vmem:[%s2 + $0xd8] sm:$0xff]
        %v1305 = vld [vmem:[%s2 + $0xe0] sm:$0xff]
        %v1306 = vld [vmem:[%s2 + $0xe8] sm:$0xff]
        %v1307 = vld [vmem:[%s2 + $0xf0] sm:$0xff]
        %v1308 = vld [vmem:[%s2 + $0xf8] sm:$0xff]
        %v1309 = vld [vmem:[%s2 + $0x100] sm:$0xff]
        %v1310 = vld [vmem:[%s2 + $0x108] sm:$0xff]
        %v1311 = vld [vmem:[%s2 + $0x110] sm:$0xff]
        %v1312 = vld [vmem:[%s2 + $0x118] sm:$0xff]
        %v1313 = vld [vmem:[%s2 + $0x120] sm:$0xff]
        %v1314 = vld [vmem:[%s2 + $0x128] sm:$0xff]
        %v1315 = vld [vmem:[%s2 + $0x130] sm:$0xff]
        %v1316 = vld [vmem:[%s2 + $0x138] sm:$0xff]
        %v1317 = vld [vmem:[%s2 + $0x140] sm:$0xff]
        %v1318 = vld [vmem:[%s2 + $0x148] sm:$0xff]
        %v1319 = vld [vmem:[%s2 + $0x150] sm:$0xff]
        %v1320 = vld [vmem:[%s2 + $0x158] sm:$0xff]
        %v1321 = vld [vmem:[%s2 + $0x160] sm:$0xff]
        %v1322 = vld [vmem:[%s2 + $0x168] sm:$0xff]
        %v1323 = vld [vmem:[%s2 + $0x170] sm:$0xff]
        %v1324 = vld [vmem:[%s2 + $0x178] sm:$0xff]
        %v1325 = vld [vmem:[%s2 + $0x180] sm:$0xff]
        %v1326 = vld [vmem:[%s2 + $0x188] sm:$0xff]
        %v1327 = vld [vmem:[%s2 + $0x190] sm:$0xff]
        %v1328 = vld [vmem:[%s2 + $0x198] sm:$0xff]
        %v1329 = vld [vmem:[%s2 + $0x1a0] sm:$0xff]
        %v1330 = vld [vmem:[%s2 + $0x1a8] sm:$0xff]
        %v1331 = vld [vmem:[%s2 + $0x1b0] sm:$0xff]
        %v1332 = vld [vmem:[%s2 + $0x1b8] sm:$0xff]
        %v1333 = vld [vmem:[%s2 + $0x1c0] sm:$0xff]
        %v1334 = vld [vmem:[%s2 + $0x1c8] sm:$0xff]
        %v1335 = vld [vmem:[%s2 + $0x1d0] sm:$0xff]
        %v1336 = vld [vmem:[%s2 + $0x1d8] sm:$0xff]
        %v1337 = vld [vmem:[%s2 + $0x1e0] sm:$0xff]
        %v1338 = vld [vmem:[%s2 + $0x1e8] sm:$0xff]
        %v1339 = vld [vmem:[%s2 + $0x1f0] sm:$0xff]
        %v1340 = vld [vmem:[%s2 + $0x1f8] sm:$0xff]
        %v1341 = vld [vmem:[%s2 + $0x200] sm:$0xff]
        %v1342 = vld [vmem:[%s2 + $0x208] sm:$0xff]
        %v1343 = vld [vmem:[%s2 + $0x210] sm:$0xff]
        %v1344 = vld [vmem:[%s2 + $0x218] sm:$0xff]
        %v1345 = vld [vmem:[%s2 + $0x220] sm:$0xff]
        %v1346 = vld [vmem:[%s2 + $0x228] sm:$0xff]
        %v1347 = vld [vmem:[%s2 + $0x230] sm:$0xff]
        %v1348 = vld [vmem:[%s2 + $0x238] sm:$0xff]
        %v1349 = vld [vmem:[%s2 + $0x240] sm:$0xff]
        %v1350 = vld [vmem:[%s2 + $0x248] sm:$0xff]
        %v1351 = vld [vmem:[%s2 + $0x250] sm:$0xff]
        %v1352 = vld [vmem:[%s2 + $0x258] sm:$0xff]
        %v1353 = vld [vmem:[%s2 + $0x260] sm:$0xff]
        %v1354 = vld [vmem:[%s2 + $0x268] sm:$0xff]
        %v1355 = vld [vmem:[%s2 + $0x270] sm:$0xff]
        %v1356 = vld [vmem:[%s2 + $0x278] sm:$0xff]
        %v1357 = vld [vmem:[%s2 + $0x280] sm:$0xff]
        %v1358 = vld [vmem:[%s2 + $0x288] sm:$0xff]
        %v1359 = vld [vmem:[%s2 + $0x290] sm:$0xff]
        %v1360 = vld [vmem:[%s2 + $0x298] sm:$0xff]
        %v1361 = vld [vmem:[%s2 + $0x2a0] sm:$0xff]
        %v1362 = vld [vmem:[%s2 + $0x2a8] sm:$0xff]
        %v1363 = vld [vmem:[%s2 + $0x2b0] sm:$0xff]
        %v1364 = vld [vmem:[%s2 + $0x2b8] sm:$0xff]
        %v1365 = vld [vmem:[%s2 + $0x2c0] sm:$0xff]
        %v1366 = vld [vmem:[%s2 + $0x2c8] sm:$0xff]
        %v1367 = vld [vmem:[%s2 + $0x2d0] sm:$0xff]
        %v1368 = vld [vmem:[%s2 + $0x2d8] sm:$0xff]
        %v1369 = vld [vmem:[%s2 + $0x2e0] sm:$0xff]
        %v1370 = vld [vmem:[%s2 + $0x2e8] sm:$0xff]
        %v1371 = vld [vmem:[%s2 + $0x2f0] sm:$0xff]
        %v1372 = vld [vmem:[%s2 + $0x2f8] sm:$0xff]
        %v1373 = vld [vmem:[%s2 + $0x300] sm:$0xff]
        %v1374 = vld [vmem:[%s2 + $0x308] sm:$0xff]
        %v1375 = vld [vmem:[%s2 + $0x310] sm:$0xff]
        %v1376 = vld [vmem:[%s2 + $0x318] sm:$0xff]
        %v1377 = vld [vmem:[%s2 + $0x320] sm:$0xff]
        %v1378 = vld [vmem:[%s2 + $0x328] sm:$0xff]
        %v1379 = vld [vmem:[%s2 + $0x330] sm:$0xff]
        %v1380 = vld [vmem:[%s2 + $0x338] sm:$0xff]
        %v1381 = vld [vmem:[%s2 + $0x340] sm:$0xff]
        %v1382 = vld [vmem:[%s2 + $0x348] sm:$0xff]
        %v1383 = vld [vmem:[%s2 + $0x350] sm:$0xff]
        %v1384 = vld [vmem:[%s2 + $0x358] sm:$0xff]
        %v1385 = vld [vmem:[%s2 + $0x360] sm:$0xff]
        %v1386 = vld [vmem:[%s2 + $0x368] sm:$0xff]
        %v1387 = vld [vmem:[%s2 + $0x370] sm:$0xff]
        %v1388 = vld [vmem:[%s2 + $0x378] sm:$0xff]
        %v1389 = vld [vmem:[%s2 + $0x380] sm:$0xff]
        %v1390 = vld [vmem:[%s2 + $0x388] sm:$0xff]
        %v1391 = vld [vmem:[%s2 + $0x390] sm:$0xff]
        %v1392 = vld [vmem:[%s2 + $0x398] sm:$0xff]
        %v1393 = vld [vmem:[%s2 + $0x3a0] sm:$0xff]
        %v1394 = vld [vmem:[%s2 + $0x3a8] sm:$0xff]
        %v1395 = vld [vmem:[%s2 + $0x3b0] sm:$0xff]
        %v1396 = vld [vmem:[%s2 + $0x3b8] sm:$0xff]
        %v1397 = vld [vmem:[%s2 + $0x3c0] sm:$0xff]
        %v1398 = vld [vmem:[%s2 + $0x3c8] sm:$0xff]
        %v1399 = vld [vmem:[%s2 + $0x3d0] sm:$0xff]
        %v1400 = vld [vmem:[%s2 + $0x3d8] sm:$0xff]
        %v1401 = vld [vmem:[%s2 + $0x3e0] sm:$0xff]
        %v1402 = vld [vmem:[%s2 + $0x3e8] sm:$0xff]
        %v1403 = vld [vmem:[%s2 + $0x3f0] sm:$0xff]
        %v1404 = vld [vmem:[%s2 + $0x3f8] sm:$0xff]
        %v1405 = vld [vmem:[%s2 + $0x400] sm:$0xff]
        %v1406 = vld [vmem:[%s2 + $0x408] sm:$0xff]
        %v1407 = vld [vmem:[%s2 + $0x410] sm:$0xff]
        %v1408 = vld [vmem:[%s2 + $0x418] sm:$0xff]
        %v1409 = vld [vmem:[%s2 + $0x420] sm:$0xff]
        %v1410 = vld [vmem:[%s2 + $0x428] sm:$0xff]
        %v1411 = vld [vmem:[%s2 + $0x430] sm:$0xff]
        %v1412 = vld [vmem:[%s2 + $0x438] sm:$0xff]
        %v1413 = vld [vmem:[%s2 + $0x440] sm:$0xff]
        %v1414 = vld [vmem:[%s2 + $0x448] sm:$0xff]
        %v1415 = vld [vmem:[%s2 + $0x450] sm:$0xff]
        %v1416 = vld [vmem:[%s2 + $0x458] sm:$0xff]
        %v1417 = vld [vmem:[%s2 + $0x460] sm:$0xff]
        %v1418 = vld [vmem:[%s2 + $0x468] sm:$0xff]
        %v1419 = vld [vmem:[%s2 + $0x470] sm:$0xff]
        %v1420 = vld [vmem:[%s2 + $0x478] sm:$0xff]
        %v1421 = vld [vmem:[%s2 + $0x480] sm:$0xff]
        %v1422 = vld [vmem:[%s2 + $0x488] sm:$0xff]
        %v1423 = vld [vmem:[%s2 + $0x490] sm:$0xff]
        %v1424 = vld [vmem:[%s2 + $0x498] sm:$0xff]
        %v1425 = vld [vmem:[%s2 + $0x4a0] sm:$0xff]
        %v1426 = vld [vmem:[%s2 + $0x4a8] sm:$0xff]
        %v1427 = vld [vmem:[%s2 + $0x4b0] sm:$0xff]
        %v1428 = vld [vmem:[%s2 + $0x4b8] sm:$0xff]
        %v1429 = vld [vmem:[%s2 + $0x4c0] sm:$0xff]
        %v1430 = vld [vmem:[%s2 + $0x4c8] sm:$0xff]
        %v1431 = vld [vmem:[%s2 + $0x4d0] sm:$0xff]
        %v1432 = vld [vmem:[%s2 + $0x4d8] sm:$0xff]
        %v1433 = vld [vmem:[%s2 + $0x4e0] sm:$0xff]
        %v1434 = vld [vmem:[%s2 + $0x4e8] sm:$0xff]
        %v1435 = vld [vmem:[%s2 + $0x4f0] sm:$0xff]
        %v1436 = vld [vmem:[%s2 + $0x4f8] sm:$0xff]
        %v1437 = vld [vmem:[%s2 + $0x500] sm:$0xff]
        %v1438 = vld [vmem:[%s2 + $0x508] sm:$0xff]
        %v1439 = vld [vmem:[%s2 + $0x510] sm:$0xff]
        %v1440 = vld [vmem:[%s2 + $0x518] sm:$0xff]
        %v1441 = vld [vmem:[%s2 + $0x520] sm:$0xff]
        %v1442 = vld [vmem:[%s2 + $0x528] sm:$0xff]
        %v1443 = vld [vmem:[%s2 + $0x530] sm:$0xff]
        %v1444 = vld [vmem:[%s2 + $0x538] sm:$0xff]
        %v1445 = vld [vmem:[%s2 + $0x540] sm:$0xff]
        %v1446 = vld [vmem:[%s2 + $0x548] sm:$0xff]
        %v1447 = vld [vmem:[%s2 + $0x550] sm:$0xff]
        %v1448 = vld [vmem:[%s2 + $0x558] sm:$0xff]
        %v1449 = vld [vmem:[%s2 + $0x560] sm:$0xff]
        %v1450 = vld [vmem:[%s2 + $0x568] sm:$0xff]
        %v1451 = vld [vmem:[%s2 + $0x570] sm:$0xff]
        %v1452 = vld [vmem:[%s2 + $0x578] sm:$0xff]
        %v1453 = vld [vmem:[%s2 + $0x580] sm:$0xff]
        %v1454 = vld [vmem:[%s2 + $0x588] sm:$0xff]
        %v1455 = vld [vmem:[%s2 + $0x590] sm:$0xff]
        %v1456 = vld [vmem:[%s2 + $0x598] sm:$0xff]
        %v1457 = vld [vmem:[%s2 + $0x5a0] sm:$0xff]
        %v1458 = vld [vmem:[%s2 + $0x5a8] sm:$0xff]
        %v1459 = vld [vmem:[%s2 + $0x5b0] sm:$0xff]
        %v1460 = vld [vmem:[%s2 + $0x5b8] sm:$0xff]
        %v1461 = vld [vmem:[%s2 + $0x5c0] sm:$0xff]
        %v1462 = vld [vmem:[%s2 + $0x5c8] sm:$0xff]
        %v1463 = vld [vmem:[%s2 + $0x5d0] sm:$0xff]
        %v1464 = vld [vmem:[%s2 + $0x5d8] sm:$0xff]
        %v1465 = vld [vmem:[%s2 + $0x5e0] sm:$0xff]
        %v1466 = vld [vmem:[%s2 + $0x5e8] sm:$0xff]
        %v1467 = vld [vmem:[%s2 + $0x5f0] sm:$0xff]
        %v1468 = vld [vmem:[%s2 + $0x5f8] sm:$0xff]
        %v1469 = vld [vmem:[%s2 + $0x600] sm:$0xff]
        %v1470 = vld [vmem:[%s2 + $0x608] sm:$0xff]
        %v1471 = vld [vmem:[%s2 + $0x610] sm:$0xff]
        %v1472 = vld [vmem:[%s2 + $0x618] sm:$0xff]
        %v1473 = vld [vmem:[%s2 + $0x620] sm:$0xff]
        %v1474 = vld [vmem:[%s2 + $0x628] sm:$0xff]
        %v1475 = vld [vmem:[%s2 + $0x630] sm:$0xff]
        %v1476 = vld [vmem:[%s2 + $0x638] sm:$0xff]
        %v1477 = vld [vmem:[%s2 + $0x640] sm:$0xff]
        %v1478 = vld [vmem:[%s2 + $0x648] sm:$0xff]
        %v1479 = vld [vmem:[%s2 + $0x650] sm:$0xff]
        %v1480 = vld [vmem:[%s2 + $0x658] sm:$0xff]
        %v1481 = vld [vmem:[%s2 + $0x660] sm:$0xff]
        %v1482 = vld [vmem:[%s2 + $0x668] sm:$0xff]
        %v1483 = vld [vmem:[%s2 + $0x670] sm:$0xff]
        %v1484 = vld [vmem:[%s2 + $0x678] sm:$0xff]
        %v1485 = vld [vmem:[%s2 + $0x680] sm:$0xff]
        %v1486 = vld [vmem:[%s2 + $0x688] sm:$0xff]
        %v1487 = vld [vmem:[%s2 + $0x690] sm:$0xff]
        %v1488 = vld [vmem:[%s2 + $0x698] sm:$0xff]
        %v1489 = vld [vmem:[%s2 + $0x6a0] sm:$0xff]
        %v1490 = vld [vmem:[%s2 + $0x6a8] sm:$0xff]
        %v1491 = vld [vmem:[%s2 + $0x6b0] sm:$0xff]
        %v1492 = vld [vmem:[%s2 + $0x6b8] sm:$0xff]
        %v1493 = vld [vmem:[%s2 + $0x6c0] sm:$0xff]
        %v1494 = vld [vmem:[%s2 + $0x6c8] sm:$0xff]
        %v1495 = vld [vmem:[%s2 + $0x6d0] sm:$0xff]
        %v1496 = vld [vmem:[%s2 + $0x6d8] sm:$0xff]
        %v1497 = vld [vmem:[%s2 + $0x6e0] sm:$0xff]
        %v1498 = vld [vmem:[%s2 + $0x6e8] sm:$0xff]
        %v1499 = vld [vmem:[%s2 + $0x6f0] sm:$0xff]
        %v1500 = vld [vmem:[%s2 + $0x6f8] sm:$0xff]
        %v1501 = vld [vmem:[%s2 + $0x700] sm:$0xff]
        %v1502 = vld [vmem:[%s2 + $0x708] sm:$0xff]
        %v1503 = vld [vmem:[%s2 + $0x710] sm:$0xff]
        %v1504 = vld [vmem:[%s2 + $0x718] sm:$0xff]
        %v1505 = vld [vmem:[%s2 + $0x720] sm:$0xff]
        %v1506 = vld [vmem:[%s2 + $0x728] sm:$0xff]
        %v1507 = vld [vmem:[%s2 + $0x730] sm:$0xff]
        %v1508 = vld [vmem:[%s2 + $0x738] sm:$0xff]
        %v1509 = vld [vmem:[%s2 + $0x740] sm:$0xff]
        %v1510 = vld [vmem:[%s2 + $0x748] sm:$0xff]
        %v1511 = vld [vmem:[%s2 + $0x750] sm:$0xff]
        %v1512 = vld [vmem:[%s2 + $0x758] sm:$0xff]
        %v1513 = vld [vmem:[%s2 + $0x760] sm:$0xff]
        %v1514 = vld [vmem:[%s2 + $0x768] sm:$0xff]
        %v1515 = vld [vmem:[%s2 + $0x770] sm:$0xff]
        %v1516 = vld [vmem:[%s2 + $0x778] sm:$0xff]
        %v1517 = vld [vmem:[%s2 + $0x780] sm:$0xff]
        %v1518 = vld [vmem:[%s2 + $0x788] sm:$0xff]
        %v1519 = vld [vmem:[%s2 + $0x790] sm:$0xff]
        %v1520 = vld [vmem:[%s2 + $0x798] sm:$0xff]
        %v1521 = vld [vmem:[%s2 + $0x7a0] sm:$0xff]
        %v1522 = vld [vmem:[%s2 + $0x7a8] sm:$0xff]
        %v1523 = vld [vmem:[%s2 + $0x7b0] sm:$0xff]
        %v1524 = vld [vmem:[%s2 + $0x7b8] sm:$0xff]
        %v1525 = vld [vmem:[%s2 + $0x7c0] sm:$0xff]
        %v1526 = vld [vmem:[%s2 + $0x7c8] sm:$0xff]
        %v1527 = vld [vmem:[%s2 + $0x7d0] sm:$0xff]
        %v1528 = vld [vmem:[%s2 + $0x7d8] sm:$0xff]
        %v1529 = vld [vmem:[%s2 + $0x7e0] sm:$0xff]
        %v1530 = vld [vmem:[%s2 + $0x7e8] sm:$0xff]
        %v1531 = vld [vmem:[%s2 + $0x7f0] sm:$0xff]
        %v1532 = vld [vmem:[%s2 + $0x7f8] sm:$0xff]
        %v1533 = vmul.f32 %v1021, %v1277
        %v1534 = vmul.f32 %v1022, %v1278
        %v1535 = vmul.f32 %v1023, %v1279
        %v1536 = vmul.f32 %v1024, %v1280
        %v1537 = vmul.f32 %v1025, %v1281
        %v1538 = vmul.f32 %v1026, %v1282
        %v1539 = vmul.f32 %v1027, %v1283
        %v1540 = vmul.f32 %v1028, %v1284
        %v1541 = vmul.f32 %v1029, %v1285
        %v1542 = vmul.f32 %v1030, %v1286
        %v1543 = vmul.f32 %v1031, %v1287
        %v1544 = vmul.f32 %v1032, %v1288
        %v1545 = vmul.f32 %v1033, %v1289
        %v1546 = vmul.f32 %v1034, %v1290
        %v1547 = vmul.f32 %v1035, %v1291
        %v1548 = vmul.f32 %v1036, %v1292
        %v1549 = vmul.f32 %v1037, %v1293
        %v1550 = vmul.f32 %v1038, %v1294
        %v1551 = vmul.f32 %v1039, %v1295
        %v1552 = vmul.f32 %v1040, %v1296
        %v1553 = vmul.f32 %v1041, %v1297
        %v1554 = vmul.f32 %v1042, %v1298
        %v1555 = vmul.f32 %v1043, %v1299
        %v1556 = vmul.f32 %v1044, %v1300
        %v1557 = vmul.f32 %v1045, %v1301
        %v1558 = vmul.f32 %v1046, %v1302
        %v1559 = vmul.f32 %v1047, %v1303
        %v1560 = vmul.f32 %v1048, %v1304
        %v1561 = vmul.f32 %v1049, %v1305
        %v1562 = vmul.f32 %v1050, %v1306
        %v1563 = vmul.f32 %v1051, %v1307
        %v1564 = vmul.f32 %v1052, %v1308
        %v1565 = vmul.f32 %v1053, %v1309
        %v1566 = vmul.f32 %v1054, %v1310
        %v1567 = vmul.f32 %v1055, %v1311
        %v1568 = vmul.f32 %v1056, %v1312
        %v1569 = vmul.f32 %v1057, %v1313
        %v1570 = vmul.f32 %v1058, %v1314
        %v1571 = vmul.f32 %v1059, %v1315
        %v1572 = vmul.f32 %v1060, %v1316
        %v1573 = vmul.f32 %v1061, %v1317
        %v1574 = vmul.f32 %v1062, %v1318
        %v1575 = vmul.f32 %v1063, %v1319
        %v1576 = vmul.f32 %v1064, %v1320
        %v1577 = vmul.f32 %v1065, %v1321
        %v1578 = vmul.f32 %v1066, %v1322
        %v1579 = vmul.f32 %v1067, %v1323
        %v1580 = vmul.f32 %v1068, %v1324
        %v1581 = vmul.f32 %v1069, %v1325
        %v1582 = vmul.f32 %v1070, %v1326
        %v1583 = vmul.f32 %v1071, %v1327
        %v1584 = vmul.f32 %v1072, %v1328
        %v1585 = vmul.f32 %v1073, %v1329
        %v1586 = vmul.f32 %v1074, %v1330
        %v1587 = vmul.f32 %v1075, %v1331
        %v1588 = vmul.f32 %v1076, %v1332
        %v1589 = vmul.f32 %v1077, %v1333
        %v1590 = vmul.f32 %v1078, %v1334
        %v1591 = vmul.f32 %v1079, %v1335
        %v1592 = vmul.f32 %v1080, %v1336
        %v1593 = vmul.f32 %v1081, %v1337
        %v1594 = vmul.f32 %v1082, %v1338
        %v1595 = vmul.f32 %v1083, %v1339
        %v1596 = vmul.f32 %v1084, %v1340
        %v1597 = vmul.f32 %v1085, %v1341
        %v1598 = vmul.f32 %v1086, %v1342
        %v1599 = vmul.f32 %v1087, %v1343
        %v1600 = vmul.f32 %v1088, %v1344
        %v1601 = vmul.f32 %v1089, %v1345
        %v1602 = vmul.f32 %v1090, %v1346
        %v1603 = vmul.f32 %v1091, %v1347
        %v1604 = vmul.f32 %v1092, %v1348
        %v1605 = vmul.f32 %v1093, %v1349
        %v1606 = vmul.f32 %v1094, %v1350
        %v1607 = vmul.f32 %v1095, %v1351
        %v1608 = vmul.f32 %v1096, %v1352
        %v1609 = vmul.f32 %v1097, %v1353
        %v1610 = vmul.f32 %v1098, %v1354
        %v1611 = vmul.f32 %v1099, %v1355
        %v1612 = vmul.f32 %v1100, %v1356
        %v1613 = vmul.f32 %v1101, %v1357
        %v1614 = vmul.f32 %v1102, %v1358
        %v1615 = vmul.f32 %v1103, %v1359
        %v1616 = vmul.f32 %v1104, %v1360
        %v1617 = vmul.f32 %v1105, %v1361
        %v1618 = vmul.f32 %v1106, %v1362
        %v1619 = vmul.f32 %v1107, %v1363
        %v1620 = vmul.f32 %v1108, %v1364
        %v1621 = vmul.f32 %v1109, %v1365
        %v1622 = vmul.f32 %v1110, %v1366
        %v1623 = vmul.f32 %v1111, %v1367
        %v1624 = vmul.f32 %v1112, %v1368
        %v1625 = vmul.f32 %v1113, %v1369
        %v1626 = vmul.f32 %v1114, %v1370
        %v1627 = vmul.f32 %v1115, %v1371
        %v1628 = vmul.f32 %v1116, %v1372
        %v1629 = vmul.f32 %v1117, %v1373
        %v1630 = vmul.f32 %v1118, %v1374
        %v1631 = vmul.f32 %v1119, %v1375
        %v1632 = vmul.f32 %v1120, %v1376
        %v1633 = vmul.f32 %v1121, %v1377
        %v1634 = vmul.f32 %v1122, %v1378
        %v1635 = vmul.f32 %v1123, %v1379
        %v1636 = vmul.f32 %v1124, %v1380
        %v1637 = vmul.f32 %v1125, %v1381
        %v1638 = vmul.f32 %v1126, %v1382
        %v1639 = vmul.f32 %v1127, %v1383
        %v1640 = vmul.f32 %v1128, %v1384
        %v1641 = vmul.f32 %v1129, %v1385
        %v1642 = vmul.f32 %v1130, %v1386
        %v1643 = vmul.f32 %v1131, %v1387
        %v1644 = vmul.f32 %v1132, %v1388
        %v1645 = vmul.f32 %v1133, %v1389
        %v1646 = vmul.f32 %v1134, %v1390
        %v1647 = vmul.f32 %v1135, %v1391
        %v1648 = vmul.f32 %v1136, %v1392
        %v1649 = vmul.f32 %v1137, %v1393
        %v1650 = vmul.f32 %v1138, %v1394
        %v1651 = vmul.f32 %v1139, %v1395
        %v1652 = vmul.f32 %v1140, %v1396
        %v1653 = vmul.f32 %v1141, %v1397
        %v1654 = vmul.f32 %v1142, %v1398
        %v1655 = vmul.f32 %v1143, %v1399
        %v1656 = vmul.f32 %v1144, %v1400
        %v1657 = vmul.f32 %v1145, %v1401
        %v1658 = vmul.f32 %v1146, %v1402
        %v1659 = vmul.f32 %v1147, %v1403
        %v1660 = vmul.f32 %v1148, %v1404
        %v1661 = vmul.f32 %v1149, %v1405
        %v1662 = vmul.f32 %v1150, %v1406
        %v1663 = vmul.f32 %v1151, %v1407
        %v1664 = vmul.f32 %v1152, %v1408
        %v1665 = vmul.f32 %v1153, %v1409
        %v1666 = vmul.f32 %v1154, %v1410
        %v1667 = vmul.f32 %v1155, %v1411
        %v1668 = vmul.f32 %v1156, %v1412
        %v1669 = vmul.f32 %v1157, %v1413
        %v1670 = vmul.f32 %v1158, %v1414
        %v1671 = vmul.f32 %v1159, %v1415
        %v1672 = vmul.f32 %v1160, %v1416
        %v1673 = vmul.f32 %v1161, %v1417
        %v1674 = vmul.f32 %v1162, %v1418
        %v1675 = vmul.f32 %v1163, %v1419
        %v1676 = vmul.f32 %v1164, %v1420
        %v1677 = vmul.f32 %v1165, %v1421
        %v1678 = vmul.f32 %v1166, %v1422
        %v1679 = vmul.f32 %v1167, %v1423
        %v1680 = vmul.f32 %v1168, %v1424
        %v1681 = vmul.f32 %v1169, %v1425
        %v1682 = vmul.f32 %v1170, %v1426
        %v1683 = vmul.f32 %v1171, %v1427
        %v1684 = vmul.f32 %v1172, %v1428
        %v1685 = vmul.f32 %v1173, %v1429
        %v1686 = vmul.f32 %v1174, %v1430
        %v1687 = vmul.f32 %v1175, %v1431
        %v1688 = vmul.f32 %v1176, %v1432
        %v1689 = vmul.f32 %v1177, %v1433
        %v1690 = vmul.f32 %v1178, %v1434
        %v1691 = vmul.f32 %v1179, %v1435
        %v1692 = vmul.f32 %v1180, %v1436
        %v1693 = vmul.f32 %v1181, %v1437
        %v1694 = vmul.f32 %v1182, %v1438
        %v1695 = vmul.f32 %v1183, %v1439
        %v1696 = vmul.f32 %v1184, %v1440
        %v1697 = vmul.f32 %v1185, %v1441
        %v1698 = vmul.f32 %v1186, %v1442
        %v1699 = vmul.f32 %v1187, %v1443
        %v1700 = vmul.f32 %v1188, %v1444
        %v1701 = vmul.f32 %v1189, %v1445
        %v1702 = vmul.f32 %v1190, %v1446
        %v1703 = vmul.f32 %v1191, %v1447
        %v1704 = vmul.f32 %v1192, %v1448
        %v1705 = vmul.f32 %v1193, %v1449
        %v1706 = vmul.f32 %v1194, %v1450
        %v1707 = vmul.f32 %v1195, %v1451
        %v1708 = vmul.f32 %v1196, %v1452
        %v1709 = vmul.f32 %v1197, %v1453
        %v1710 = vmul.f32 %v1198, %v1454
        %v1711 = vmul.f32 %v1199, %v1455
        %v1712 = vmul.f32 %v1200, %v1456
        %v1713 = vmul.f32 %v1201, %v1457
        %v1714 = vmul.f32 %v1202, %v1458
        %v1715 = vmul.f32 %v1203, %v1459
        %v1716 = vmul.f32 %v1204, %v1460
        %v1717 = vmul.f32 %v1205, %v1461
        %v1718 = vmul.f32 %v1206, %v1462
        %v1719 = vmul.f32 %v1207, %v1463
        %v1720 = vmul.f32 %v1208, %v1464
        %v1721 = vmul.f32 %v1209, %v1465
        %v1722 = vmul.f32 %v1210, %v1466
        %v1723 = vmul.f32 %v1211, %v1467
        %v1724 = vmul.f32 %v1212, %v1468
        %v1725 = vmul.f32 %v1213, %v1469
        %v1726 = vmul.f32 %v1214, %v1470
        %v1727 = vmul.f32 %v1215, %v1471
        %v1728 = vmul.f32 %v1216, %v1472
        %v1729 = vmul.f32 %v1217, %v1473
        %v1730 = vmul.f32 %v1218, %v1474
        %v1731 = vmul.f32 %v1219, %v1475
        %v1732 = vmul.f32 %v1220, %v1476
        %v1733 = vmul.f32 %v1221, %v1477
        %v1734 = vmul.f32 %v1222, %v1478
        %v1735 = vmul.f32 %v1223, %v1479
        %v1736 = vmul.f32 %v1224, %v1480
        %v1737 = vmul.f32 %v1225, %v1481
        %v1738 = vmul.f32 %v1226, %v1482
        %v1739 = vmul.f32 %v1227, %v1483
        %v1740 = vmul.f32 %v1228, %v1484
        %v1741 = vmul.f32 %v1229, %v1485
        %v1742 = vmul.f32 %v1230, %v1486
        %v1743 = vmul.f32 %v1231, %v1487
        %v1744 = vmul.f32 %v1232, %v1488
        %v1745 = vmul.f32 %v1233, %v1489
        %v1746 = vmul.f32 %v1234, %v1490
        %v1747 = vmul.f32 %v1235, %v1491
        %v1748 = vmul.f32 %v1236, %v1492
        %v1749 = vmul.f32 %v1237, %v1493
        %v1750 = vmul.f32 %v1238, %v1494
        %v1751 = vmul.f32 %v1239, %v1495
        %v1752 = vmul.f32 %v1240, %v1496
        %v1753 = vmul.f32 %v1241, %v1497
        %v1754 = vmul.f32 %v1242, %v1498
        %v1755 = vmul.f32 %v1243, %v1499
        %v1756 = vmul.f32 %v1244, %v1500
        %v1757 = vmul.f32 %v1245, %v1501
        %v1758 = vmul.f32 %v1246, %v1502
        %v1759 = vmul.f32 %v1247, %v1503
        %v1760 = vmul.f32 %v1248, %v1504
        %v1761 = vmul.f32 %v1249, %v1505
        %v1762 = vmul.f32 %v1250, %v1506
        %v1763 = vmul.f32 %v1251, %v1507
        %v1764 = vmul.f32 %v1252, %v1508
        %v1765 = vmul.f32 %v1253, %v1509
        %v1766 = vmul.f32 %v1254, %v1510
        %v1767 = vmul.f32 %v1255, %v1511
        %v1768 = vmul.f32 %v1256, %v1512
        %v1769 = vmul.f32 %v1257, %v1513
        %v1770 = vmul.f32 %v1258, %v1514
        %v1771 = vmul.f32 %v1259, %v1515
        %v1772 = vmul.f32 %v1260, %v1516
        %v1773 = vmul.f32 %v1261, %v1517
        %v1774 = vmul.f32 %v1262, %v1518
        %v1775 = vmul.f32 %v1263, %v1519
        %v1776 = vmul.f32 %v1264, %v1520
        %v1777 = vmul.f32 %v1265, %v1521
        %v1778 = vmul.f32 %v1266, %v1522
        %v1779 = vmul.f32 %v1267, %v1523
        %v1780 = vmul.f32 %v1268, %v1524
        %v1781 = vmul.f32 %v1269, %v1525
        %v1782 = vmul.f32 %v1270, %v1526
        %v1783 = vmul.f32 %v1271, %v1527
        %v1784 = vmul.f32 %v1272, %v1528
        %v1785 = vmul.f32 %v1273, %v1529
        %v1786 = vmul.f32 %v1274, %v1530
        %v1787 = vmul.f32 %v1275, %v1531
        %v1788 = vmul.f32 %v1276, %v1532
        %v1789 = vld [vmem:[%s3] sm:$0xff]
        %v1790 = vld [vmem:[%s3 + $0x8] sm:$0xff]
        %v1791 = vld [vmem:[%s3 + $0x10] sm:$0xff]
        %v1792 = vld [vmem:[%s3 + $0x18] sm:$0xff]
        %v1793 = vld [vmem:[%s3 + $0x20] sm:$0xff]
        %v1794 = vld [vmem:[%s3 + $0x28] sm:$0xff]
        %v1795 = vld [vmem:[%s3 + $0x30] sm:$0xff]
        %v1796 = vld [vmem:[%s3 + $0x38] sm:$0xff]
        %v1797 = vld [vmem:[%s3 + $0x40] sm:$0xff]
        %v1798 = vld [vmem:[%s3 + $0x48] sm:$0xff]
        %v1799 = vld [vmem:[%s3 + $0x50] sm:$0xff]
        %v1800 = vld [vmem:[%s3 + $0x58] sm:$0xff]
        %v1801 = vld [vmem:[%s3 + $0x60] sm:$0xff]
        %v1802 = vld [vmem:[%s3 + $0x68] sm:$0xff]
        %v1803 = vld [vmem:[%s3 + $0x70] sm:$0xff]
        %v1804 = vld [vmem:[%s3 + $0x78] sm:$0xff]
        %v1805 = vld [vmem:[%s3 + $0x80] sm:$0xff]
        %v1806 = vld [vmem:[%s3 + $0x88] sm:$0xff]
        %v1807 = vld [vmem:[%s3 + $0x90] sm:$0xff]
        %v1808 = vld [vmem:[%s3 + $0x98] sm:$0xff]
        %v1809 = vld [vmem:[%s3 + $0xa0] sm:$0xff]
        %v1810 = vld [vmem:[%s3 + $0xa8] sm:$0xff]
        %v1811 = vld [vmem:[%s3 + $0xb0] sm:$0xff]
        %v1812 = vld [vmem:[%s3 + $0xb8] sm:$0xff]
        %v1813 = vld [vmem:[%s3 + $0xc0] sm:$0xff]
        %v1814 = vld [vmem:[%s3 + $0xc8] sm:$0xff]
        %v1815 = vld [vmem:[%s3 + $0xd0] sm:$0xff]
        %v1816 = vld [vmem:[%s3 + $0xd8] sm:$0xff]
        %v1817 = vld [vmem:[%s3 + $0xe0] sm:$0xff]
        %v1818 = vld [vmem:[%s3 + $0xe8] sm:$0xff]
        %v1819 = vld [vmem:[%s3 + $0xf0] sm:$0xff]
        %v1820 = vld [vmem:[%s3 + $0xf8] sm:$0xff]
        %v1821 = vld [vmem:[%s3 + $0x100] sm:$0xff]
        %v1822 = vld [vmem:[%s3 + $0x108] sm:$0xff]
        %v1823 = vld [vmem:[%s3 + $0x110] sm:$0xff]
        %v1824 = vld [vmem:[%s3 + $0x118] sm:$0xff]
        %v1825 = vld [vmem:[%s3 + $0x120] sm:$0xff]
        %v1826 = vld [vmem:[%s3 + $0x128] sm:$0xff]
        %v1827 = vld [vmem:[%s3 + $0x130] sm:$0xff]
        %v1828 = vld [vmem:[%s3 + $0x138] sm:$0xff]
        %v1829 = vld [vmem:[%s3 + $0x140] sm:$0xff]
        %v1830 = vld [vmem:[%s3 + $0x148] sm:$0xff]
        %v1831 = vld [vmem:[%s3 + $0x150] sm:$0xff]
        %v1832 = vld [vmem:[%s3 + $0x158] sm:$0xff]
        %v1833 = vld [vmem:[%s3 + $0x160] sm:$0xff]
        %v1834 = vld [vmem:[%s3 + $0x168] sm:$0xff]
        %v1835 = vld [vmem:[%s3 + $0x170] sm:$0xff]
        %v1836 = vld [vmem:[%s3 + $0x178] sm:$0xff]
        %v1837 = vld [vmem:[%s3 + $0x180] sm:$0xff]
        %v1838 = vld [vmem:[%s3 + $0x188] sm:$0xff]
        %v1839 = vld [vmem:[%s3 + $0x190] sm:$0xff]
        %v1840 = vld [vmem:[%s3 + $0x198] sm:$0xff]
        %v1841 = vld [vmem:[%s3 + $0x1a0] sm:$0xff]
        %v1842 = vld [vmem:[%s3 + $0x1a8] sm:$0xff]
        %v1843 = vld [vmem:[%s3 + $0x1b0] sm:$0xff]
        %v1844 = vld [vmem:[%s3 + $0x1b8] sm:$0xff]
        %v1845 = vld [vmem:[%s3 + $0x1c0] sm:$0xff]
        %v1846 = vld [vmem:[%s3 + $0x1c8] sm:$0xff]
        %v1847 = vld [vmem:[%s3 + $0x1d0] sm:$0xff]
        %v1848 = vld [vmem:[%s3 + $0x1d8] sm:$0xff]
        %v1849 = vld [vmem:[%s3 + $0x1e0] sm:$0xff]
        %v1850 = vld [vmem:[%s3 + $0x1e8] sm:$0xff]
        %v1851 = vld [vmem:[%s3 + $0x1f0] sm:$0xff]
        %v1852 = vld [vmem:[%s3 + $0x1f8] sm:$0xff]
        %v1853 = vld [vmem:[%s3 + $0x200] sm:$0xff]
        %v1854 = vld [vmem:[%s3 + $0x208] sm:$0xff]
        %v1855 = vld [vmem:[%s3 + $0x210] sm:$0xff]
        %v1856 = vld [vmem:[%s3 + $0x218] sm:$0xff]
        %v1857 = vld [vmem:[%s3 + $0x220] sm:$0xff]
        %v1858 = vld [vmem:[%s3 + $0x228] sm:$0xff]
        %v1859 = vld [vmem:[%s3 + $0x230] sm:$0xff]
        %v1860 = vld [vmem:[%s3 + $0x238] sm:$0xff]
        %v1861 = vld [vmem:[%s3 + $0x240] sm:$0xff]
        %v1862 = vld [vmem:[%s3 + $0x248] sm:$0xff]
        %v1863 = vld [vmem:[%s3 + $0x250] sm:$0xff]
        %v1864 = vld [vmem:[%s3 + $0x258] sm:$0xff]
        %v1865 = vld [vmem:[%s3 + $0x260] sm:$0xff]
        %v1866 = vld [vmem:[%s3 + $0x268] sm:$0xff]
        %v1867 = vld [vmem:[%s3 + $0x270] sm:$0xff]
        %v1868 = vld [vmem:[%s3 + $0x278] sm:$0xff]
        %v1869 = vld [vmem:[%s3 + $0x280] sm:$0xff]
        %v1870 = vld [vmem:[%s3 + $0x288] sm:$0xff]
        %v1871 = vld [vmem:[%s3 + $0x290] sm:$0xff]
        %v1872 = vld [vmem:[%s3 + $0x298] sm:$0xff]
        %v1873 = vld [vmem:[%s3 + $0x2a0] sm:$0xff]
        %v1874 = vld [vmem:[%s3 + $0x2a8] sm:$0xff]
        %v1875 = vld [vmem:[%s3 + $0x2b0] sm:$0xff]
        %v1876 = vld [vmem:[%s3 + $0x2b8] sm:$0xff]
        %v1877 = vld [vmem:[%s3 + $0x2c0] sm:$0xff]
        %v1878 = vld [vmem:[%s3 + $0x2c8] sm:$0xff]
        %v1879 = vld [vmem:[%s3 + $0x2d0] sm:$0xff]
        %v1880 = vld [vmem:[%s3 + $0x2d8] sm:$0xff]
        %v1881 = vld [vmem:[%s3 + $0x2e0] sm:$0xff]
        %v1882 = vld [vmem:[%s3 + $0x2e8] sm:$0xff]
        %v1883 = vld [vmem:[%s3 + $0x2f0] sm:$0xff]
        %v1884 = vld [vmem:[%s3 + $0x2f8] sm:$0xff]
        %v1885 = vld [vmem:[%s3 + $0x300] sm:$0xff]
        %v1886 = vld [vmem:[%s3 + $0x308] sm:$0xff]
        %v1887 = vld [vmem:[%s3 + $0x310] sm:$0xff]
        %v1888 = vld [vmem:[%s3 + $0x318] sm:$0xff]
        %v1889 = vld [vmem:[%s3 + $0x320] sm:$0xff]
        %v1890 = vld [vmem:[%s3 + $0x328] sm:$0xff]
        %v1891 = vld [vmem:[%s3 + $0x330] sm:$0xff]
        %v1892 = vld [vmem:[%s3 + $0x338] sm:$0xff]
        %v1893 = vld [vmem:[%s3 + $0x340] sm:$0xff]
        %v1894 = vld [vmem:[%s3 + $0x348] sm:$0xff]
        %v1895 = vld [vmem:[%s3 + $0x350] sm:$0xff]
        %v1896 = vld [vmem:[%s3 + $0x358] sm:$0xff]
        %v1897 = vld [vmem:[%s3 + $0x360] sm:$0xff]
        %v1898 = vld [vmem:[%s3 + $0x368] sm:$0xff]
        %v1899 = vld [vmem:[%s3 + $0x370] sm:$0xff]
        %v1900 = vld [vmem:[%s3 + $0x378] sm:$0xff]
        %v1901 = vld [vmem:[%s3 + $0x380] sm:$0xff]
        %v1902 = vld [vmem:[%s3 + $0x388] sm:$0xff]
        %v1903 = vld [vmem:[%s3 + $0x390] sm:$0xff]
        %v1904 = vld [vmem:[%s3 + $0x398] sm:$0xff]
        %v1905 = vld [vmem:[%s3 + $0x3a0] sm:$0xff]
        %v1906 = vld [vmem:[%s3 + $0x3a8] sm:$0xff]
        %v1907 = vld [vmem:[%s3 + $0x3b0] sm:$0xff]
        %v1908 = vld [vmem:[%s3 + $0x3b8] sm:$0xff]
        %v1909 = vld [vmem:[%s3 + $0x3c0] sm:$0xff]
        %v1910 = vld [vmem:[%s3 + $0x3c8] sm:$0xff]
        %v1911 = vld [vmem:[%s3 + $0x3d0] sm:$0xff]
        %v1912 = vld [vmem:[%s3 + $0x3d8] sm:$0xff]
        %v1913 = vld [vmem:[%s3 + $0x3e0] sm:$0xff]
        %v1914 = vld [vmem:[%s3 + $0x3e8] sm:$0xff]
        %v1915 = vld [vmem:[%s3 + $0x3f0] sm:$0xff]
        %v1916 = vld [vmem:[%s3 + $0x3f8] sm:$0xff]
        %v1917 = vld [vmem:[%s3 + $0x400] sm:$0xff]
        %v1918 = vld [vmem:[%s3 + $0x408] sm:$0xff]
        %v1919 = vld [vmem:[%s3 + $0x410] sm:$0xff]
        %v1920 = vld [vmem:[%s3 + $0x418] sm:$0xff]
        %v1921 = vld [vmem:[%s3 + $0x420] sm:$0xff]
        %v1922 = vld [vmem:[%s3 + $0x428] sm:$0xff]
        %v1923 = vld [vmem:[%s3 + $0x430] sm:$0xff]
        %v1924 = vld [vmem:[%s3 + $0x438] sm:$0xff]
        %v1925 = vld [vmem:[%s3 + $0x440] sm:$0xff]
        %v1926 = vld [vmem:[%s3 + $0x448] sm:$0xff]
        %v1927 = vld [vmem:[%s3 + $0x450] sm:$0xff]
        %v1928 = vld [vmem:[%s3 + $0x458] sm:$0xff]
        %v1929 = vld [vmem:[%s3 + $0x460] sm:$0xff]
        %v1930 = vld [vmem:[%s3 + $0x468] sm:$0xff]
        %v1931 = vld [vmem:[%s3 + $0x470] sm:$0xff]
        %v1932 = vld [vmem:[%s3 + $0x478] sm:$0xff]
        %v1933 = vld [vmem:[%s3 + $0x480] sm:$0xff]
        %v1934 = vld [vmem:[%s3 + $0x488] sm:$0xff]
        %v1935 = vld [vmem:[%s3 + $0x490] sm:$0xff]
        %v1936 = vld [vmem:[%s3 + $0x498] sm:$0xff]
        %v1937 = vld [vmem:[%s3 + $0x4a0] sm:$0xff]
        %v1938 = vld [vmem:[%s3 + $0x4a8] sm:$0xff]
        %v1939 = vld [vmem:[%s3 + $0x4b0] sm:$0xff]
        %v1940 = vld [vmem:[%s3 + $0x4b8] sm:$0xff]
        %v1941 = vld [vmem:[%s3 + $0x4c0] sm:$0xff]
        %v1942 = vld [vmem:[%s3 + $0x4c8] sm:$0xff]
        %v1943 = vld [vmem:[%s3 + $0x4d0] sm:$0xff]
        %v1944 = vld [vmem:[%s3 + $0x4d8] sm:$0xff]
        %v1945 = vld [vmem:[%s3 + $0x4e0] sm:$0xff]
        %v1946 = vld [vmem:[%s3 + $0x4e8] sm:$0xff]
        %v1947 = vld [vmem:[%s3 + $0x4f0] sm:$0xff]
        %v1948 = vld [vmem:[%s3 + $0x4f8] sm:$0xff]
        %v1949 = vld [vmem:[%s3 + $0x500] sm:$0xff]
        %v1950 = vld [vmem:[%s3 + $0x508] sm:$0xff]
        %v1951 = vld [vmem:[%s3 + $0x510] sm:$0xff]
        %v1952 = vld [vmem:[%s3 + $0x518] sm:$0xff]
        %v1953 = vld [vmem:[%s3 + $0x520] sm:$0xff]
        %v1954 = vld [vmem:[%s3 + $0x528] sm:$0xff]
        %v1955 = vld [vmem:[%s3 + $0x530] sm:$0xff]
        %v1956 = vld [vmem:[%s3 + $0x538] sm:$0xff]
        %v1957 = vld [vmem:[%s3 + $0x540] sm:$0xff]
        %v1958 = vld [vmem:[%s3 + $0x548] sm:$0xff]
        %v1959 = vld [vmem:[%s3 + $0x550] sm:$0xff]
        %v1960 = vld [vmem:[%s3 + $0x558] sm:$0xff]
        %v1961 = vld [vmem:[%s3 + $0x560] sm:$0xff]
        %v1962 = vld [vmem:[%s3 + $0x568] sm:$0xff]
        %v1963 = vld [vmem:[%s3 + $0x570] sm:$0xff]
        %v1964 = vld [vmem:[%s3 + $0x578] sm:$0xff]
        %v1965 = vld [vmem:[%s3 + $0x580] sm:$0xff]
        %v1966 = vld [vmem:[%s3 + $0x588] sm:$0xff]
        %v1967 = vld [vmem:[%s3 + $0x590] sm:$0xff]
        %v1968 = vld [vmem:[%s3 + $0x598] sm:$0xff]
        %v1969 = vld [vmem:[%s3 + $0x5a0] sm:$0xff]
        %v1970 = vld [vmem:[%s3 + $0x5a8] sm:$0xff]
        %v1971 = vld [vmem:[%s3 + $0x5b0] sm:$0xff]
        %v1972 = vld [vmem:[%s3 + $0x5b8] sm:$0xff]
        %v1973 = vld [vmem:[%s3 + $0x5c0] sm:$0xff]
        %v1974 = vld [vmem:[%s3 + $0x5c8] sm:$0xff]
        %v1975 = vld [vmem:[%s3 + $0x5d0] sm:$0xff]
        %v1976 = vld [vmem:[%s3 + $0x5d8] sm:$0xff]
        %v1977 = vld [vmem:[%s3 + $0x5e0] sm:$0xff]
        %v1978 = vld [vmem:[%s3 + $0x5e8] sm:$0xff]
        %v1979 = vld [vmem:[%s3 + $0x5f0] sm:$0xff]
        %v1980 = vld [vmem:[%s3 + $0x5f8] sm:$0xff]
        %v1981 = vld [vmem:[%s3 + $0x600] sm:$0xff]
        %v1982 = vld [vmem:[%s3 + $0x608] sm:$0xff]
        %v1983 = vld [vmem:[%s3 + $0x610] sm:$0xff]
        %v1984 = vld [vmem:[%s3 + $0x618] sm:$0xff]
        %v1985 = vld [vmem:[%s3 + $0x620] sm:$0xff]
        %v1986 = vld [vmem:[%s3 + $0x628] sm:$0xff]
        %v1987 = vld [vmem:[%s3 + $0x630] sm:$0xff]
        %v1988 = vld [vmem:[%s3 + $0x638] sm:$0xff]
        %v1989 = vld [vmem:[%s3 + $0x640] sm:$0xff]
        %v1990 = vld [vmem:[%s3 + $0x648] sm:$0xff]
        %v1991 = vld [vmem:[%s3 + $0x650] sm:$0xff]
        %v1992 = vld [vmem:[%s3 + $0x658] sm:$0xff]
        %v1993 = vld [vmem:[%s3 + $0x660] sm:$0xff]
        %v1994 = vld [vmem:[%s3 + $0x668] sm:$0xff]
        %v1995 = vld [vmem:[%s3 + $0x670] sm:$0xff]
        %v1996 = vld [vmem:[%s3 + $0x678] sm:$0xff]
        %v1997 = vld [vmem:[%s3 + $0x680] sm:$0xff]
        %v1998 = vld [vmem:[%s3 + $0x688] sm:$0xff]
        %v1999 = vld [vmem:[%s3 + $0x690] sm:$0xff]
        %v2000 = vld [vmem:[%s3 + $0x698] sm:$0xff]
        %v2001 = vld [vmem:[%s3 + $0x6a0] sm:$0xff]
        %v2002 = vld [vmem:[%s3 + $0x6a8] sm:$0xff]
        %v2003 = vld [vmem:[%s3 + $0x6b0] sm:$0xff]
        %v2004 = vld [vmem:[%s3 + $0x6b8] sm:$0xff]
        %v2005 = vld [vmem:[%s3 + $0x6c0] sm:$0xff]
        %v2006 = vld [vmem:[%s3 + $0x6c8] sm:$0xff]
        %v2007 = vld [vmem:[%s3 + $0x6d0] sm:$0xff]
        %v2008 = vld [vmem:[%s3 + $0x6d8] sm:$0xff]
        %v2009 = vld [vmem:[%s3 + $0x6e0] sm:$0xff]
        %v2010 = vld [vmem:[%s3 + $0x6e8] sm:$0xff]
        %v2011 = vld [vmem:[%s3 + $0x6f0] sm:$0xff]
        %v2012 = vld [vmem:[%s3 + $0x6f8] sm:$0xff]
        %v2013 = vld [vmem:[%s3 + $0x700] sm:$0xff]
        %v2014 = vld [vmem:[%s3 + $0x708] sm:$0xff]
        %v2015 = vld [vmem:[%s3 + $0x710] sm:$0xff]
        %v2016 = vld [vmem:[%s3 + $0x718] sm:$0xff]
        %v2017 = vld [vmem:[%s3 + $0x720] sm:$0xff]
        %v2018 = vld [vmem:[%s3 + $0x728] sm:$0xff]
        %v2019 = vld [vmem:[%s3 + $0x730] sm:$0xff]
        %v2020 = vld [vmem:[%s3 + $0x738] sm:$0xff]
        %v2021 = vld [vmem:[%s3 + $0x740] sm:$0xff]
        %v2022 = vld [vmem:[%s3 + $0x748] sm:$0xff]
        %v2023 = vld [vmem:[%s3 + $0x750] sm:$0xff]
        %v2024 = vld [vmem:[%s3 + $0x758] sm:$0xff]
        %v2025 = vld [vmem:[%s3 + $0x760] sm:$0xff]
        %v2026 = vld [vmem:[%s3 + $0x768] sm:$0xff]
        %v2027 = vld [vmem:[%s3 + $0x770] sm:$0xff]
        %v2028 = vld [vmem:[%s3 + $0x778] sm:$0xff]
        %v2029 = vld [vmem:[%s3 + $0x780] sm:$0xff]
        %v2030 = vld [vmem:[%s3 + $0x788] sm:$0xff]
        %v2031 = vld [vmem:[%s3 + $0x790] sm:$0xff]
        %v2032 = vld [vmem:[%s3 + $0x798] sm:$0xff]
        %v2033 = vld [vmem:[%s3 + $0x7a0] sm:$0xff]
        %v2034 = vld [vmem:[%s3 + $0x7a8] sm:$0xff]
        %v2035 = vld [vmem:[%s3 + $0x7b0] sm:$0xff]
        %v2036 = vld [vmem:[%s3 + $0x7b8] sm:$0xff]
        %v2037 = vld [vmem:[%s3 + $0x7c0] sm:$0xff]
        %v2038 = vld [vmem:[%s3 + $0x7c8] sm:$0xff]
        %v2039 = vld [vmem:[%s3 + $0x7d0] sm:$0xff]
        %v2040 = vld [vmem:[%s3 + $0x7d8] sm:$0xff]
        %v2041 = vld [vmem:[%s3 + $0x7e0] sm:$0xff]
        %v2042 = vld [vmem:[%s3 + $0x7e8] sm:$0xff]
        %v2043 = vld [vmem:[%s3 + $0x7f0] sm:$0xff]
        %v2044 = vld [vmem:[%s3 + $0x7f8] sm:$0xff]
        %v2045 = vadd.f32 %v1533, %v1789
        %v2046 = vadd.f32 %v1534, %v1790
        %v2047 = vadd.f32 %v1535, %v1791
        %v2048 = vadd.f32 %v1536, %v1792
        %v2049 = vadd.f32 %v1537, %v1793
        %v2050 = vadd.f32 %v1538, %v1794
        %v2051 = vadd.f32 %v1539, %v1795
        %v2052 = vadd.f32 %v1540, %v1796
        %v2053 = vadd.f32 %v1541, %v1797
        %v2054 = vadd.f32 %v1542, %v1798
        %v2055 = vadd.f32 %v1543, %v1799
        %v2056 = vadd.f32 %v1544, %v1800
        %v2057 = vadd.f32 %v1545, %v1801
        %v2058 = vadd.f32 %v1546, %v1802
        %v2059 = vadd.f32 %v1547, %v1803
        %v2060 = vadd.f32 %v1548, %v1804
        %v2061 = vadd.f32 %v1549, %v1805
        %v2062 = vadd.f32 %v1550, %v1806
        %v2063 = vadd.f32 %v1551, %v1807
        %v2064 = vadd.f32 %v1552, %v1808
        %v2065 = vadd.f32 %v1553, %v1809
        %v2066 = vadd.f32 %v1554, %v1810
        %v2067 = vadd.f32 %v1555, %v1811
        %v2068 = vadd.f32 %v1556, %v1812
        %v2069 = vadd.f32 %v1557, %v1813
        %v2070 = vadd.f32 %v1558, %v1814
        %v2071 = vadd.f32 %v1559, %v1815
        %v2072 = vadd.f32 %v1560, %v1816
        %v2073 = vadd.f32 %v1561, %v1817
        %v2074 = vadd.f32 %v1562, %v1818
        %v2075 = vadd.f32 %v1563, %v1819
        %v2076 = vadd.f32 %v1564, %v1820
        %v2077 = vadd.f32 %v1565, %v1821
        %v2078 = vadd.f32 %v1566, %v1822
        %v2079 = vadd.f32 %v1567, %v1823
        %v2080 = vadd.f32 %v1568, %v1824
        %v2081 = vadd.f32 %v1569, %v1825
        %v2082 = vadd.f32 %v1570, %v1826
        %v2083 = vadd.f32 %v1571, %v1827
        %v2084 = vadd.f32 %v1572, %v1828
        %v2085 = vadd.f32 %v1573, %v1829
        %v2086 = vadd.f32 %v1574, %v1830
        %v2087 = vadd.f32 %v1575, %v1831
        %v2088 = vadd.f32 %v1576, %v1832
        %v2089 = vadd.f32 %v1577, %v1833
        %v2090 = vadd.f32 %v1578, %v1834
        %v2091 = vadd.f32 %v1579, %v1835
        %v2092 = vadd.f32 %v1580, %v1836
        %v2093 = vadd.f32 %v1581, %v1837
        %v2094 = vadd.f32 %v1582, %v1838
        %v2095 = vadd.f32 %v1583, %v1839
        %v2096 = vadd.f32 %v1584, %v1840
        %v2097 = vadd.f32 %v1585, %v1841
        %v2098 = vadd.f32 %v1586, %v1842
        %v2099 = vadd.f32 %v1587, %v1843
        %v2100 = vadd.f32 %v1588, %v1844
        %v2101 = vadd.f32 %v1589, %v1845
        %v2102 = vadd.f32 %v1590, %v1846
        %v2103 = vadd.f32 %v1591, %v1847
        %v2104 = vadd.f32 %v1592, %v1848
        %v2105 = vadd.f32 %v1593, %v1849
        %v2106 = vadd.f32 %v1594, %v1850
        %v2107 = vadd.f32 %v1595, %v1851
        %v2108 = vadd.f32 %v1596, %v1852
        %v2109 = vadd.f32 %v1597, %v1853
        %v2110 = vadd.f32 %v1598, %v1854
        %v2111 = vadd.f32 %v1599, %v1855
        %v2112 = vadd.f32 %v1600, %v1856
        %v2113 = vadd.f32 %v1601, %v1857
        %v2114 = vadd.f32 %v1602, %v1858
        %v2115 = vadd.f32 %v1603, %v1859
        %v2116 = vadd.f32 %v1604, %v1860
        %v2117 = vadd.f32 %v1605, %v1861
        %v2118 = vadd.f32 %v1606, %v1862
        %v2119 = vadd.f32 %v1607, %v1863
        %v2120 = vadd.f32 %v1608, %v1864
        %v2121 = vadd.f32 %v1609, %v1865
        %v2122 = vadd.f32 %v1610, %v1866
        %v2123 = vadd.f32 %v1611, %v1867
        %v2124 = vadd.f32 %v1612, %v1868
        %v2125 = vadd.f32 %v1613, %v1869
        %v2126 = vadd.f32 %v1614, %v1870
        %v2127 = vadd.f32 %v1615, %v1871
        %v2128 = vadd.f32 %v1616, %v1872
        %v2129 = vadd.f32 %v1617, %v1873
        %v2130 = vadd.f32 %v1618, %v1874
        %v2131 = vadd.f32 %v1619, %v1875
        %v2132 = vadd.f32 %v1620, %v1876
        %v2133 = vadd.f32 %v1621, %v1877
        %v2134 = vadd.f32 %v1622, %v1878
        %v2135 = vadd.f32 %v1623, %v1879
        %v2136 = vadd.f32 %v1624, %v1880
        %v2137 = vadd.f32 %v1625, %v1881
        %v2138 = vadd.f32 %v1626, %v1882
        %v2139 = vadd.f32 %v1627, %v1883
        %v2140 = vadd.f32 %v1628, %v1884
        %v2141 = vadd.f32 %v1629, %v1885
        %v2142 = vadd.f32 %v1630, %v1886
        %v2143 = vadd.f32 %v1631, %v1887
        %v2144 = vadd.f32 %v1632, %v1888
        %v2145 = vadd.f32 %v1633, %v1889
        %v2146 = vadd.f32 %v1634, %v1890
        %v2147 = vadd.f32 %v1635, %v1891
        %v2148 = vadd.f32 %v1636, %v1892
        %v2149 = vadd.f32 %v1637, %v1893
        %v2150 = vadd.f32 %v1638, %v1894
        %v2151 = vadd.f32 %v1639, %v1895
        %v2152 = vadd.f32 %v1640, %v1896
        %v2153 = vadd.f32 %v1641, %v1897
        %v2154 = vadd.f32 %v1642, %v1898
        %v2155 = vadd.f32 %v1643, %v1899
        %v2156 = vadd.f32 %v1644, %v1900
        %v2157 = vadd.f32 %v1645, %v1901
        %v2158 = vadd.f32 %v1646, %v1902
        %v2159 = vadd.f32 %v1647, %v1903
        %v2160 = vadd.f32 %v1648, %v1904
        %v2161 = vadd.f32 %v1649, %v1905
        %v2162 = vadd.f32 %v1650, %v1906
        %v2163 = vadd.f32 %v1651, %v1907
        %v2164 = vadd.f32 %v1652, %v1908
        %v2165 = vadd.f32 %v1653, %v1909
        %v2166 = vadd.f32 %v1654, %v1910
        %v2167 = vadd.f32 %v1655, %v1911
        %v2168 = vadd.f32 %v1656, %v1912
        %v2169 = vadd.f32 %v1657, %v1913
        %v2170 = vadd.f32 %v1658, %v1914
        %v2171 = vadd.f32 %v1659, %v1915
        %v2172 = vadd.f32 %v1660, %v1916
        %v2173 = vadd.f32 %v1661, %v1917
        %v2174 = vadd.f32 %v1662, %v1918
        %v2175 = vadd.f32 %v1663, %v1919
        %v2176 = vadd.f32 %v1664, %v1920
        %v2177 = vadd.f32 %v1665, %v1921
        %v2178 = vadd.f32 %v1666, %v1922
        %v2179 = vadd.f32 %v1667, %v1923
        %v2180 = vadd.f32 %v1668, %v1924
        %v2181 = vadd.f32 %v1669, %v1925
        %v2182 = vadd.f32 %v1670, %v1926
        %v2183 = vadd.f32 %v1671, %v1927
        %v2184 = vadd.f32 %v1672, %v1928
        %v2185 = vadd.f32 %v1673, %v1929
        %v2186 = vadd.f32 %v1674, %v1930
        %v2187 = vadd.f32 %v1675, %v1931
        %v2188 = vadd.f32 %v1676, %v1932
        %v2189 = vadd.f32 %v1677, %v1933
        %v2190 = vadd.f32 %v1678, %v1934
        %v2191 = vadd.f32 %v1679, %v1935
        %v2192 = vadd.f32 %v1680, %v1936
        %v2193 = vadd.f32 %v1681, %v1937
        %v2194 = vadd.f32 %v1682, %v1938
        %v2195 = vadd.f32 %v1683, %v1939
        %v2196 = vadd.f32 %v1684, %v1940
        %v2197 = vadd.f32 %v1685, %v1941
        %v2198 = vadd.f32 %v1686, %v1942
        %v2199 = vadd.f32 %v1687, %v1943
        %v2200 = vadd.f32 %v1688, %v1944
        %v2201 = vadd.f32 %v1689, %v1945
        %v2202 = vadd.f32 %v1690, %v1946
        %v2203 = vadd.f32 %v1691, %v1947
        %v2204 = vadd.f32 %v1692, %v1948
        %v2205 = vadd.f32 %v1693, %v1949
        %v2206 = vadd.f32 %v1694, %v1950
        %v2207 = vadd.f32 %v1695, %v1951
        %v2208 = vadd.f32 %v1696, %v1952
        %v2209 = vadd.f32 %v1697, %v1953
        %v2210 = vadd.f32 %v1698, %v1954
        %v2211 = vadd.f32 %v1699, %v1955
        %v2212 = vadd.f32 %v1700, %v1956
        %v2213 = vadd.f32 %v1701, %v1957
        %v2214 = vadd.f32 %v1702, %v1958
        %v2215 = vadd.f32 %v1703, %v1959
        %v2216 = vadd.f32 %v1704, %v1960
        %v2217 = vadd.f32 %v1705, %v1961
        %v2218 = vadd.f32 %v1706, %v1962
        %v2219 = vadd.f32 %v1707, %v1963
        %v2220 = vadd.f32 %v1708, %v1964
        %v2221 = vadd.f32 %v1709, %v1965
        %v2222 = vadd.f32 %v1710, %v1966
        %v2223 = vadd.f32 %v1711, %v1967
        %v2224 = vadd.f32 %v1712, %v1968
        %v2225 = vadd.f32 %v1713, %v1969
        %v2226 = vadd.f32 %v1714, %v1970
        %v2227 = vadd.f32 %v1715, %v1971
        %v2228 = vadd.f32 %v1716, %v1972
        %v2229 = vadd.f32 %v1717, %v1973
        %v2230 = vadd.f32 %v1718, %v1974
        %v2231 = vadd.f32 %v1719, %v1975
        %v2232 = vadd.f32 %v1720, %v1976
        %v2233 = vadd.f32 %v1721, %v1977
        %v2234 = vadd.f32 %v1722, %v1978
        %v2235 = vadd.f32 %v1723, %v1979
        %v2236 = vadd.f32 %v1724, %v1980
        %v2237 = vadd.f32 %v1725, %v1981
        %v2238 = vadd.f32 %v1726, %v1982
        %v2239 = vadd.f32 %v1727, %v1983
        %v2240 = vadd.f32 %v1728, %v1984
        %v2241 = vadd.f32 %v1729, %v1985
        %v2242 = vadd.f32 %v1730, %v1986
        %v2243 = vadd.f32 %v1731, %v1987
        %v2244 = vadd.f32 %v1732, %v1988
        %v2245 = vadd.f32 %v1733, %v1989
        %v2246 = vadd.f32 %v1734, %v1990
        %v2247 = vadd.f32 %v1735, %v1991
        %v2248 = vadd.f32 %v1736, %v1992
        %v2249 = vadd.f32 %v1737, %v1993
        %v2250 = vadd.f32 %v1738, %v1994
        %v2251 = vadd.f32 %v1739, %v1995
        %v2252 = vadd.f32 %v1740, %v1996
        %v2253 = vadd.f32 %v1741, %v1997
        %v2254 = vadd.f32 %v1742, %v1998
        %v2255 = vadd.f32 %v1743, %v1999
        %v2256 = vadd.f32 %v1744, %v2000
        %v2257 = vadd.f32 %v1745, %v2001
        %v2258 = vadd.f32 %v1746, %v2002
        %v2259 = vadd.f32 %v1747, %v2003
        %v2260 = vadd.f32 %v1748, %v2004
        %v2261 = vadd.f32 %v1749, %v2005
        %v2262 = vadd.f32 %v1750, %v2006
        %v2263 = vadd.f32 %v1751, %v2007
        %v2264 = vadd.f32 %v1752, %v2008
        %v2265 = vadd.f32 %v1753, %v2009
        %v2266 = vadd.f32 %v1754, %v2010
        %v2267 = vadd.f32 %v1755, %v2011
        %v2268 = vadd.f32 %v1756, %v2012
        %v2269 = vadd.f32 %v1757, %v2013
        %v2270 = vadd.f32 %v1758, %v2014
        %v2271 = vadd.f32 %v1759, %v2015
        %v2272 = vadd.f32 %v1760, %v2016
        %v2273 = vadd.f32 %v1761, %v2017
        %v2274 = vadd.f32 %v1762, %v2018
        %v2275 = vadd.f32 %v1763, %v2019
        %v2276 = vadd.f32 %v1764, %v2020
        %v2277 = vadd.f32 %v1765, %v2021
        %v2278 = vadd.f32 %v1766, %v2022
        %v2279 = vadd.f32 %v1767, %v2023
        %v2280 = vadd.f32 %v1768, %v2024
        %v2281 = vadd.f32 %v1769, %v2025
        %v2282 = vadd.f32 %v1770, %v2026
        %v2283 = vadd.f32 %v1771, %v2027
        %v2284 = vadd.f32 %v1772, %v2028
        %v2285 = vadd.f32 %v1773, %v2029
        %v2286 = vadd.f32 %v1774, %v2030
        %v2287 = vadd.f32 %v1775, %v2031
        %v2288 = vadd.f32 %v1776, %v2032
        %v2289 = vadd.f32 %v1777, %v2033
        %v2290 = vadd.f32 %v1778, %v2034
        %v2291 = vadd.f32 %v1779, %v2035
        %v2292 = vadd.f32 %v1780, %v2036
        %v2293 = vadd.f32 %v1781, %v2037
        %v2294 = vadd.f32 %v1782, %v2038
        %v2295 = vadd.f32 %v1783, %v2039
        %v2296 = vadd.f32 %v1784, %v2040
        %v2297 = vadd.f32 %v1785, %v2041
        %v2298 = vadd.f32 %v1786, %v2042
        %v2299 = vadd.f32 %v1787, %v2043
        %v2300 = vadd.f32 %v1788, %v2044
        %vm2301 = vcmask 7168
        %2302 = vst.msk [vmem:[%s250] sm:$0xff] %vm2301, %v2045
        %2303 = vst.msk [vmem:[%s250 + $0x8] sm:$0xff] %vm2301, %v2046
        %2304 = vst.msk [vmem:[%s250 + $0x10] sm:$0xff] %vm2301, %v2047
        %2305 = vst.msk [vmem:[%s250 + $0x18] sm:$0xff] %vm2301, %v2048
        %2306 = vst.msk [vmem:[%s250 + $0x20] sm:$0xff] %vm2301, %v2049
        %2307 = vst.msk [vmem:[%s250 + $0x28] sm:$0xff] %vm2301, %v2050
        %2308 = vst.msk [vmem:[%s250 + $0x30] sm:$0xff] %vm2301, %v2051
        %2309 = vst.msk [vmem:[%s250 + $0x38] sm:$0xff] %vm2301, %v2052
        %2310 = vst.msk [vmem:[%s250 + $0x40] sm:$0xff] %vm2301, %v2053
        %2311 = vst.msk [vmem:[%s250 + $0x48] sm:$0xff] %vm2301, %v2054
        %2312 = vst.msk [vmem:[%s250 + $0x50] sm:$0xff] %vm2301, %v2055
        %2313 = vst.msk [vmem:[%s250 + $0x58] sm:$0xff] %vm2301, %v2056
        %2314 = vst.msk [vmem:[%s250 + $0x60] sm:$0xff] %vm2301, %v2057
        %2315 = vst.msk [vmem:[%s250 + $0x68] sm:$0xff] %vm2301, %v2058
        %2316 = vst.msk [vmem:[%s250 + $0x70] sm:$0xff] %vm2301, %v2059
        %2317 = vst.msk [vmem:[%s250 + $0x78] sm:$0xff] %vm2301, %v2060
        %2318 = vst.msk [vmem:[%s250 + $0x80] sm:$0xff] %vm2301, %v2061
        %2319 = vst.msk [vmem:[%s250 + $0x88] sm:$0xff] %vm2301, %v2062
        %2320 = vst.msk [vmem:[%s250 + $0x90] sm:$0xff] %vm2301, %v2063
        %2321 = vst.msk [vmem:[%s250 + $0x98] sm:$0xff] %vm2301, %v2064
        %2322 = vst.msk [vmem:[%s250 + $0xa0] sm:$0xff] %vm2301, %v2065
        %2323 = vst.msk [vmem:[%s250 + $0xa8] sm:$0xff] %vm2301, %v2066
        %2324 = vst.msk [vmem:[%s250 + $0xb0] sm:$0xff] %vm2301, %v2067
        %2325 = vst.msk [vmem:[%s250 + $0xb8] sm:$0xff] %vm2301, %v2068
        %2326 = vst.msk [vmem:[%s250 + $0xc0] sm:$0xff] %vm2301, %v2069
        %2327 = vst.msk [vmem:[%s250 + $0xc8] sm:$0xff] %vm2301, %v2070
        %2328 = vst.msk [vmem:[%s250 + $0xd0] sm:$0xff] %vm2301, %v2071
        %2329 = vst.msk [vmem:[%s250 + $0xd8] sm:$0xff] %vm2301, %v2072
        %2330 = vst.msk [vmem:[%s250 + $0xe0] sm:$0xff] %vm2301, %v2073
        %2331 = vst.msk [vmem:[%s250 + $0xe8] sm:$0xff] %vm2301, %v2074
        %2332 = vst.msk [vmem:[%s250 + $0xf0] sm:$0xff] %vm2301, %v2075
        %2333 = vst.msk [vmem:[%s250 + $0xf8] sm:$0xff] %vm2301, %v2076
        %2334 = vst.msk [vmem:[%s250 + $0x100] sm:$0xff] %vm2301, %v2077
        %2335 = vst.msk [vmem:[%s250 + $0x108] sm:$0xff] %vm2301, %v2078
        %2336 = vst.msk [vmem:[%s250 + $0x110] sm:$0xff] %vm2301, %v2079
        %2337 = vst.msk [vmem:[%s250 + $0x118] sm:$0xff] %vm2301, %v2080
        %2338 = vst.msk [vmem:[%s250 + $0x120] sm:$0xff] %vm2301, %v2081
        %2339 = vst.msk [vmem:[%s250 + $0x128] sm:$0xff] %vm2301, %v2082
        %2340 = vst.msk [vmem:[%s250 + $0x130] sm:$0xff] %vm2301, %v2083
        %2341 = vst.msk [vmem:[%s250 + $0x138] sm:$0xff] %vm2301, %v2084
        %2342 = vst.msk [vmem:[%s250 + $0x140] sm:$0xff] %vm2301, %v2085
        %2343 = vst.msk [vmem:[%s250 + $0x148] sm:$0xff] %vm2301, %v2086
        %2344 = vst.msk [vmem:[%s250 + $0x150] sm:$0xff] %vm2301, %v2087
        %2345 = vst.msk [vmem:[%s250 + $0x158] sm:$0xff] %vm2301, %v2088
        %2346 = vst.msk [vmem:[%s250 + $0x160] sm:$0xff] %vm2301, %v2089
        %2347 = vst.msk [vmem:[%s250 + $0x168] sm:$0xff] %vm2301, %v2090
        %2348 = vst.msk [vmem:[%s250 + $0x170] sm:$0xff] %vm2301, %v2091
        %2349 = vst.msk [vmem:[%s250 + $0x178] sm:$0xff] %vm2301, %v2092
        %2350 = vst.msk [vmem:[%s250 + $0x180] sm:$0xff] %vm2301, %v2093
        %2351 = vst.msk [vmem:[%s250 + $0x188] sm:$0xff] %vm2301, %v2094
        %2352 = vst.msk [vmem:[%s250 + $0x190] sm:$0xff] %vm2301, %v2095
        %2353 = vst.msk [vmem:[%s250 + $0x198] sm:$0xff] %vm2301, %v2096
        %2354 = vst.msk [vmem:[%s250 + $0x1a0] sm:$0xff] %vm2301, %v2097
        %2355 = vst.msk [vmem:[%s250 + $0x1a8] sm:$0xff] %vm2301, %v2098
        %2356 = vst.msk [vmem:[%s250 + $0x1b0] sm:$0xff] %vm2301, %v2099
        %2357 = vst.msk [vmem:[%s250 + $0x1b8] sm:$0xff] %vm2301, %v2100
        %2358 = vst.msk [vmem:[%s250 + $0x1c0] sm:$0xff] %vm2301, %v2101
        %2359 = vst.msk [vmem:[%s250 + $0x1c8] sm:$0xff] %vm2301, %v2102
        %2360 = vst.msk [vmem:[%s250 + $0x1d0] sm:$0xff] %vm2301, %v2103
        %2361 = vst.msk [vmem:[%s250 + $0x1d8] sm:$0xff] %vm2301, %v2104
        %2362 = vst.msk [vmem:[%s250 + $0x1e0] sm:$0xff] %vm2301, %v2105
        %2363 = vst.msk [vmem:[%s250 + $0x1e8] sm:$0xff] %vm2301, %v2106
        %2364 = vst.msk [vmem:[%s250 + $0x1f0] sm:$0xff] %vm2301, %v2107
        %2365 = vst.msk [vmem:[%s250 + $0x1f8] sm:$0xff] %vm2301, %v2108
        %2366 = vst.msk [vmem:[%s250 + $0x200] sm:$0xff] %vm2301, %v2109
        %2367 = vst.msk [vmem:[%s250 + $0x208] sm:$0xff] %vm2301, %v2110
        %2368 = vst.msk [vmem:[%s250 + $0x210] sm:$0xff] %vm2301, %v2111
        %2369 = vst.msk [vmem:[%s250 + $0x218] sm:$0xff] %vm2301, %v2112
        %2370 = vst.msk [vmem:[%s250 + $0x220] sm:$0xff] %vm2301, %v2113
        %2371 = vst.msk [vmem:[%s250 + $0x228] sm:$0xff] %vm2301, %v2114
        %2372 = vst.msk [vmem:[%s250 + $0x230] sm:$0xff] %vm2301, %v2115
        %2373 = vst.msk [vmem:[%s250 + $0x238] sm:$0xff] %vm2301, %v2116
        %2374 = vst.msk [vmem:[%s250 + $0x240] sm:$0xff] %vm2301, %v2117
        %2375 = vst.msk [vmem:[%s250 + $0x248] sm:$0xff] %vm2301, %v2118
        %2376 = vst.msk [vmem:[%s250 + $0x250] sm:$0xff] %vm2301, %v2119
        %2377 = vst.msk [vmem:[%s250 + $0x258] sm:$0xff] %vm2301, %v2120
        %2378 = vst.msk [vmem:[%s250 + $0x260] sm:$0xff] %vm2301, %v2121
        %2379 = vst.msk [vmem:[%s250 + $0x268] sm:$0xff] %vm2301, %v2122
        %2380 = vst.msk [vmem:[%s250 + $0x270] sm:$0xff] %vm2301, %v2123
        %2381 = vst.msk [vmem:[%s250 + $0x278] sm:$0xff] %vm2301, %v2124
        %2382 = vst.msk [vmem:[%s250 + $0x280] sm:$0xff] %vm2301, %v2125
        %2383 = vst.msk [vmem:[%s250 + $0x288] sm:$0xff] %vm2301, %v2126
        %2384 = vst.msk [vmem:[%s250 + $0x290] sm:$0xff] %vm2301, %v2127
        %2385 = vst.msk [vmem:[%s250 + $0x298] sm:$0xff] %vm2301, %v2128
        %2386 = vst.msk [vmem:[%s250 + $0x2a0] sm:$0xff] %vm2301, %v2129
        %2387 = vst.msk [vmem:[%s250 + $0x2a8] sm:$0xff] %vm2301, %v2130
        %2388 = vst.msk [vmem:[%s250 + $0x2b0] sm:$0xff] %vm2301, %v2131
        %2389 = vst.msk [vmem:[%s250 + $0x2b8] sm:$0xff] %vm2301, %v2132
        %2390 = vst.msk [vmem:[%s250 + $0x2c0] sm:$0xff] %vm2301, %v2133
        %2391 = vst.msk [vmem:[%s250 + $0x2c8] sm:$0xff] %vm2301, %v2134
        %2392 = vst.msk [vmem:[%s250 + $0x2d0] sm:$0xff] %vm2301, %v2135
        %2393 = vst.msk [vmem:[%s250 + $0x2d8] sm:$0xff] %vm2301, %v2136
        %2394 = vst.msk [vmem:[%s250 + $0x2e0] sm:$0xff] %vm2301, %v2137
        %2395 = vst.msk [vmem:[%s250 + $0x2e8] sm:$0xff] %vm2301, %v2138
        %2396 = vst.msk [vmem:[%s250 + $0x2f0] sm:$0xff] %vm2301, %v2139
        %2397 = vst.msk [vmem:[%s250 + $0x2f8] sm:$0xff] %vm2301, %v2140
        %2398 = vst.msk [vmem:[%s250 + $0x300] sm:$0xff] %vm2301, %v2141
        %2399 = vst.msk [vmem:[%s250 + $0x308] sm:$0xff] %vm2301, %v2142
        %2400 = vst.msk [vmem:[%s250 + $0x310] sm:$0xff] %vm2301, %v2143
        %2401 = vst.msk [vmem:[%s250 + $0x318] sm:$0xff] %vm2301, %v2144
        %2402 = vst.msk [vmem:[%s250 + $0x320] sm:$0xff] %vm2301, %v2145
        %2403 = vst.msk [vmem:[%s250 + $0x328] sm:$0xff] %vm2301, %v2146
        %2404 = vst.msk [vmem:[%s250 + $0x330] sm:$0xff] %vm2301, %v2147
        %2405 = vst.msk [vmem:[%s250 + $0x338] sm:$0xff] %vm2301, %v2148
        %2406 = vst.msk [vmem:[%s250 + $0x340] sm:$0xff] %vm2301, %v2149
        %2407 = vst.msk [vmem:[%s250 + $0x348] sm:$0xff] %vm2301, %v2150
        %2408 = vst.msk [vmem:[%s250 + $0x350] sm:$0xff] %vm2301, %v2151
        %2409 = vst.msk [vmem:[%s250 + $0x358] sm:$0xff] %vm2301, %v2152
        %2410 = vst.msk [vmem:[%s250 + $0x360] sm:$0xff] %vm2301, %v2153
        %2411 = vst.msk [vmem:[%s250 + $0x368] sm:$0xff] %vm2301, %v2154
        %2412 = vst.msk [vmem:[%s250 + $0x370] sm:$0xff] %vm2301, %v2155
        %2413 = vst.msk [vmem:[%s250 + $0x378] sm:$0xff] %vm2301, %v2156
        %2414 = vst.msk [vmem:[%s250 + $0x380] sm:$0xff] %vm2301, %v2157
        %2415 = vst.msk [vmem:[%s250 + $0x388] sm:$0xff] %vm2301, %v2158
        %2416 = vst.msk [vmem:[%s250 + $0x390] sm:$0xff] %vm2301, %v2159
        %2417 = vst.msk [vmem:[%s250 + $0x398] sm:$0xff] %vm2301, %v2160
        %2418 = vst.msk [vmem:[%s250 + $0x3a0] sm:$0xff] %vm2301, %v2161
        %2419 = vst.msk [vmem:[%s250 + $0x3a8] sm:$0xff] %vm2301, %v2162
        %2420 = vst.msk [vmem:[%s250 + $0x3b0] sm:$0xff] %vm2301, %v2163
        %2421 = vst.msk [vmem:[%s250 + $0x3b8] sm:$0xff] %vm2301, %v2164
        %2422 = vst.msk [vmem:[%s250 + $0x3c0] sm:$0xff] %vm2301, %v2165
        %2423 = vst.msk [vmem:[%s250 + $0x3c8] sm:$0xff] %vm2301, %v2166
        %2424 = vst.msk [vmem:[%s250 + $0x3d0] sm:$0xff] %vm2301, %v2167
        %2425 = vst.msk [vmem:[%s250 + $0x3d8] sm:$0xff] %vm2301, %v2168
        %2426 = vst.msk [vmem:[%s250 + $0x3e0] sm:$0xff] %vm2301, %v2169
        %2427 = vst.msk [vmem:[%s250 + $0x3e8] sm:$0xff] %vm2301, %v2170
        %2428 = vst.msk [vmem:[%s250 + $0x3f0] sm:$0xff] %vm2301, %v2171
        %2429 = vst.msk [vmem:[%s250 + $0x3f8] sm:$0xff] %vm2301, %v2172
        %2430 = vst.msk [vmem:[%s250 + $0x400] sm:$0xff] %vm2301, %v2173
        %2431 = vst.msk [vmem:[%s250 + $0x408] sm:$0xff] %vm2301, %v2174
        %2432 = vst.msk [vmem:[%s250 + $0x410] sm:$0xff] %vm2301, %v2175
        %2433 = vst.msk [vmem:[%s250 + $0x418] sm:$0xff] %vm2301, %v2176
        %2434 = vst.msk [vmem:[%s250 + $0x420] sm:$0xff] %vm2301, %v2177
        %2435 = vst.msk [vmem:[%s250 + $0x428] sm:$0xff] %vm2301, %v2178
        %2436 = vst.msk [vmem:[%s250 + $0x430] sm:$0xff] %vm2301, %v2179
        %2437 = vst.msk [vmem:[%s250 + $0x438] sm:$0xff] %vm2301, %v2180
        %2438 = vst.msk [vmem:[%s250 + $0x440] sm:$0xff] %vm2301, %v2181
        %2439 = vst.msk [vmem:[%s250 + $0x448] sm:$0xff] %vm2301, %v2182
        %2440 = vst.msk [vmem:[%s250 + $0x450] sm:$0xff] %vm2301, %v2183
        %2441 = vst.msk [vmem:[%s250 + $0x458] sm:$0xff] %vm2301, %v2184
        %2442 = vst.msk [vmem:[%s250 + $0x460] sm:$0xff] %vm2301, %v2185
        %2443 = vst.msk [vmem:[%s250 + $0x468] sm:$0xff] %vm2301, %v2186
        %2444 = vst.msk [vmem:[%s250 + $0x470] sm:$0xff] %vm2301, %v2187
        %2445 = vst.msk [vmem:[%s250 + $0x478] sm:$0xff] %vm2301, %v2188
        %2446 = vst.msk [vmem:[%s250 + $0x480] sm:$0xff] %vm2301, %v2189
        %2447 = vst.msk [vmem:[%s250 + $0x488] sm:$0xff] %vm2301, %v2190
        %2448 = vst.msk [vmem:[%s250 + $0x490] sm:$0xff] %vm2301, %v2191
        %2449 = vst.msk [vmem:[%s250 + $0x498] sm:$0xff] %vm2301, %v2192
        %2450 = vst.msk [vmem:[%s250 + $0x4a0] sm:$0xff] %vm2301, %v2193
        %2451 = vst.msk [vmem:[%s250 + $0x4a8] sm:$0xff] %vm2301, %v2194
        %2452 = vst.msk [vmem:[%s250 + $0x4b0] sm:$0xff] %vm2301, %v2195
        %2453 = vst.msk [vmem:[%s250 + $0x4b8] sm:$0xff] %vm2301, %v2196
        %2454 = vst.msk [vmem:[%s250 + $0x4c0] sm:$0xff] %vm2301, %v2197
        %2455 = vst.msk [vmem:[%s250 + $0x4c8] sm:$0xff] %vm2301, %v2198
        %2456 = vst.msk [vmem:[%s250 + $0x4d0] sm:$0xff] %vm2301, %v2199
        %2457 = vst.msk [vmem:[%s250 + $0x4d8] sm:$0xff] %vm2301, %v2200
        %2458 = vst.msk [vmem:[%s250 + $0x4e0] sm:$0xff] %vm2301, %v2201
        %2459 = vst.msk [vmem:[%s250 + $0x4e8] sm:$0xff] %vm2301, %v2202
        %2460 = vst.msk [vmem:[%s250 + $0x4f0] sm:$0xff] %vm2301, %v2203
        %2461 = vst.msk [vmem:[%s250 + $0x4f8] sm:$0xff] %vm2301, %v2204
        %2462 = vst.msk [vmem:[%s250 + $0x500] sm:$0xff] %vm2301, %v2205
        %2463 = vst.msk [vmem:[%s250 + $0x508] sm:$0xff] %vm2301, %v2206
        %2464 = vst.msk [vmem:[%s250 + $0x510] sm:$0xff] %vm2301, %v2207
        %2465 = vst.msk [vmem:[%s250 + $0x518] sm:$0xff] %vm2301, %v2208
        %2466 = vst.msk [vmem:[%s250 + $0x520] sm:$0xff] %vm2301, %v2209
        %2467 = vst.msk [vmem:[%s250 + $0x528] sm:$0xff] %vm2301, %v2210
        %2468 = vst.msk [vmem:[%s250 + $0x530] sm:$0xff] %vm2301, %v2211
        %2469 = vst.msk [vmem:[%s250 + $0x538] sm:$0xff] %vm2301, %v2212
        %2470 = vst.msk [vmem:[%s250 + $0x540] sm:$0xff] %vm2301, %v2213
        %2471 = vst.msk [vmem:[%s250 + $0x548] sm:$0xff] %vm2301, %v2214
        %2472 = vst.msk [vmem:[%s250 + $0x550] sm:$0xff] %vm2301, %v2215
        %2473 = vst.msk [vmem:[%s250 + $0x558] sm:$0xff] %vm2301, %v2216
        %2474 = vst.msk [vmem:[%s250 + $0x560] sm:$0xff] %vm2301, %v2217
        %2475 = vst.msk [vmem:[%s250 + $0x568] sm:$0xff] %vm2301, %v2218
        %2476 = vst.msk [vmem:[%s250 + $0x570] sm:$0xff] %vm2301, %v2219
        %2477 = vst.msk [vmem:[%s250 + $0x578] sm:$0xff] %vm2301, %v2220
        %2478 = vst.msk [vmem:[%s250 + $0x580] sm:$0xff] %vm2301, %v2221
        %2479 = vst.msk [vmem:[%s250 + $0x588] sm:$0xff] %vm2301, %v2222
        %2480 = vst.msk [vmem:[%s250 + $0x590] sm:$0xff] %vm2301, %v2223
        %2481 = vst.msk [vmem:[%s250 + $0x598] sm:$0xff] %vm2301, %v2224
        %2482 = vst.msk [vmem:[%s250 + $0x5a0] sm:$0xff] %vm2301, %v2225
        %2483 = vst.msk [vmem:[%s250 + $0x5a8] sm:$0xff] %vm2301, %v2226
        %2484 = vst.msk [vmem:[%s250 + $0x5b0] sm:$0xff] %vm2301, %v2227
        %2485 = vst.msk [vmem:[%s250 + $0x5b8] sm:$0xff] %vm2301, %v2228
        %2486 = vst.msk [vmem:[%s250 + $0x5c0] sm:$0xff] %vm2301, %v2229
        %2487 = vst.msk [vmem:[%s250 + $0x5c8] sm:$0xff] %vm2301, %v2230
        %2488 = vst.msk [vmem:[%s250 + $0x5d0] sm:$0xff] %vm2301, %v2231
        %2489 = vst.msk [vmem:[%s250 + $0x5d8] sm:$0xff] %vm2301, %v2232
        %2490 = vst.msk [vmem:[%s250 + $0x5e0] sm:$0xff] %vm2301, %v2233
        %2491 = vst.msk [vmem:[%s250 + $0x5e8] sm:$0xff] %vm2301, %v2234
        %2492 = vst.msk [vmem:[%s250 + $0x5f0] sm:$0xff] %vm2301, %v2235
        %2493 = vst.msk [vmem:[%s250 + $0x5f8] sm:$0xff] %vm2301, %v2236
        %2494 = vst.msk [vmem:[%s250 + $0x600] sm:$0xff] %vm2301, %v2237
        %2495 = vst.msk [vmem:[%s250 + $0x608] sm:$0xff] %vm2301, %v2238
        %2496 = vst.msk [vmem:[%s250 + $0x610] sm:$0xff] %vm2301, %v2239
        %2497 = vst.msk [vmem:[%s250 + $0x618] sm:$0xff] %vm2301, %v2240
        %2498 = vst.msk [vmem:[%s250 + $0x620] sm:$0xff] %vm2301, %v2241
        %2499 = vst.msk [vmem:[%s250 + $0x628] sm:$0xff] %vm2301, %v2242
        %2500 = vst.msk [vmem:[%s250 + $0x630] sm:$0xff] %vm2301, %v2243
        %2501 = vst.msk [vmem:[%s250 + $0x638] sm:$0xff] %vm2301, %v2244
        %2502 = vst.msk [vmem:[%s250 + $0x640] sm:$0xff] %vm2301, %v2245
        %2503 = vst.msk [vmem:[%s250 + $0x648] sm:$0xff] %vm2301, %v2246
        %2504 = vst.msk [vmem:[%s250 + $0x650] sm:$0xff] %vm2301, %v2247
        %2505 = vst.msk [vmem:[%s250 + $0x658] sm:$0xff] %vm2301, %v2248
        %2506 = vst.msk [vmem:[%s250 + $0x660] sm:$0xff] %vm2301, %v2249
        %2507 = vst.msk [vmem:[%s250 + $0x668] sm:$0xff] %vm2301, %v2250
        %2508 = vst.msk [vmem:[%s250 + $0x670] sm:$0xff] %vm2301, %v2251
        %2509 = vst.msk [vmem:[%s250 + $0x678] sm:$0xff] %vm2301, %v2252
        %2510 = vst.msk [vmem:[%s250 + $0x680] sm:$0xff] %vm2301, %v2253
        %2511 = vst.msk [vmem:[%s250 + $0x688] sm:$0xff] %vm2301, %v2254
        %2512 = vst.msk [vmem:[%s250 + $0x690] sm:$0xff] %vm2301, %v2255
        %2513 = vst.msk [vmem:[%s250 + $0x698] sm:$0xff] %vm2301, %v2256
        %2514 = vst.msk [vmem:[%s250 + $0x6a0] sm:$0xff] %vm2301, %v2257
        %2515 = vst.msk [vmem:[%s250 + $0x6a8] sm:$0xff] %vm2301, %v2258
        %2516 = vst.msk [vmem:[%s250 + $0x6b0] sm:$0xff] %vm2301, %v2259
        %2517 = vst.msk [vmem:[%s250 + $0x6b8] sm:$0xff] %vm2301, %v2260
        %2518 = vst.msk [vmem:[%s250 + $0x6c0] sm:$0xff] %vm2301, %v2261
        %2519 = vst.msk [vmem:[%s250 + $0x6c8] sm:$0xff] %vm2301, %v2262
        %2520 = vst.msk [vmem:[%s250 + $0x6d0] sm:$0xff] %vm2301, %v2263
        %2521 = vst.msk [vmem:[%s250 + $0x6d8] sm:$0xff] %vm2301, %v2264
        %2522 = vst.msk [vmem:[%s250 + $0x6e0] sm:$0xff] %vm2301, %v2265
        %2523 = vst.msk [vmem:[%s250 + $0x6e8] sm:$0xff] %vm2301, %v2266
        %2524 = vst.msk [vmem:[%s250 + $0x6f0] sm:$0xff] %vm2301, %v2267
        %2525 = vst.msk [vmem:[%s250 + $0x6f8] sm:$0xff] %vm2301, %v2268
        %2526 = vst.msk [vmem:[%s250 + $0x700] sm:$0xff] %vm2301, %v2269
        %2527 = vst.msk [vmem:[%s250 + $0x708] sm:$0xff] %vm2301, %v2270
        %2528 = vst.msk [vmem:[%s250 + $0x710] sm:$0xff] %vm2301, %v2271
        %2529 = vst.msk [vmem:[%s250 + $0x718] sm:$0xff] %vm2301, %v2272
        %2530 = vst.msk [vmem:[%s250 + $0x720] sm:$0xff] %vm2301, %v2273
        %2531 = vst.msk [vmem:[%s250 + $0x728] sm:$0xff] %vm2301, %v2274
        %2532 = vst.msk [vmem:[%s250 + $0x730] sm:$0xff] %vm2301, %v2275
        %2533 = vst.msk [vmem:[%s250 + $0x738] sm:$0xff] %vm2301, %v2276
        %2534 = vst.msk [vmem:[%s250 + $0x740] sm:$0xff] %vm2301, %v2277
        %2535 = vst.msk [vmem:[%s250 + $0x748] sm:$0xff] %vm2301, %v2278
        %2536 = vst.msk [vmem:[%s250 + $0x750] sm:$0xff] %vm2301, %v2279
        %2537 = vst.msk [vmem:[%s250 + $0x758] sm:$0xff] %vm2301, %v2280
        %2538 = vst.msk [vmem:[%s250 + $0x760] sm:$0xff] %vm2301, %v2281
        %2539 = vst.msk [vmem:[%s250 + $0x768] sm:$0xff] %vm2301, %v2282
        %2540 = vst.msk [vmem:[%s250 + $0x770] sm:$0xff] %vm2301, %v2283
        %2541 = vst.msk [vmem:[%s250 + $0x778] sm:$0xff] %vm2301, %v2284
        %2542 = vst.msk [vmem:[%s250 + $0x780] sm:$0xff] %vm2301, %v2285
        %2543 = vst.msk [vmem:[%s250 + $0x788] sm:$0xff] %vm2301, %v2286
        %2544 = vst.msk [vmem:[%s250 + $0x790] sm:$0xff] %vm2301, %v2287
        %2545 = vst.msk [vmem:[%s250 + $0x798] sm:$0xff] %vm2301, %v2288
        %2546 = vst.msk [vmem:[%s250 + $0x7a0] sm:$0xff] %vm2301, %v2289
        %2547 = vst.msk [vmem:[%s250 + $0x7a8] sm:$0xff] %vm2301, %v2290
        %2548 = vst.msk [vmem:[%s250 + $0x7b0] sm:$0xff] %vm2301, %v2291
        %2549 = vst.msk [vmem:[%s250 + $0x7b8] sm:$0xff] %vm2301, %v2292
        %2550 = vst.msk [vmem:[%s250 + $0x7c0] sm:$0xff] %vm2301, %v2293
        %2551 = vst.msk [vmem:[%s250 + $0x7c8] sm:$0xff] %vm2301, %v2294
        %2552 = vst.msk [vmem:[%s250 + $0x7d0] sm:$0xff] %vm2301, %v2295
        %2553 = vst.msk [vmem:[%s250 + $0x7d8] sm:$0xff] %vm2301, %v2296
        %2554 = vst.msk [vmem:[%s250 + $0x7e0] sm:$0xff] %vm2301, %v2297
        %2555 = vst.msk [vmem:[%s250 + $0x7e8] sm:$0xff] %vm2301, %v2298
        %2556 = vst.msk [vmem:[%s250 + $0x7f0] sm:$0xff] %vm2301, %v2299
        %2557 = vst.msk [vmem:[%s250 + $0x7f8] sm:$0xff] %vm2301, %v2300
        %v2558 = vpack.c.bf16 %v253, %v252
        %v2559 = vpack.c.bf16 %v255, %v254
        %v2560 = vpack.c.bf16 %v257, %v256
        %v2561 = vpack.c.bf16 %v259, %v258
        %v2562 = vpack.c.bf16 %v261, %v260
        %v2563 = vpack.c.bf16 %v263, %v262
        %v2564 = vpack.c.bf16 %v265, %v264
        %v2565 = vpack.c.bf16 %v267, %v266
        %v2566 = vpack.c.bf16 %v269, %v268
        %v2567 = vpack.c.bf16 %v271, %v270
        %v2568 = vpack.c.bf16 %v273, %v272
        %v2569 = vpack.c.bf16 %v275, %v274
        %v2570 = vpack.c.bf16 %v277, %v276
        %v2571 = vpack.c.bf16 %v279, %v278
        %v2572 = vpack.c.bf16 %v281, %v280
        %v2573 = vpack.c.bf16 %v283, %v282
        %v2574 = vpack.c.bf16 %v285, %v284
        %v2575 = vpack.c.bf16 %v287, %v286
        %v2576 = vpack.c.bf16 %v289, %v288
        %v2577 = vpack.c.bf16 %v291, %v290
        %v2578 = vpack.c.bf16 %v293, %v292
        %v2579 = vpack.c.bf16 %v295, %v294
        %v2580 = vpack.c.bf16 %v297, %v296
        %v2581 = vpack.c.bf16 %v299, %v298
        %v2582 = vpack.c.bf16 %v301, %v300
        %v2583 = vpack.c.bf16 %v303, %v302
        %v2584 = vpack.c.bf16 %v305, %v304
        %v2585 = vpack.c.bf16 %v307, %v306
        %v2586 = vpack.c.bf16 %v309, %v308
        %v2587 = vpack.c.bf16 %v311, %v310
        %v2588 = vpack.c.bf16 %v313, %v312
        %v2589 = vpack.c.bf16 %v315, %v314
        %v2590 = vpack.c.bf16 %v317, %v316
        %v2591 = vpack.c.bf16 %v319, %v318
        %v2592 = vpack.c.bf16 %v321, %v320
        %v2593 = vpack.c.bf16 %v323, %v322
        %v2594 = vpack.c.bf16 %v325, %v324
        %v2595 = vpack.c.bf16 %v327, %v326
        %v2596 = vpack.c.bf16 %v329, %v328
        %v2597 = vpack.c.bf16 %v331, %v330
        %v2598 = vpack.c.bf16 %v333, %v332
        %v2599 = vpack.c.bf16 %v335, %v334
        %v2600 = vpack.c.bf16 %v337, %v336
        %v2601 = vpack.c.bf16 %v339, %v338
        %v2602 = vpack.c.bf16 %v341, %v340
        %v2603 = vpack.c.bf16 %v343, %v342
        %v2604 = vpack.c.bf16 %v345, %v344
        %v2605 = vpack.c.bf16 %v347, %v346
        %v2606 = vpack.c.bf16 %v349, %v348
        %v2607 = vpack.c.bf16 %v351, %v350
        %v2608 = vpack.c.bf16 %v353, %v352
        %v2609 = vpack.c.bf16 %v355, %v354
        %v2610 = vpack.c.bf16 %v357, %v356
        %v2611 = vpack.c.bf16 %v359, %v358
        %v2612 = vpack.c.bf16 %v361, %v360
        %v2613 = vpack.c.bf16 %v363, %v362
        %v2614 = vpack.c.bf16 %v365, %v364
        %v2615 = vpack.c.bf16 %v367, %v366
        %v2616 = vpack.c.bf16 %v369, %v368
        %v2617 = vpack.c.bf16 %v371, %v370
        %v2618 = vpack.c.bf16 %v373, %v372
        %v2619 = vpack.c.bf16 %v375, %v374
        %v2620 = vpack.c.bf16 %v377, %v376
        %v2621 = vpack.c.bf16 %v379, %v378
        %v2622 = vpack.c.bf16 %v381, %v380
        %v2623 = vpack.c.bf16 %v383, %v382
        %v2624 = vpack.c.bf16 %v385, %v384
        %v2625 = vpack.c.bf16 %v387, %v386
        %v2626 = vpack.c.bf16 %v389, %v388
        %v2627 = vpack.c.bf16 %v391, %v390
        %v2628 = vpack.c.bf16 %v393, %v392
        %v2629 = vpack.c.bf16 %v395, %v394
        %v2630 = vpack.c.bf16 %v397, %v396
        %v2631 = vpack.c.bf16 %v399, %v398
        %v2632 = vpack.c.bf16 %v401, %v400
        %v2633 = vpack.c.bf16 %v403, %v402
        %v2634 = vpack.c.bf16 %v405, %v404
        %v2635 = vpack.c.bf16 %v407, %v406
        %v2636 = vpack.c.bf16 %v409, %v408
        %v2637 = vpack.c.bf16 %v411, %v410
        %v2638 = vpack.c.bf16 %v413, %v412
        %v2639 = vpack.c.bf16 %v415, %v414
        %v2640 = vpack.c.bf16 %v417, %v416
        %v2641 = vpack.c.bf16 %v419, %v418
        %v2642 = vpack.c.bf16 %v421, %v420
        %v2643 = vpack.c.bf16 %v423, %v422
        %v2644 = vpack.c.bf16 %v425, %v424
        %v2645 = vpack.c.bf16 %v427, %v426
        %v2646 = vpack.c.bf16 %v429, %v428
        %v2647 = vpack.c.bf16 %v431, %v430
        %v2648 = vpack.c.bf16 %v433, %v432
        %v2649 = vpack.c.bf16 %v435, %v434
        %v2650 = vpack.c.bf16 %v437, %v436
        %v2651 = vpack.c.bf16 %v439, %v438
        %v2652 = vpack.c.bf16 %v441, %v440
        %v2653 = vpack.c.bf16 %v443, %v442
        %v2654 = vpack.c.bf16 %v445, %v444
        %v2655 = vpack.c.bf16 %v447, %v446
        %v2656 = vpack.c.bf16 %v449, %v448
        %v2657 = vpack.c.bf16 %v451, %v450
        %v2658 = vpack.c.bf16 %v453, %v452
        %v2659 = vpack.c.bf16 %v455, %v454
        %v2660 = vpack.c.bf16 %v457, %v456
        %v2661 = vpack.c.bf16 %v459, %v458
        %v2662 = vpack.c.bf16 %v461, %v460
        %v2663 = vpack.c.bf16 %v463, %v462
        %v2664 = vpack.c.bf16 %v465, %v464
        %v2665 = vpack.c.bf16 %v467, %v466
        %v2666 = vpack.c.bf16 %v469, %v468
        %v2667 = vpack.c.bf16 %v471, %v470
        %v2668 = vpack.c.bf16 %v473, %v472
        %v2669 = vpack.c.bf16 %v475, %v474
        %v2670 = vpack.c.bf16 %v477, %v476
        %v2671 = vpack.c.bf16 %v479, %v478
        %v2672 = vpack.c.bf16 %v481, %v480
        %v2673 = vpack.c.bf16 %v483, %v482
        %v2674 = vpack.c.bf16 %v485, %v484
        %v2675 = vpack.c.bf16 %v487, %v486
        %v2676 = vpack.c.bf16 %v489, %v488
        %v2677 = vpack.c.bf16 %v491, %v490
        %v2678 = vpack.c.bf16 %v493, %v492
        %v2679 = vpack.c.bf16 %v495, %v494
        %v2680 = vpack.c.bf16 %v497, %v496
        %v2681 = vpack.c.bf16 %v499, %v498
        %v2682 = vpack.c.bf16 %v501, %v500
        %v2683 = vpack.c.bf16 %v503, %v502
        %v2684 = vpack.c.bf16 %v505, %v504
        %v2685 = vpack.c.bf16 %v507, %v506
        %v2686 = vld [vmem:[#allocation2] sm:$0xff]
        %v2687 = vld [vmem:[#allocation2 + $0x8] sm:$0xff]
        %v2688 = vld [vmem:[#allocation2 + $0x10] sm:$0xff]
        %v2689 = vld [vmem:[#allocation2 + $0x18] sm:$0xff]
        %v2690 = vld [vmem:[#allocation2 + $0x20] sm:$0xff]
        %v2691 = vld [vmem:[#allocation2 + $0x28] sm:$0xff]
        %v2692 = vld [vmem:[#allocation2 + $0x30] sm:$0xff]
        %v2693 = vld [vmem:[#allocation2 + $0x38] sm:$0xff]
        %v2694 = vld [vmem:[#allocation2 + $0x40] sm:$0xff]
        %v2695 = vld [vmem:[#allocation2 + $0x48] sm:$0xff]
        %v2696 = vld [vmem:[#allocation2 + $0x50] sm:$0xff]
        %v2697 = vld [vmem:[#allocation2 + $0x58] sm:$0xff]
        %v2698 = vld [vmem:[#allocation2 + $0x60] sm:$0xff]
        %v2699 = vld [vmem:[#allocation2 + $0x68] sm:$0xff]
        %v2700 = vld [vmem:[#allocation2 + $0x70] sm:$0xff]
        %v2701 = vld [vmem:[#allocation2 + $0x78] sm:$0xff]
        %v2702 = vld [vmem:[#allocation2 + $0x80] sm:$0xff]
        %v2703 = vld [vmem:[#allocation2 + $0x88] sm:$0xff]
        %v2704 = vld [vmem:[#allocation2 + $0x90] sm:$0xff]
        %v2705 = vld [vmem:[#allocation2 + $0x98] sm:$0xff]
        %v2706 = vld [vmem:[#allocation2 + $0xa0] sm:$0xff]
        %v2707 = vld [vmem:[#allocation2 + $0xa8] sm:$0xff]
        %v2708 = vld [vmem:[#allocation2 + $0xb0] sm:$0xff]
        %v2709 = vld [vmem:[#allocation2 + $0xb8] sm:$0xff]
        %v2710 = vld [vmem:[#allocation2 + $0xc0] sm:$0xff]
        %v2711 = vld [vmem:[#allocation2 + $0xc8] sm:$0xff]
        %v2712 = vld [vmem:[#allocation2 + $0xd0] sm:$0xff]
        %v2713 = vld [vmem:[#allocation2 + $0xd8] sm:$0xff]
        %v2714 = vld [vmem:[#allocation2 + $0xe0] sm:$0xff]
        %v2715 = vld [vmem:[#allocation2 + $0xe8] sm:$0xff]
        %v2716 = vld [vmem:[#allocation2 + $0xf0] sm:$0xff]
        %v2717 = vld [vmem:[#allocation2 + $0xf8] sm:$0xff]
        %v2718 = vld [vmem:[#allocation2 + $0x100] sm:$0xff]
        %v2719 = vld [vmem:[#allocation2 + $0x108] sm:$0xff]
        %v2720 = vld [vmem:[#allocation2 + $0x110] sm:$0xff]
        %v2721 = vld [vmem:[#allocation2 + $0x118] sm:$0xff]
        %v2722 = vld [vmem:[#allocation2 + $0x120] sm:$0xff]
        %v2723 = vld [vmem:[#allocation2 + $0x128] sm:$0xff]
        %v2724 = vld [vmem:[#allocation2 + $0x130] sm:$0xff]
        %v2725 = vld [vmem:[#allocation2 + $0x138] sm:$0xff]
        %v2726 = vld [vmem:[#allocation2 + $0x140] sm:$0xff]
        %v2727 = vld [vmem:[#allocation2 + $0x148] sm:$0xff]
        %v2728 = vld [vmem:[#allocation2 + $0x150] sm:$0xff]
        %v2729 = vld [vmem:[#allocation2 + $0x158] sm:$0xff]
        %v2730 = vld [vmem:[#allocation2 + $0x160] sm:$0xff]
        %v2731 = vld [vmem:[#allocation2 + $0x168] sm:$0xff]
        %v2732 = vld [vmem:[#allocation2 + $0x170] sm:$0xff]
        %v2733 = vld [vmem:[#allocation2 + $0x178] sm:$0xff]
        %v2734 = vld [vmem:[#allocation2 + $0x180] sm:$0xff]
        %v2735 = vld [vmem:[#allocation2 + $0x188] sm:$0xff]
        %v2736 = vld [vmem:[#allocation2 + $0x190] sm:$0xff]
        %v2737 = vld [vmem:[#allocation2 + $0x198] sm:$0xff]
        %v2738 = vld [vmem:[#allocation2 + $0x1a0] sm:$0xff]
        %v2739 = vld [vmem:[#allocation2 + $0x1a8] sm:$0xff]
        %v2740 = vld [vmem:[#allocation2 + $0x1b0] sm:$0xff]
        %v2741 = vld [vmem:[#allocation2 + $0x1b8] sm:$0xff]
        %v2742 = vld [vmem:[#allocation2 + $0x1c0] sm:$0xff]
        %v2743 = vld [vmem:[#allocation2 + $0x1c8] sm:$0xff]
        %v2744 = vld [vmem:[#allocation2 + $0x1d0] sm:$0xff]
        %v2745 = vld [vmem:[#allocation2 + $0x1d8] sm:$0xff]
        %v2746 = vld [vmem:[#allocation2 + $0x1e0] sm:$0xff]
        %v2747 = vld [vmem:[#allocation2 + $0x1e8] sm:$0xff]
        %v2748 = vld [vmem:[#allocation2 + $0x1f0] sm:$0xff]
        %v2749 = vld [vmem:[#allocation2 + $0x1f8] sm:$0xff]
        %v2750 = vld [vmem:[#allocation2 + $0x200] sm:$0xff]
        %v2751 = vld [vmem:[#allocation2 + $0x208] sm:$0xff]
        %v2752 = vld [vmem:[#allocation2 + $0x210] sm:$0xff]
        %v2753 = vld [vmem:[#allocation2 + $0x218] sm:$0xff]
        %v2754 = vld [vmem:[#allocation2 + $0x220] sm:$0xff]
        %v2755 = vld [vmem:[#allocation2 + $0x228] sm:$0xff]
        %v2756 = vld [vmem:[#allocation2 + $0x230] sm:$0xff]
        %v2757 = vld [vmem:[#allocation2 + $0x238] sm:$0xff]
        %v2758 = vld [vmem:[#allocation2 + $0x240] sm:$0xff]
        %v2759 = vld [vmem:[#allocation2 + $0x248] sm:$0xff]
        %v2760 = vld [vmem:[#allocation2 + $0x250] sm:$0xff]
        %v2761 = vld [vmem:[#allocation2 + $0x258] sm:$0xff]
        %v2762 = vld [vmem:[#allocation2 + $0x260] sm:$0xff]
        %v2763 = vld [vmem:[#allocation2 + $0x268] sm:$0xff]
        %v2764 = vld [vmem:[#allocation2 + $0x270] sm:$0xff]
        %v2765 = vld [vmem:[#allocation2 + $0x278] sm:$0xff]
        %v2766 = vld [vmem:[#allocation2 + $0x280] sm:$0xff]
        %v2767 = vld [vmem:[#allocation2 + $0x288] sm:$0xff]
        %v2768 = vld [vmem:[#allocation2 + $0x290] sm:$0xff]
        %v2769 = vld [vmem:[#allocation2 + $0x298] sm:$0xff]
        %v2770 = vld [vmem:[#allocation2 + $0x2a0] sm:$0xff]
        %v2771 = vld [vmem:[#allocation2 + $0x2a8] sm:$0xff]
        %v2772 = vld [vmem:[#allocation2 + $0x2b0] sm:$0xff]
        %v2773 = vld [vmem:[#allocation2 + $0x2b8] sm:$0xff]
        %v2774 = vld [vmem:[#allocation2 + $0x2c0] sm:$0xff]
        %v2775 = vld [vmem:[#allocation2 + $0x2c8] sm:$0xff]
        %v2776 = vld [vmem:[#allocation2 + $0x2d0] sm:$0xff]
        %v2777 = vld [vmem:[#allocation2 + $0x2d8] sm:$0xff]
        %v2778 = vld [vmem:[#allocation2 + $0x2e0] sm:$0xff]
        %v2779 = vld [vmem:[#allocation2 + $0x2e8] sm:$0xff]
        %v2780 = vld [vmem:[#allocation2 + $0x2f0] sm:$0xff]
        %v2781 = vld [vmem:[#allocation2 + $0x2f8] sm:$0xff]
        %v2782 = vld [vmem:[#allocation2 + $0x300] sm:$0xff]
        %v2783 = vld [vmem:[#allocation2 + $0x308] sm:$0xff]
        %v2784 = vld [vmem:[#allocation2 + $0x310] sm:$0xff]
        %v2785 = vld [vmem:[#allocation2 + $0x318] sm:$0xff]
        %v2786 = vld [vmem:[#allocation2 + $0x320] sm:$0xff]
        %v2787 = vld [vmem:[#allocation2 + $0x328] sm:$0xff]
        %v2788 = vld [vmem:[#allocation2 + $0x330] sm:$0xff]
        %v2789 = vld [vmem:[#allocation2 + $0x338] sm:$0xff]
        %v2790 = vld [vmem:[#allocation2 + $0x340] sm:$0xff]
        %v2791 = vld [vmem:[#allocation2 + $0x348] sm:$0xff]
        %v2792 = vld [vmem:[#allocation2 + $0x350] sm:$0xff]
        %v2793 = vld [vmem:[#allocation2 + $0x358] sm:$0xff]
        %v2794 = vld [vmem:[#allocation2 + $0x360] sm:$0xff]
        %v2795 = vld [vmem:[#allocation2 + $0x368] sm:$0xff]
        %v2796 = vld [vmem:[#allocation2 + $0x370] sm:$0xff]
        %v2797 = vld [vmem:[#allocation2 + $0x378] sm:$0xff]
        %v2798 = vld [vmem:[#allocation2 + $0x380] sm:$0xff]
        %v2799 = vld [vmem:[#allocation2 + $0x388] sm:$0xff]
        %v2800 = vld [vmem:[#allocation2 + $0x390] sm:$0xff]
        %v2801 = vld [vmem:[#allocation2 + $0x398] sm:$0xff]
        %v2802 = vld [vmem:[#allocation2 + $0x3a0] sm:$0xff]
        %v2803 = vld [vmem:[#allocation2 + $0x3a8] sm:$0xff]
        %v2804 = vld [vmem:[#allocation2 + $0x3b0] sm:$0xff]
        %v2805 = vld [vmem:[#allocation2 + $0x3b8] sm:$0xff]
        %v2806 = vld [vmem:[#allocation2 + $0x3c0] sm:$0xff]
        %v2807 = vld [vmem:[#allocation2 + $0x3c8] sm:$0xff]
        %v2808 = vld [vmem:[#allocation2 + $0x3d0] sm:$0xff]
        %v2809 = vld [vmem:[#allocation2 + $0x3d8] sm:$0xff]
        %v2810 = vld [vmem:[#allocation2 + $0x3e0] sm:$0xff]
        %v2811 = vld [vmem:[#allocation2 + $0x3e8] sm:$0xff]
        %v2812 = vld [vmem:[#allocation2 + $0x3f0] sm:$0xff]
        %v2813 = vld [vmem:[#allocation2 + $0x3f8] sm:$0xff]
        %v2942 = vunpack.c.l.b16 %v2686
        %v2943 = vunpack.c.h.b16 %v2686
        %v2944 = vunpack.c.l.b16 %v2687
        %v2945 = vunpack.c.h.b16 %v2687
        %v2946 = vunpack.c.l.b16 %v2688
        %v2947 = vunpack.c.h.b16 %v2688
        %v2948 = vunpack.c.l.b16 %v2689
        %v2949 = vunpack.c.h.b16 %v2689
        %v2950 = vunpack.c.l.b16 %v2690
        %v2951 = vunpack.c.h.b16 %v2690
        %v2952 = vunpack.c.l.b16 %v2691
        %v2953 = vunpack.c.h.b16 %v2691
        %v2954 = vunpack.c.l.b16 %v2692
        %v2955 = vunpack.c.h.b16 %v2692
        %v2956 = vunpack.c.l.b16 %v2693
        %v2957 = vunpack.c.h.b16 %v2693
        %v2958 = vunpack.c.l.b16 %v2694
        %v2959 = vunpack.c.h.b16 %v2694
        %v2960 = vunpack.c.l.b16 %v2695
        %v2961 = vunpack.c.h.b16 %v2695
        %v2962 = vunpack.c.l.b16 %v2696
        %v2963 = vunpack.c.h.b16 %v2696
        %v2964 = vunpack.c.l.b16 %v2697
        %v2965 = vunpack.c.h.b16 %v2697
        %v2966 = vunpack.c.l.b16 %v2698
        %v2967 = vunpack.c.h.b16 %v2698
        %v2968 = vunpack.c.l.b16 %v2699
        %v2969 = vunpack.c.h.b16 %v2699
        %v2970 = vunpack.c.l.b16 %v2700
        %v2971 = vunpack.c.h.b16 %v2700
        %v2972 = vunpack.c.l.b16 %v2701
        %v2973 = vunpack.c.h.b16 %v2701
        %v2974 = vunpack.c.l.b16 %v2702
        %v2975 = vunpack.c.h.b16 %v2702
        %v2976 = vunpack.c.l.b16 %v2703
        %v2977 = vunpack.c.h.b16 %v2703
        %v2978 = vunpack.c.l.b16 %v2704
        %v2979 = vunpack.c.h.b16 %v2704
        %v2980 = vunpack.c.l.b16 %v2705
        %v2981 = vunpack.c.h.b16 %v2705
        %v2982 = vunpack.c.l.b16 %v2706
        %v2983 = vunpack.c.h.b16 %v2706
        %v2984 = vunpack.c.l.b16 %v2707
        %v2985 = vunpack.c.h.b16 %v2707
        %v2986 = vunpack.c.l.b16 %v2708
        %v2987 = vunpack.c.h.b16 %v2708
        %v2988 = vunpack.c.l.b16 %v2709
        %v2989 = vunpack.c.h.b16 %v2709
        %v2990 = vunpack.c.l.b16 %v2710
        %v2991 = vunpack.c.h.b16 %v2710
        %v2992 = vunpack.c.l.b16 %v2711
        %v2993 = vunpack.c.h.b16 %v2711
        %v2994 = vunpack.c.l.b16 %v2712
        %v2995 = vunpack.c.h.b16 %v2712
        %v2996 = vunpack.c.l.b16 %v2713
        %v2997 = vunpack.c.h.b16 %v2713
        %v2998 = vunpack.c.l.b16 %v2714
        %v2999 = vunpack.c.h.b16 %v2714
        %v3000 = vunpack.c.l.b16 %v2715
        %v3001 = vunpack.c.h.b16 %v2715
        %v3002 = vunpack.c.l.b16 %v2716
        %v3003 = vunpack.c.h.b16 %v2716
        %v3004 = vunpack.c.l.b16 %v2717
        %v3005 = vunpack.c.h.b16 %v2717
        %v3006 = vunpack.c.l.b16 %v2718
        %v3007 = vunpack.c.h.b16 %v2718
        %v3008 = vunpack.c.l.b16 %v2719
        %v3009 = vunpack.c.h.b16 %v2719
        %v3010 = vunpack.c.l.b16 %v2720
        %v3011 = vunpack.c.h.b16 %v2720
        %v3012 = vunpack.c.l.b16 %v2721
        %v3013 = vunpack.c.h.b16 %v2721
        %v3014 = vunpack.c.l.b16 %v2722
        %v3015 = vunpack.c.h.b16 %v2722
        %v3016 = vunpack.c.l.b16 %v2723
        %v3017 = vunpack.c.h.b16 %v2723
        %v3018 = vunpack.c.l.b16 %v2724
        %v3019 = vunpack.c.h.b16 %v2724
        %v3020 = vunpack.c.l.b16 %v2725
        %v3021 = vunpack.c.h.b16 %v2725
        %v3022 = vunpack.c.l.b16 %v2726
        %v3023 = vunpack.c.h.b16 %v2726
        %v3024 = vunpack.c.l.b16 %v2727
        %v3025 = vunpack.c.h.b16 %v2727
        %v3026 = vunpack.c.l.b16 %v2728
        %v3027 = vunpack.c.h.b16 %v2728
        %v3028 = vunpack.c.l.b16 %v2729
        %v3029 = vunpack.c.h.b16 %v2729
        %v3030 = vunpack.c.l.b16 %v2730
        %v3031 = vunpack.c.h.b16 %v2730
        %v3032 = vunpack.c.l.b16 %v2731
        %v3033 = vunpack.c.h.b16 %v2731
        %v3034 = vunpack.c.l.b16 %v2732
        %v3035 = vunpack.c.h.b16 %v2732
        %v3036 = vunpack.c.l.b16 %v2733
        %v3037 = vunpack.c.h.b16 %v2733
        %v3038 = vunpack.c.l.b16 %v2734
        %v3039 = vunpack.c.h.b16 %v2734
        %v3040 = vunpack.c.l.b16 %v2735
        %v3041 = vunpack.c.h.b16 %v2735
        %v3042 = vunpack.c.l.b16 %v2736
        %v3043 = vunpack.c.h.b16 %v2736
        %v3044 = vunpack.c.l.b16 %v2737
        %v3045 = vunpack.c.h.b16 %v2737
        %v3046 = vunpack.c.l.b16 %v2738
        %v3047 = vunpack.c.h.b16 %v2738
        %v3048 = vunpack.c.l.b16 %v2739
        %v3049 = vunpack.c.h.b16 %v2739
        %v3050 = vunpack.c.l.b16 %v2740
        %v3051 = vunpack.c.h.b16 %v2740
        %v3052 = vunpack.c.l.b16 %v2741
        %v3053 = vunpack.c.h.b16 %v2741
        %v3054 = vunpack.c.l.b16 %v2742
        %v3055 = vunpack.c.h.b16 %v2742
        %v3056 = vunpack.c.l.b16 %v2743
        %v3057 = vunpack.c.h.b16 %v2743
        %v3058 = vunpack.c.l.b16 %v2744
        %v3059 = vunpack.c.h.b16 %v2744
        %v3060 = vunpack.c.l.b16 %v2745
        %v3061 = vunpack.c.h.b16 %v2745
        %v3062 = vunpack.c.l.b16 %v2746
        %v3063 = vunpack.c.h.b16 %v2746
        %v3064 = vunpack.c.l.b16 %v2747
        %v3065 = vunpack.c.h.b16 %v2747
        %v3066 = vunpack.c.l.b16 %v2748
        %v3067 = vunpack.c.h.b16 %v2748
        %v3068 = vunpack.c.l.b16 %v2749
        %v3069 = vunpack.c.h.b16 %v2749
        %v3070 = vunpack.c.l.b16 %v2750
        %v3071 = vunpack.c.h.b16 %v2750
        %v3072 = vunpack.c.l.b16 %v2751
        %v3073 = vunpack.c.h.b16 %v2751
        %v3074 = vunpack.c.l.b16 %v2752
        %v3075 = vunpack.c.h.b16 %v2752
        %v3076 = vunpack.c.l.b16 %v2753
        %v3077 = vunpack.c.h.b16 %v2753
        %v3078 = vunpack.c.l.b16 %v2754
        %v3079 = vunpack.c.h.b16 %v2754
        %v3080 = vunpack.c.l.b16 %v2755
        %v3081 = vunpack.c.h.b16 %v2755
        %v3082 = vunpack.c.l.b16 %v2756
        %v3083 = vunpack.c.h.b16 %v2756
        %v3084 = vunpack.c.l.b16 %v2757
        %v3085 = vunpack.c.h.b16 %v2757
        %v3086 = vunpack.c.l.b16 %v2758
        %v3087 = vunpack.c.h.b16 %v2758
        %v3088 = vunpack.c.l.b16 %v2759
        %v3089 = vunpack.c.h.b16 %v2759
        %v3090 = vunpack.c.l.b16 %v2760
        %v3091 = vunpack.c.h.b16 %v2760
        %v3092 = vunpack.c.l.b16 %v2761
        %v3093 = vunpack.c.h.b16 %v2761
        %v3094 = vunpack.c.l.b16 %v2762
        %v3095 = vunpack.c.h.b16 %v2762
        %v3096 = vunpack.c.l.b16 %v2763
        %v3097 = vunpack.c.h.b16 %v2763
        %v3098 = vunpack.c.l.b16 %v2764
        %v3099 = vunpack.c.h.b16 %v2764
        %v3100 = vunpack.c.l.b16 %v2765
        %v3101 = vunpack.c.h.b16 %v2765
        %v3102 = vunpack.c.l.b16 %v2766
        %v3103 = vunpack.c.h.b16 %v2766
        %v3104 = vunpack.c.l.b16 %v2767
        %v3105 = vunpack.c.h.b16 %v2767
        %v3106 = vunpack.c.l.b16 %v2768
        %v3107 = vunpack.c.h.b16 %v2768
        %v3108 = vunpack.c.l.b16 %v2769
        %v3109 = vunpack.c.h.b16 %v2769
        %v3110 = vunpack.c.l.b16 %v2770
        %v3111 = vunpack.c.h.b16 %v2770
        %v3112 = vunpack.c.l.b16 %v2771
        %v3113 = vunpack.c.h.b16 %v2771
        %v3114 = vunpack.c.l.b16 %v2772
        %v3115 = vunpack.c.h.b16 %v2772
        %v3116 = vunpack.c.l.b16 %v2773
        %v3117 = vunpack.c.h.b16 %v2773
        %v3118 = vunpack.c.l.b16 %v2774
        %v3119 = vunpack.c.h.b16 %v2774
        %v3120 = vunpack.c.l.b16 %v2775
        %v3121 = vunpack.c.h.b16 %v2775
        %v3122 = vunpack.c.l.b16 %v2776
        %v3123 = vunpack.c.h.b16 %v2776
        %v3124 = vunpack.c.l.b16 %v2777
        %v3125 = vunpack.c.h.b16 %v2777
        %v3126 = vunpack.c.l.b16 %v2778
        %v3127 = vunpack.c.h.b16 %v2778
        %v3128 = vunpack.c.l.b16 %v2779
        %v3129 = vunpack.c.h.b16 %v2779
        %v3130 = vunpack.c.l.b16 %v2780
        %v3131 = vunpack.c.h.b16 %v2780
        %v3132 = vunpack.c.l.b16 %v2781
        %v3133 = vunpack.c.h.b16 %v2781
        %v3134 = vunpack.c.l.b16 %v2782
        %v3135 = vunpack.c.h.b16 %v2782
        %v3136 = vunpack.c.l.b16 %v2783
        %v3137 = vunpack.c.h.b16 %v2783
        %v3138 = vunpack.c.l.b16 %v2784
        %v3139 = vunpack.c.h.b16 %v2784
        %v3140 = vunpack.c.l.b16 %v2785
        %v3141 = vunpack.c.h.b16 %v2785
        %v3142 = vunpack.c.l.b16 %v2786
        %v3143 = vunpack.c.h.b16 %v2786
        %v3144 = vunpack.c.l.b16 %v2787
        %v3145 = vunpack.c.h.b16 %v2787
        %v3146 = vunpack.c.l.b16 %v2788
        %v3147 = vunpack.c.h.b16 %v2788
        %v3148 = vunpack.c.l.b16 %v2789
        %v3149 = vunpack.c.h.b16 %v2789
        %v3150 = vunpack.c.l.b16 %v2790
        %v3151 = vunpack.c.h.b16 %v2790
        %v3152 = vunpack.c.l.b16 %v2791
        %v3153 = vunpack.c.h.b16 %v2791
        %v3154 = vunpack.c.l.b16 %v2792
        %v3155 = vunpack.c.h.b16 %v2792
        %v3156 = vunpack.c.l.b16 %v2793
        %v3157 = vunpack.c.h.b16 %v2793
        %v3158 = vunpack.c.l.b16 %v2794
        %v3159 = vunpack.c.h.b16 %v2794
        %v3160 = vunpack.c.l.b16 %v2795
        %v3161 = vunpack.c.h.b16 %v2795
        %v3162 = vunpack.c.l.b16 %v2796
        %v3163 = vunpack.c.h.b16 %v2796
        %v3164 = vunpack.c.l.b16 %v2797
        %v3165 = vunpack.c.h.b16 %v2797
        %v3166 = vunpack.c.l.b16 %v2798
        %v3167 = vunpack.c.h.b16 %v2798
        %v3168 = vunpack.c.l.b16 %v2799
        %v3169 = vunpack.c.h.b16 %v2799
        %v3170 = vunpack.c.l.b16 %v2800
        %v3171 = vunpack.c.h.b16 %v2800
        %v3172 = vunpack.c.l.b16 %v2801
        %v3173 = vunpack.c.h.b16 %v2801
        %v3174 = vunpack.c.l.b16 %v2802
        %v3175 = vunpack.c.h.b16 %v2802
        %v3176 = vunpack.c.l.b16 %v2803
        %v3177 = vunpack.c.h.b16 %v2803
        %v3178 = vunpack.c.l.b16 %v2804
        %v3179 = vunpack.c.h.b16 %v2804
        %v3180 = vunpack.c.l.b16 %v2805
        %v3181 = vunpack.c.h.b16 %v2805
        %v3182 = vunpack.c.l.b16 %v2806
        %v3183 = vunpack.c.h.b16 %v2806
        %v3184 = vunpack.c.l.b16 %v2807
        %v3185 = vunpack.c.h.b16 %v2807
        %v3186 = vunpack.c.l.b16 %v2808
        %v3187 = vunpack.c.h.b16 %v2808
        %v3188 = vunpack.c.l.b16 %v2809
        %v3189 = vunpack.c.h.b16 %v2809
        %v3190 = vunpack.c.l.b16 %v2810
        %v3191 = vunpack.c.h.b16 %v2810
        %v3192 = vunpack.c.l.b16 %v2811
        %v3193 = vunpack.c.h.b16 %v2811
        %v3194 = vunpack.c.l.b16 %v2812
        %v3195 = vunpack.c.h.b16 %v2812
        %v3196 = vunpack.c.l.b16 %v2813
        %v3197 = vunpack.c.h.b16 %v2813
        %v3198 = vpack.c.b16 %v2958, %v2942
        %v3199 = vpack.c.b16 %v2959, %v2943
        %v3200 = vpack.c.b16 %v2960, %v2944
        %v3201 = vpack.c.b16 %v2961, %v2945
        %v3202 = vpack.c.b16 %v2962, %v2946
        %v3203 = vpack.c.b16 %v2963, %v2947
        %v3204 = vpack.c.b16 %v2964, %v2948
        %v3205 = vpack.c.b16 %v2965, %v2949
        %v3206 = vpack.c.b16 %v2966, %v2950
        %v3207 = vpack.c.b16 %v2967, %v2951
        %v3208 = vpack.c.b16 %v2968, %v2952
        %v3209 = vpack.c.b16 %v2969, %v2953
        %v3210 = vpack.c.b16 %v2970, %v2954
        %v3211 = vpack.c.b16 %v2971, %v2955
        %v3212 = vpack.c.b16 %v2972, %v2956
        %v3213 = vpack.c.b16 %v2973, %v2957
        %v3214 = vpack.c.b16 %v2990, %v2974
        %v3215 = vpack.c.b16 %v2991, %v2975
        %v3216 = vpack.c.b16 %v2992, %v2976
        %v3217 = vpack.c.b16 %v2993, %v2977
        %v3218 = vpack.c.b16 %v2994, %v2978
        %v3219 = vpack.c.b16 %v2995, %v2979
        %v3220 = vpack.c.b16 %v2996, %v2980
        %v3221 = vpack.c.b16 %v2997, %v2981
        %v3222 = vpack.c.b16 %v2998, %v2982
        %v3223 = vpack.c.b16 %v2999, %v2983
        %v3224 = vpack.c.b16 %v3000, %v2984
        %v3225 = vpack.c.b16 %v3001, %v2985
        %v3226 = vpack.c.b16 %v3002, %v2986
        %v3227 = vpack.c.b16 %v3003, %v2987
        %v3228 = vpack.c.b16 %v3004, %v2988
        %v3229 = vpack.c.b16 %v3005, %v2989
        %v3230 = vpack.c.b16 %v3022, %v3006
        %v3231 = vpack.c.b16 %v3023, %v3007
        %v3232 = vpack.c.b16 %v3024, %v3008
        %v3233 = vpack.c.b16 %v3025, %v3009
        %v3234 = vpack.c.b16 %v3026, %v3010
        %v3235 = vpack.c.b16 %v3027, %v3011
        %v3236 = vpack.c.b16 %v3028, %v3012
        %v3237 = vpack.c.b16 %v3029, %v3013
        %v3238 = vpack.c.b16 %v3030, %v3014
        %v3239 = vpack.c.b16 %v3031, %v3015
        %v3240 = vpack.c.b16 %v3032, %v3016
        %v3241 = vpack.c.b16 %v3033, %v3017
        %v3242 = vpack.c.b16 %v3034, %v3018
        %v3243 = vpack.c.b16 %v3035, %v3019
        %v3244 = vpack.c.b16 %v3036, %v3020
        %v3245 = vpack.c.b16 %v3037, %v3021
        %v3246 = vpack.c.b16 %v3054, %v3038
        %v3247 = vpack.c.b16 %v3055, %v3039
        %v3248 = vpack.c.b16 %v3056, %v3040
        %v3249 = vpack.c.b16 %v3057, %v3041
        %v3250 = vpack.c.b16 %v3058, %v3042
        %v3251 = vpack.c.b16 %v3059, %v3043
        %v3252 = vpack.c.b16 %v3060, %v3044
        %v3253 = vpack.c.b16 %v3061, %v3045
        %v3254 = vpack.c.b16 %v3062, %v3046
        %v3255 = vpack.c.b16 %v3063, %v3047
        %v3256 = vpack.c.b16 %v3064, %v3048
        %v3257 = vpack.c.b16 %v3065, %v3049
        %v3258 = vpack.c.b16 %v3066, %v3050
        %v3259 = vpack.c.b16 %v3067, %v3051
        %v3260 = vpack.c.b16 %v3068, %v3052
        %v3261 = vpack.c.b16 %v3069, %v3053
        %v3262 = vpack.c.b16 %v3086, %v3070
        %v3263 = vpack.c.b16 %v3087, %v3071
        %v3264 = vpack.c.b16 %v3088, %v3072
        %v3265 = vpack.c.b16 %v3089, %v3073
        %v3266 = vpack.c.b16 %v3090, %v3074
        %v3267 = vpack.c.b16 %v3091, %v3075
        %v3268 = vpack.c.b16 %v3092, %v3076
        %v3269 = vpack.c.b16 %v3093, %v3077
        %v3270 = vpack.c.b16 %v3094, %v3078
        %v3271 = vpack.c.b16 %v3095, %v3079
        %v3272 = vpack.c.b16 %v3096, %v3080
        %v3273 = vpack.c.b16 %v3097, %v3081
        %v3274 = vpack.c.b16 %v3098, %v3082
        %v3275 = vpack.c.b16 %v3099, %v3083
        %v3276 = vpack.c.b16 %v3100, %v3084
        %v3277 = vpack.c.b16 %v3101, %v3085
        %v3278 = vpack.c.b16 %v3118, %v3102
        %v3279 = vpack.c.b16 %v3119, %v3103
        %v3280 = vpack.c.b16 %v3120, %v3104
        %v3281 = vpack.c.b16 %v3121, %v3105
        %v3282 = vpack.c.b16 %v3122, %v3106
        %v3283 = vpack.c.b16 %v3123, %v3107
        %v3284 = vpack.c.b16 %v3124, %v3108
        %v3285 = vpack.c.b16 %v3125, %v3109
        %v3286 = vpack.c.b16 %v3126, %v3110
        %v3287 = vpack.c.b16 %v3127, %v3111
        %v3288 = vpack.c.b16 %v3128, %v3112
        %v3289 = vpack.c.b16 %v3129, %v3113
        %v3290 = vpack.c.b16 %v3130, %v3114
        %v3291 = vpack.c.b16 %v3131, %v3115
        %v3292 = vpack.c.b16 %v3132, %v3116
        %v3293 = vpack.c.b16 %v3133, %v3117
        %v3294 = vpack.c.b16 %v3150, %v3134
        %v3295 = vpack.c.b16 %v3151, %v3135
        %v3296 = vpack.c.b16 %v3152, %v3136
        %v3297 = vpack.c.b16 %v3153, %v3137
        %v3298 = vpack.c.b16 %v3154, %v3138
        %v3299 = vpack.c.b16 %v3155, %v3139
        %v3300 = vpack.c.b16 %v3156, %v3140
        %v3301 = vpack.c.b16 %v3157, %v3141
        %v3302 = vpack.c.b16 %v3158, %v3142
        %v3303 = vpack.c.b16 %v3159, %v3143
        %v3304 = vpack.c.b16 %v3160, %v3144
        %v3305 = vpack.c.b16 %v3161, %v3145
        %v3306 = vpack.c.b16 %v3162, %v3146
        %v3307 = vpack.c.b16 %v3163, %v3147
        %v3308 = vpack.c.b16 %v3164, %v3148
        %v3309 = vpack.c.b16 %v3165, %v3149
        %v3310 = vpack.c.b16 %v3182, %v3166
        %v3311 = vpack.c.b16 %v3183, %v3167
        %v3312 = vpack.c.b16 %v3184, %v3168
        %v3313 = vpack.c.b16 %v3185, %v3169
        %v3314 = vpack.c.b16 %v3186, %v3170
        %v3315 = vpack.c.b16 %v3187, %v3171
        %v3316 = vpack.c.b16 %v3188, %v3172
        %v3317 = vpack.c.b16 %v3189, %v3173
        %v3318 = vpack.c.b16 %v3190, %v3174
        %v3319 = vpack.c.b16 %v3191, %v3175
        %v3320 = vpack.c.b16 %v3192, %v3176
        %v3321 = vpack.c.b16 %v3193, %v3177
        %v3322 = vpack.c.b16 %v3194, %v3178
        %v3323 = vpack.c.b16 %v3195, %v3179
        %v3324 = vpack.c.b16 %v3196, %v3180
        %v3325 = vpack.c.b16 %v3197, %v3181
        %3454 = vmatprep.subr.bf16.mxu0 0
        %3455 = vmatpush1.bf16.msra.mxu0 %v2558
        %3456 = vmatprep.subr.bf16.mxu0 0
        %3457 = vmatpush1.bf16.msra.mxu0 %v2559
        %3458 = vmatprep.subr.bf16.mxu0 0
        %3459 = vmatpush1.bf16.msra.mxu0 %v2560
        %3460 = vmatprep.subr.bf16.mxu0 0
        %3461 = vmatpush1.bf16.msra.mxu0 %v2561
        %3462 = vmatprep.subr.bf16.mxu0 0
        %3463 = vmatpush1.bf16.msra.mxu0 %v2562
        %3464 = vmatprep.subr.bf16.mxu0 0
        %3465 = vmatpush1.bf16.msra.mxu0 %v2563
        %3466 = vmatprep.subr.bf16.mxu0 0
        %3467 = vmatpush1.bf16.msra.mxu0 %v2564
        %3468 = vmatprep.subr.bf16.mxu0 0
        %3469 = vmatpush1.bf16.msra.mxu0 %v2565
        %3470 = vmatprep.subr.bf16.mxu0 0
        %3471 = vmatpush1.bf16.msra.mxu0 %v2566
        %3472 = vmatprep.subr.bf16.mxu0 0
        %3473 = vmatpush1.bf16.msra.mxu0 %v2567
        %3474 = vmatprep.subr.bf16.mxu0 0
        %3475 = vmatpush1.bf16.msra.mxu0 %v2568
        %3476 = vmatprep.subr.bf16.mxu0 0
        %3477 = vmatpush1.bf16.msra.mxu0 %v2569
        %3478 = vmatprep.subr.bf16.mxu0 0
        %3479 = vmatpush1.bf16.msra.mxu0 %v2570
        %3480 = vmatprep.subr.bf16.mxu0 0
        %3481 = vmatpush1.bf16.msra.mxu0 %v2571
        %3482 = vmatprep.subr.bf16.mxu0 0
        %3483 = vmatpush1.bf16.msra.mxu0 %v2572
        %3484 = vmatprep.subr.bf16.mxu0 0
        %3485 = vmatpush1.bf16.msra.mxu0 %v2573
        %3486 = vmatprep.mubr.bf16.mxu0 %v3199
        %3487 = vmatmul.mubr.bf16.gmra.mrb[0].mxu0 %v3198
        %v3488 = vpop.f32.mrb[0].mxu0
        %v3489 = vadd.f32 0.0, %v3488
        %v3490 = vpop.f32.mrb[0].mxu0
        %v3491 = vpop.f32.mrb[0].mxu0
        %v3492 = vadd.f32 0.0, %v3491
        %v3493 = vpop.f32.mrb[0].mxu0
        %3494 = vmatprep.mubr.bf16.mxu0 %v3215
        %3495 = vmatmul.mubr.bf16.gmra.mrb[0].mxu0 %v3214
        %v3496 = vpop.f32.mrb[0].mxu0
        %v3497 = vadd.f32 0.0, %v3496
        %v3498 = vpop.f32.mrb[0].mxu0
        %v3499 = vpop.f32.mrb[0].mxu0
        %v3500 = vadd.f32 0.0, %v3499
        %v3501 = vpop.f32.mrb[0].mxu0
        %3502 = vmatprep.mubr.bf16.mxu0 %v3231
        %3503 = vmatmul.mubr.bf16.gmra.mrb[0].mxu0 %v3230
        %v3504 = vpop.f32.mrb[0].mxu0
        %v3505 = vadd.f32 0.0, %v3504
        %v3506 = vpop.f32.mrb[0].mxu0
        %v3507 = vpop.f32.mrb[0].mxu0
        %v3508 = vadd.f32 0.0, %v3507
        %v3509 = vpop.f32.mrb[0].mxu0
        %3510 = vmatprep.mubr.bf16.mxu0 %v3247
        %3511 = vmatmul.mubr.bf16.gmra.mrb[0].mxu0 %v3246
        %v3512 = vpop.f32.mrb[0].mxu0
        %v3513 = vadd.f32 0.0, %v3512
        %v3514 = vpop.f32.mrb[0].mxu0
        %v3515 = vpop.f32.mrb[0].mxu0
        %v3516 = vadd.f32 0.0, %v3515
        %v3517 = vpop.f32.mrb[0].mxu0
        %3518 = vmatprep.mubr.bf16.mxu0 %v3263
        %3519 = vmatmul.mubr.bf16.gmra.mrb[0].mxu0 %v3262
        %v3520 = vpop.f32.mrb[0].mxu0
        %v3521 = vadd.f32 0.0, %v3520
        %v3522 = vpop.f32.mrb[0].mxu0
        %v3523 = vpop.f32.mrb[0].mxu0
        %v3524 = vadd.f32 0.0, %v3523
        %v3525 = vpop.f32.mrb[0].mxu0
        %3526 = vmatprep.mubr.bf16.mxu0 %v3279
        %3527 = vmatmul.mubr.bf16.gmra.mrb[0].mxu0 %v3278
        %v3528 = vpop.f32.mrb[0].mxu0
        %v3529 = vadd.f32 0.0, %v3528
        %v3530 = vpop.f32.mrb[0].mxu0
        %v3531 = vpop.f32.mrb[0].mxu0
        %v3532 = vadd.f32 0.0, %v3531
        %v3533 = vpop.f32.mrb[0].mxu0
        %3534 = vmatprep.mubr.bf16.mxu0 %v3295
        %3535 = vmatmul.mubr.bf16.gmra.mrb[0].mxu0 %v3294
        %v3536 = vpop.f32.mrb[0].mxu0
        %v3537 = vadd.f32 0.0, %v3536
        %v3538 = vpop.f32.mrb[0].mxu0
        %v3539 = vpop.f32.mrb[0].mxu0
        %v3540 = vadd.f32 0.0, %v3539
        %v3541 = vpop.f32.mrb[0].mxu0
        %3542 = vmatprep.mubr.bf16.mxu0 %v3311
        %3543 = vmatmul.mubr.bf16.gmra.mrb[0].mxu0 %v3310
        %v3544 = vpop.f32.mrb[0].mxu0
        %v3545 = vadd.f32 0.0, %v3544
        %v3546 = vpop.f32.mrb[0].mxu0
        %v3547 = vpop.f32.mrb[0].mxu0
        %v3548 = vadd.f32 0.0, %v3547
        %v3549 = vpop.f32.mrb[0].mxu0
        %3550 = vdwg.mxu0
        %3551 = vmatprep.subr.bf16.mxu0 0
        %3552 = vmatpush1.bf16.msra.mxu0 %v2574
        %3553 = vmatprep.subr.bf16.mxu0 0
        %3554 = vmatpush1.bf16.msra.mxu0 %v2575
        %3555 = vmatprep.subr.bf16.mxu0 0
        %3556 = vmatpush1.bf16.msra.mxu0 %v2576
        %3557 = vmatprep.subr.bf16.mxu0 0
        %3558 = vmatpush1.bf16.msra.mxu0 %v2577
        %3559 = vmatprep.subr.bf16.mxu0 0
        %3560 = vmatpush1.bf16.msra.mxu0 %v2578
        %3561 = vmatprep.subr.bf16.mxu0 0
        %3562 = vmatpush1.bf16.msra.mxu0 %v2579
        %3563 = vmatprep.subr.bf16.mxu0 0
        %3564 = vmatpush1.bf16.msra.mxu0 %v2580
        %3565 = vmatprep.subr.bf16.mxu0 0
        %3566 = vmatpush1.bf16.msra.mxu0 %v2581
        %3567 = vmatprep.subr.bf16.mxu0 0
        %3568 = vmatpush1.bf16.msra.mxu0 %v2582
        %3569 = vmatprep.subr.bf16.mxu0 0
        %3570 = vmatpush1.bf16.msra.mxu0 %v2583
        %3571 = vmatprep.subr.bf16.mxu0 0
        %3572 = vmatpush1.bf16.msra.mxu0 %v2584
        %3573 = vmatprep.subr.bf16.mxu0 0
        %3574 = vmatpush1.bf16.msra.mxu0 %v2585
        %3575 = vmatprep.subr.bf16.mxu0 0
        %3576 = vmatpush1.bf16.msra.mxu0 %v2586
        %3577 = vmatprep.subr.bf16.mxu0 0
        %3578 = vmatpush1.bf16.msra.mxu0 %v2587
        %3579 = vmatprep.subr.bf16.mxu0 0
        %3580 = vmatpush1.bf16.msra.mxu0 %v2588
        %3581 = vmatprep.subr.bf16.mxu0 0
        %3582 = vmatpush1.bf16.msra.mxu0 %v2589
        %3583 = vmatprep.mubr.bf16.mxu0 %v3201
        %3584 = vmatmul.mubr.bf16.gmra.mrb[0].mxu0 %v3200
        %v3585 = vpop.f32.mrb[0].mxu0
        %v3586 = vadd.f32 %v3489, %v3585
        %v3587 = vpop.f32.mrb[0].mxu0
        %v3588 = vpop.f32.mrb[0].mxu0
        %v3589 = vadd.f32 %v3492, %v3588
        %v3590 = vpop.f32.mrb[0].mxu0
        %3591 = vmatprep.mubr.bf16.mxu0 %v3217
        %3592 = vmatmul.mubr.bf16.gmra.mrb[0].mxu0 %v3216
        %v3593 = vpop.f32.mrb[0].mxu0
        %v3594 = vadd.f32 %v3497, %v3593
        %v3595 = vpop.f32.mrb[0].mxu0
        %v3596 = vpop.f32.mrb[0].mxu0
        %v3597 = vadd.f32 %v3500, %v3596
        %v3598 = vpop.f32.mrb[0].mxu0
        %3599 = vmatprep.mubr.bf16.mxu0 %v3233
        %3600 = vmatmul.mubr.bf16.gmra.mrb[0].mxu0 %v3232
        %v3601 = vpop.f32.mrb[0].mxu0
        %v3602 = vadd.f32 %v3505, %v3601
        %v3603 = vpop.f32.mrb[0].mxu0
        %v3604 = vpop.f32.mrb[0].mxu0
        %v3605 = vadd.f32 %v3508, %v3604
        %v3606 = vpop.f32.mrb[0].mxu0
        %3607 = vmatprep.mubr.bf16.mxu0 %v3249
        %3608 = vmatmul.mubr.bf16.gmra.mrb[0].mxu0 %v3248
        %v3609 = vpop.f32.mrb[0].mxu0
        %v3610 = vadd.f32 %v3513, %v3609
        %v3611 = vpop.f32.mrb[0].mxu0
        %v3612 = vpop.f32.mrb[0].mxu0
        %v3613 = vadd.f32 %v3516, %v3612
        %v3614 = vpop.f32.mrb[0].mxu0
        %3615 = vmatprep.mubr.bf16.mxu0 %v3265
        %3616 = vmatmul.mubr.bf16.gmra.mrb[0].mxu0 %v3264
        %v3617 = vpop.f32.mrb[0].mxu0
        %v3618 = vadd.f32 %v3521, %v3617
        %v3619 = vpop.f32.mrb[0].mxu0
        %v3620 = vpop.f32.mrb[0].mxu0
        %v3621 = vadd.f32 %v3524, %v3620
        %v3622 = vpop.f32.mrb[0].mxu0
        %3623 = vmatprep.mubr.bf16.mxu0 %v3281
        %3624 = vmatmul.mubr.bf16.gmra.mrb[0].mxu0 %v3280
        %v3625 = vpop.f32.mrb[0].mxu0
        %v3626 = vadd.f32 %v3529, %v3625
        %v3627 = vpop.f32.mrb[0].mxu0
        %v3628 = vpop.f32.mrb[0].mxu0
        %v3629 = vadd.f32 %v3532, %v3628
        %v3630 = vpop.f32.mrb[0].mxu0
        %3631 = vmatprep.mubr.bf16.mxu0 %v3297
        %3632 = vmatmul.mubr.bf16.gmra.mrb[0].mxu0 %v3296
        %v3633 = vpop.f32.mrb[0].mxu0
        %v3634 = vadd.f32 %v3537, %v3633
        %v3635 = vpop.f32.mrb[0].mxu0
        %v3636 = vpop.f32.mrb[0].mxu0
        %v3637 = vadd.f32 %v3540, %v3636
        %v3638 = vpop.f32.mrb[0].mxu0
        %3639 = vmatprep.mubr.bf16.mxu0 %v3313
        %3640 = vmatmul.mubr.bf16.gmra.mrb[0].mxu0 %v3312
        %v3641 = vpop.f32.mrb[0].mxu0
        %v3642 = vadd.f32 %v3545, %v3641
        %v3643 = vpop.f32.mrb[0].mxu0
        %v3644 = vpop.f32.mrb[0].mxu0
        %v3645 = vadd.f32 %v3548, %v3644
        %v3646 = vpop.f32.mrb[0].mxu0
        %3647 = vdwg.mxu0
        %3648 = vmatprep.subr.bf16.mxu0 0
        %3649 = vmatpush1.bf16.msra.mxu0 %v2590
        %3650 = vmatprep.subr.bf16.mxu0 0
        %3651 = vmatpush1.bf16.msra.mxu0 %v2591
        %3652 = vmatprep.subr.bf16.mxu0 0
        %3653 = vmatpush1.bf16.msra.mxu0 %v2592
        %3654 = vmatprep.subr.bf16.mxu0 0
        %3655 = vmatpush1.bf16.msra.mxu0 %v2593
        %3656 = vmatprep.subr.bf16.mxu0 0
        %3657 = vmatpush1.bf16.msra.mxu0 %v2594
        %3658 = vmatprep.subr.bf16.mxu0 0
        %3659 = vmatpush1.bf16.msra.mxu0 %v2595
        %3660 = vmatprep.subr.bf16.mxu0 0
        %3661 = vmatpush1.bf16.msra.mxu0 %v2596
        %3662 = vmatprep.subr.bf16.mxu0 0
        %3663 = vmatpush1.bf16.msra.mxu0 %v2597
        %3664 = vmatprep.subr.bf16.mxu0 0
        %3665 = vmatpush1.bf16.msra.mxu0 %v2598
        %3666 = vmatprep.subr.bf16.mxu0 0
        %3667 = vmatpush1.bf16.msra.mxu0 %v2599
        %3668 = vmatprep.subr.bf16.mxu0 0
        %3669 = vmatpush1.bf16.msra.mxu0 %v2600
        %3670 = vmatprep.subr.bf16.mxu0 0
        %3671 = vmatpush1.bf16.msra.mxu0 %v2601
        %3672 = vmatprep.subr.bf16.mxu0 0
        %3673 = vmatpush1.bf16.msra.mxu0 %v2602
        %3674 = vmatprep.subr.bf16.mxu0 0
        %3675 = vmatpush1.bf16.msra.mxu0 %v2603
        %3676 = vmatprep.subr.bf16.mxu0 0
        %3677 = vmatpush1.bf16.msra.mxu0 %v2604
        %3678 = vmatprep.subr.bf16.mxu0 0
        %3679 = vmatpush1.bf16.msra.mxu0 %v2605
        %3680 = vmatprep.mubr.bf16.mxu0 %v3203
        %3681 = vmatmul.mubr.bf16.gmra.mrb[0].mxu0 %v3202
        %v3682 = vpop.f32.mrb[0].mxu0
        %v3683 = vadd.f32 %v3586, %v3682
        %v3684 = vpop.f32.mrb[0].mxu0
        %v3685 = vpop.f32.mrb[0].mxu0
        %v3686 = vadd.f32 %v3589, %v3685
        %v3687 = vpop.f32.mrb[0].mxu0
        %3688 = vmatprep.mubr.bf16.mxu0 %v3219
        %3689 = vmatmul.mubr.bf16.gmra.mrb[0].mxu0 %v3218
        %v3690 = vpop.f32.mrb[0].mxu0
        %v3691 = vadd.f32 %v3594, %v3690
        %v3692 = vpop.f32.mrb[0].mxu0
        %v3693 = vpop.f32.mrb[0].mxu0
        %v3694 = vadd.f32 %v3597, %v3693
        %v3695 = vpop.f32.mrb[0].mxu0
        %3696 = vmatprep.mubr.bf16.mxu0 %v3235
        %3697 = vmatmul.mubr.bf16.gmra.mrb[0].mxu0 %v3234
        %v3698 = vpop.f32.mrb[0].mxu0
        %v3699 = vadd.f32 %v3602, %v3698
        %v3700 = vpop.f32.mrb[0].mxu0
        %v3701 = vpop.f32.mrb[0].mxu0
        %v3702 = vadd.f32 %v3605, %v3701
        %v3703 = vpop.f32.mrb[0].mxu0
        %3704 = vmatprep.mubr.bf16.mxu0 %v3251
        %3705 = vmatmul.mubr.bf16.gmra.mrb[0].mxu0 %v3250
        %v3706 = vpop.f32.mrb[0].mxu0
        %v3707 = vadd.f32 %v3610, %v3706
        %v3708 = vpop.f32.mrb[0].mxu0
        %v3709 = vpop.f32.mrb[0].mxu0
        %v3710 = vadd.f32 %v3613, %v3709
        %v3711 = vpop.f32.mrb[0].mxu0
        %3712 = vmatprep.mubr.bf16.mxu0 %v3267
        %3713 = vmatmul.mubr.bf16.gmra.mrb[0].mxu0 %v3266
        %v3714 = vpop.f32.mrb[0].mxu0
        %v3715 = vadd.f32 %v3618, %v3714
        %v3716 = vpop.f32.mrb[0].mxu0
        %v3717 = vpop.f32.mrb[0].mxu0
        %v3718 = vadd.f32 %v3621, %v3717
        %v3719 = vpop.f32.mrb[0].mxu0
        %3720 = vmatprep.mubr.bf16.mxu0 %v3283
        %3721 = vmatmul.mubr.bf16.gmra.mrb[0].mxu0 %v3282
        %v3722 = vpop.f32.mrb[0].mxu0
        %v3723 = vadd.f32 %v3626, %v3722
        %v3724 = vpop.f32.mrb[0].mxu0
        %v3725 = vpop.f32.mrb[0].mxu0
        %v3726 = vadd.f32 %v3629, %v3725
        %v3727 = vpop.f32.mrb[0].mxu0
        %3728 = vmatprep.mubr.bf16.mxu0 %v3299
        %3729 = vmatmul.mubr.bf16.gmra.mrb[0].mxu0 %v3298
        %v3730 = vpop.f32.mrb[0].mxu0
        %v3731 = vadd.f32 %v3634, %v3730
        %v3732 = vpop.f32.mrb[0].mxu0
        %v3733 = vpop.f32.mrb[0].mxu0
        %v3734 = vadd.f32 %v3637, %v3733
        %v3735 = vpop.f32.mrb[0].mxu0
        %3736 = vmatprep.mubr.bf16.mxu0 %v3315
        %3737 = vmatmul.mubr.bf16.gmra.mrb[0].mxu0 %v3314
        %v3738 = vpop.f32.mrb[0].mxu0
        %v3739 = vadd.f32 %v3642, %v3738
        %v3740 = vpop.f32.mrb[0].mxu0
        %v3741 = vpop.f32.mrb[0].mxu0
        %v3742 = vadd.f32 %v3645, %v3741
        %v3743 = vpop.f32.mrb[0].mxu0
        %3744 = vdwg.mxu0
        %3745 = vmatprep.subr.bf16.mxu0 0
        %3746 = vmatpush1.bf16.msra.mxu0 %v2606
        %3747 = vmatprep.subr.bf16.mxu0 0
        %3748 = vmatpush1.bf16.msra.mxu0 %v2607
        %3749 = vmatprep.subr.bf16.mxu0 0
        %3750 = vmatpush1.bf16.msra.mxu0 %v2608
        %3751 = vmatprep.subr.bf16.mxu0 0
        %3752 = vmatpush1.bf16.msra.mxu0 %v2609
        %3753 = vmatprep.subr.bf16.mxu0 0
        %3754 = vmatpush1.bf16.msra.mxu0 %v2610
        %3755 = vmatprep.subr.bf16.mxu0 0
        %3756 = vmatpush1.bf16.msra.mxu0 %v2611
        %3757 = vmatprep.subr.bf16.mxu0 0
        %3758 = vmatpush1.bf16.msra.mxu0 %v2612
        %3759 = vmatprep.subr.bf16.mxu0 0
        %3760 = vmatpush1.bf16.msra.mxu0 %v2613
        %3761 = vmatprep.subr.bf16.mxu0 0
        %3762 = vmatpush1.bf16.msra.mxu0 %v2614
        %3763 = vmatprep.subr.bf16.mxu0 0
        %3764 = vmatpush1.bf16.msra.mxu0 %v2615
        %3765 = vmatprep.subr.bf16.mxu0 0
        %3766 = vmatpush1.bf16.msra.mxu0 %v2616
        %3767 = vmatprep.subr.bf16.mxu0 0
        %3768 = vmatpush1.bf16.msra.mxu0 %v2617
        %3769 = vmatprep.subr.bf16.mxu0 0
        %3770 = vmatpush1.bf16.msra.mxu0 %v2618
        %3771 = vmatprep.subr.bf16.mxu0 0
        %3772 = vmatpush1.bf16.msra.mxu0 %v2619
        %3773 = vmatprep.subr.bf16.mxu0 0
        %3774 = vmatpush1.bf16.msra.mxu0 %v2620
        %3775 = vmatprep.subr.bf16.mxu0 0
        %3776 = vmatpush1.bf16.msra.mxu0 %v2621
        %3777 = vmatprep.mubr.bf16.mxu0 %v3205
        %3778 = vmatmul.mubr.bf16.gmra.mrb[0].mxu0 %v3204
        %v3779 = vpop.f32.mrb[0].mxu0
        %v3780 = vadd.f32 %v3683, %v3779
        %v3781 = vpop.f32.mrb[0].mxu0
        %v3782 = vpop.f32.mrb[0].mxu0
        %v3783 = vadd.f32 %v3686, %v3782
        %v3784 = vpop.f32.mrb[0].mxu0
        %3785 = vmatprep.mubr.bf16.mxu0 %v3221
        %3786 = vmatmul.mubr.bf16.gmra.mrb[0].mxu0 %v3220
        %v3787 = vpop.f32.mrb[0].mxu0
        %v3788 = vadd.f32 %v3691, %v3787
        %v3789 = vpop.f32.mrb[0].mxu0
        %v3790 = vpop.f32.mrb[0].mxu0
        %v3791 = vadd.f32 %v3694, %v3790
        %v3792 = vpop.f32.mrb[0].mxu0
        %3793 = vmatprep.mubr.bf16.mxu0 %v3237
        %3794 = vmatmul.mubr.bf16.gmra.mrb[0].mxu0 %v3236
        %v3795 = vpop.f32.mrb[0].mxu0
        %v3796 = vadd.f32 %v3699, %v3795
        %v3797 = vpop.f32.mrb[0].mxu0
        %v3798 = vpop.f32.mrb[0].mxu0
        %v3799 = vadd.f32 %v3702, %v3798
        %v3800 = vpop.f32.mrb[0].mxu0
        %3801 = vmatprep.mubr.bf16.mxu0 %v3253
        %3802 = vmatmul.mubr.bf16.gmra.mrb[0].mxu0 %v3252
        %v3803 = vpop.f32.mrb[0].mxu0
        %v3804 = vadd.f32 %v3707, %v3803
        %v3805 = vpop.f32.mrb[0].mxu0
        %v3806 = vpop.f32.mrb[0].mxu0
        %v3807 = vadd.f32 %v3710, %v3806
        %v3808 = vpop.f32.mrb[0].mxu0
        %3809 = vmatprep.mubr.bf16.mxu0 %v3269
        %3810 = vmatmul.mubr.bf16.gmra.mrb[0].mxu0 %v3268
        %v3811 = vpop.f32.mrb[0].mxu0
        %v3812 = vadd.f32 %v3715, %v3811
        %v3813 = vpop.f32.mrb[0].mxu0
        %v3814 = vpop.f32.mrb[0].mxu0
        %v3815 = vadd.f32 %v3718, %v3814
        %v3816 = vpop.f32.mrb[0].mxu0
        %3817 = vmatprep.mubr.bf16.mxu0 %v3285
        %3818 = vmatmul.mubr.bf16.gmra.mrb[0].mxu0 %v3284
        %v3819 = vpop.f32.mrb[0].mxu0
        %v3820 = vadd.f32 %v3723, %v3819
        %v3821 = vpop.f32.mrb[0].mxu0
        %v3822 = vpop.f32.mrb[0].mxu0
        %v3823 = vadd.f32 %v3726, %v3822
        %v3824 = vpop.f32.mrb[0].mxu0
        %3825 = vmatprep.mubr.bf16.mxu0 %v3301
        %3826 = vmatmul.mubr.bf16.gmra.mrb[0].mxu0 %v3300
        %v3827 = vpop.f32.mrb[0].mxu0
        %v3828 = vadd.f32 %v3731, %v3827
        %v3829 = vpop.f32.mrb[0].mxu0
        %v3830 = vpop.f32.mrb[0].mxu0
        %v3831 = vadd.f32 %v3734, %v3830
        %v3832 = vpop.f32.mrb[0].mxu0
        %3833 = vmatprep.mubr.bf16.mxu0 %v3317
        %3834 = vmatmul.mubr.bf16.gmra.mrb[0].mxu0 %v3316
        %v3835 = vpop.f32.mrb[0].mxu0
        %v3836 = vadd.f32 %v3739, %v3835
        %v3837 = vpop.f32.mrb[0].mxu0
        %v3838 = vpop.f32.mrb[0].mxu0
        %v3839 = vadd.f32 %v3742, %v3838
        %v3840 = vpop.f32.mrb[0].mxu0
        %3841 = vdwg.mxu0
        %3842 = vmatprep.subr.bf16.mxu0 0
        %3843 = vmatpush1.bf16.msra.mxu0 %v2622
        %3844 = vmatprep.subr.bf16.mxu0 0
        %3845 = vmatpush1.bf16.msra.mxu0 %v2623
        %3846 = vmatprep.subr.bf16.mxu0 0
        %3847 = vmatpush1.bf16.msra.mxu0 %v2624
        %3848 = vmatprep.subr.bf16.mxu0 0
        %3849 = vmatpush1.bf16.msra.mxu0 %v2625
        %3850 = vmatprep.subr.bf16.mxu0 0
        %3851 = vmatpush1.bf16.msra.mxu0 %v2626
        %3852 = vmatprep.subr.bf16.mxu0 0
        %3853 = vmatpush1.bf16.msra.mxu0 %v2627
        %3854 = vmatprep.subr.bf16.mxu0 0
        %3855 = vmatpush1.bf16.msra.mxu0 %v2628
        %3856 = vmatprep.subr.bf16.mxu0 0
        %3857 = vmatpush1.bf16.msra.mxu0 %v2629
        %3858 = vmatprep.subr.bf16.mxu0 0
        %3859 = vmatpush1.bf16.msra.mxu0 %v2630
        %3860 = vmatprep.subr.bf16.mxu0 0
        %3861 = vmatpush1.bf16.msra.mxu0 %v2631
        %3862 = vmatprep.subr.bf16.mxu0 0
        %3863 = vmatpush1.bf16.msra.mxu0 %v2632
        %3864 = vmatprep.subr.bf16.mxu0 0
        %3865 = vmatpush1.bf16.msra.mxu0 %v2633
        %3866 = vmatprep.subr.bf16.mxu0 0
        %3867 = vmatpush1.bf16.msra.mxu0 %v2634
        %3868 = vmatprep.subr.bf16.mxu0 0
        %3869 = vmatpush1.bf16.msra.mxu0 %v2635
        %3870 = vmatprep.subr.bf16.mxu0 0
        %3871 = vmatpush1.bf16.msra.mxu0 %v2636
        %3872 = vmatprep.subr.bf16.mxu0 0
        %3873 = vmatpush1.bf16.msra.mxu0 %v2637
        %3874 = vmatprep.mubr.bf16.mxu0 %v3207
        %3875 = vmatmul.mubr.bf16.gmra.mrb[0].mxu0 %v3206
        %v3876 = vpop.f32.mrb[0].mxu0
        %v3877 = vadd.f32 %v3780, %v3876
        %v3878 = vpop.f32.mrb[0].mxu0
        %v3879 = vpop.f32.mrb[0].mxu0
        %v3880 = vadd.f32 %v3783, %v3879
        %v3881 = vpop.f32.mrb[0].mxu0
        %3882 = vmatprep.mubr.bf16.mxu0 %v3223
        %3883 = vmatmul.mubr.bf16.gmra.mrb[0].mxu0 %v3222
        %v3884 = vpop.f32.mrb[0].mxu0
        %v3885 = vadd.f32 %v3788, %v3884
        %v3886 = vpop.f32.mrb[0].mxu0
        %v3887 = vpop.f32.mrb[0].mxu0
        %v3888 = vadd.f32 %v3791, %v3887
        %v3889 = vpop.f32.mrb[0].mxu0
        %3890 = vmatprep.mubr.bf16.mxu0 %v3239
        %3891 = vmatmul.mubr.bf16.gmra.mrb[0].mxu0 %v3238
        %v3892 = vpop.f32.mrb[0].mxu0
        %v3893 = vadd.f32 %v3796, %v3892
        %v3894 = vpop.f32.mrb[0].mxu0
        %v3895 = vpop.f32.mrb[0].mxu0
        %v3896 = vadd.f32 %v3799, %v3895
        %v3897 = vpop.f32.mrb[0].mxu0
        %3898 = vmatprep.mubr.bf16.mxu0 %v3255
        %3899 = vmatmul.mubr.bf16.gmra.mrb[0].mxu0 %v3254
        %v3900 = vpop.f32.mrb[0].mxu0
        %v3901 = vadd.f32 %v3804, %v3900
        %v3902 = vpop.f32.mrb[0].mxu0
        %v3903 = vpop.f32.mrb[0].mxu0
        %v3904 = vadd.f32 %v3807, %v3903
        %v3905 = vpop.f32.mrb[0].mxu0
        %3906 = vmatprep.mubr.bf16.mxu0 %v3271
        %3907 = vmatmul.mubr.bf16.gmra.mrb[0].mxu0 %v3270
        %v3908 = vpop.f32.mrb[0].mxu0
        %v3909 = vadd.f32 %v3812, %v3908
        %v3910 = vpop.f32.mrb[0].mxu0
        %v3911 = vpop.f32.mrb[0].mxu0
        %v3912 = vadd.f32 %v3815, %v3911
        %v3913 = vpop.f32.mrb[0].mxu0
        %3914 = vmatprep.mubr.bf16.mxu0 %v3287
        %3915 = vmatmul.mubr.bf16.gmra.mrb[0].mxu0 %v3286
        %v3916 = vpop.f32.mrb[0].mxu0
        %v3917 = vadd.f32 %v3820, %v3916
        %v3918 = vpop.f32.mrb[0].mxu0
        %v3919 = vpop.f32.mrb[0].mxu0
        %v3920 = vadd.f32 %v3823, %v3919
        %v3921 = vpop.f32.mrb[0].mxu0
        %3922 = vmatprep.mubr.bf16.mxu0 %v3303
        %3923 = vmatmul.mubr.bf16.gmra.mrb[0].mxu0 %v3302
        %v3924 = vpop.f32.mrb[0].mxu0
        %v3925 = vadd.f32 %v3828, %v3924
        %v3926 = vpop.f32.mrb[0].mxu0
        %v3927 = vpop.f32.mrb[0].mxu0
        %v3928 = vadd.f32 %v3831, %v3927
        %v3929 = vpop.f32.mrb[0].mxu0
        %3930 = vmatprep.mubr.bf16.mxu0 %v3319
        %3931 = vmatmul.mubr.bf16.gmra.mrb[0].mxu0 %v3318
        %v3932 = vpop.f32.mrb[0].mxu0
        %v3933 = vadd.f32 %v3836, %v3932
        %v3934 = vpop.f32.mrb[0].mxu0
        %v3935 = vpop.f32.mrb[0].mxu0
        %v3936 = vadd.f32 %v3839, %v3935
        %v3937 = vpop.f32.mrb[0].mxu0
        %3938 = vdwg.mxu0
        %3939 = vmatprep.subr.bf16.mxu0 0
        %3940 = vmatpush1.bf16.msra.mxu0 %v2638
        %3941 = vmatprep.subr.bf16.mxu0 0
        %3942 = vmatpush1.bf16.msra.mxu0 %v2639
        %3943 = vmatprep.subr.bf16.mxu0 0
        %3944 = vmatpush1.bf16.msra.mxu0 %v2640
        %3945 = vmatprep.subr.bf16.mxu0 0
        %3946 = vmatpush1.bf16.msra.mxu0 %v2641
        %3947 = vmatprep.subr.bf16.mxu0 0
        %3948 = vmatpush1.bf16.msra.mxu0 %v2642
        %3949 = vmatprep.subr.bf16.mxu0 0
        %3950 = vmatpush1.bf16.msra.mxu0 %v2643
        %3951 = vmatprep.subr.bf16.mxu0 0
        %3952 = vmatpush1.bf16.msra.mxu0 %v2644
        %3953 = vmatprep.subr.bf16.mxu0 0
        %3954 = vmatpush1.bf16.msra.mxu0 %v2645
        %3955 = vmatprep.subr.bf16.mxu0 0
        %3956 = vmatpush1.bf16.msra.mxu0 %v2646
        %3957 = vmatprep.subr.bf16.mxu0 0
        %3958 = vmatpush1.bf16.msra.mxu0 %v2647
        %3959 = vmatprep.subr.bf16.mxu0 0
        %3960 = vmatpush1.bf16.msra.mxu0 %v2648
        %3961 = vmatprep.subr.bf16.mxu0 0
        %3962 = vmatpush1.bf16.msra.mxu0 %v2649
        %3963 = vmatprep.subr.bf16.mxu0 0
        %3964 = vmatpush1.bf16.msra.mxu0 %v2650
        %3965 = vmatprep.subr.bf16.mxu0 0
        %3966 = vmatpush1.bf16.msra.mxu0 %v2651
        %3967 = vmatprep.subr.bf16.mxu0 0
        %3968 = vmatpush1.bf16.msra.mxu0 %v2652
        %3969 = vmatprep.subr.bf16.mxu0 0
        %3970 = vmatpush1.bf16.msra.mxu0 %v2653
        %3971 = vmatprep.mubr.bf16.mxu0 %v3209
        %3972 = vmatmul.mubr.bf16.gmra.mrb[0].mxu0 %v3208
        %v3973 = vpop.f32.mrb[0].mxu0
        %v3974 = vadd.f32 %v3877, %v3973
        %v3975 = vpop.f32.mrb[0].mxu0
        %v3976 = vpop.f32.mrb[0].mxu0
        %v3977 = vadd.f32 %v3880, %v3976
        %v3978 = vpop.f32.mrb[0].mxu0
        %3979 = vmatprep.mubr.bf16.mxu0 %v3225
        %3980 = vmatmul.mubr.bf16.gmra.mrb[0].mxu0 %v3224
        %v3981 = vpop.f32.mrb[0].mxu0
        %v3982 = vadd.f32 %v3885, %v3981
        %v3983 = vpop.f32.mrb[0].mxu0
        %v3984 = vpop.f32.mrb[0].mxu0
        %v3985 = vadd.f32 %v3888, %v3984
        %v3986 = vpop.f32.mrb[0].mxu0
        %3987 = vmatprep.mubr.bf16.mxu0 %v3241
        %3988 = vmatmul.mubr.bf16.gmra.mrb[0].mxu0 %v3240
        %v3989 = vpop.f32.mrb[0].mxu0
        %v3990 = vadd.f32 %v3893, %v3989
        %v3991 = vpop.f32.mrb[0].mxu0
        %v3992 = vpop.f32.mrb[0].mxu0
        %v3993 = vadd.f32 %v3896, %v3992
        %v3994 = vpop.f32.mrb[0].mxu0
        %3995 = vmatprep.mubr.bf16.mxu0 %v3257
        %3996 = vmatmul.mubr.bf16.gmra.mrb[0].mxu0 %v3256
        %v3997 = vpop.f32.mrb[0].mxu0
        %v3998 = vadd.f32 %v3901, %v3997
        %v3999 = vpop.f32.mrb[0].mxu0
        %v4000 = vpop.f32.mrb[0].mxu0
        %v4001 = vadd.f32 %v3904, %v4000
        %v4002 = vpop.f32.mrb[0].mxu0
        %4003 = vmatprep.mubr.bf16.mxu0 %v3273
        %4004 = vmatmul.mubr.bf16.gmra.mrb[0].mxu0 %v3272
        %v4005 = vpop.f32.mrb[0].mxu0
        %v4006 = vadd.f32 %v3909, %v4005
        %v4007 = vpop.f32.mrb[0].mxu0
        %v4008 = vpop.f32.mrb[0].mxu0
        %v4009 = vadd.f32 %v3912, %v4008
        %v4010 = vpop.f32.mrb[0].mxu0
        %4011 = vmatprep.mubr.bf16.mxu0 %v3289
        %4012 = vmatmul.mubr.bf16.gmra.mrb[0].mxu0 %v3288
        %v4013 = vpop.f32.mrb[0].mxu0
        %v4014 = vadd.f32 %v3917, %v4013
        %v4015 = vpop.f32.mrb[0].mxu0
        %v4016 = vpop.f32.mrb[0].mxu0
        %v4017 = vadd.f32 %v3920, %v4016
        %v4018 = vpop.f32.mrb[0].mxu0
        %4019 = vmatprep.mubr.bf16.mxu0 %v3305
        %4020 = vmatmul.mubr.bf16.gmra.mrb[0].mxu0 %v3304
        %v4021 = vpop.f32.mrb[0].mxu0
        %v4022 = vadd.f32 %v3925, %v4021
        %v4023 = vpop.f32.mrb[0].mxu0
        %v4024 = vpop.f32.mrb[0].mxu0
        %v4025 = vadd.f32 %v3928, %v4024
        %v4026 = vpop.f32.mrb[0].mxu0
        %4027 = vmatprep.mubr.bf16.mxu0 %v3321
        %4028 = vmatmul.mubr.bf16.gmra.mrb[0].mxu0 %v3320
        %v4029 = vpop.f32.mrb[0].mxu0
        %v4030 = vadd.f32 %v3933, %v4029
        %v4031 = vpop.f32.mrb[0].mxu0
        %v4032 = vpop.f32.mrb[0].mxu0
        %v4033 = vadd.f32 %v3936, %v4032
        %v4034 = vpop.f32.mrb[0].mxu0
        %4035 = vdwg.mxu0
        %4036 = vmatprep.subr.bf16.mxu0 0
        %4037 = vmatpush1.bf16.msra.mxu0 %v2654
        %4038 = vmatprep.subr.bf16.mxu0 0
        %4039 = vmatpush1.bf16.msra.mxu0 %v2655
        %4040 = vmatprep.subr.bf16.mxu0 0
        %4041 = vmatpush1.bf16.msra.mxu0 %v2656
        %4042 = vmatprep.subr.bf16.mxu0 0
        %4043 = vmatpush1.bf16.msra.mxu0 %v2657
        %4044 = vmatprep.subr.bf16.mxu0 0
        %4045 = vmatpush1.bf16.msra.mxu0 %v2658
        %4046 = vmatprep.subr.bf16.mxu0 0
        %4047 = vmatpush1.bf16.msra.mxu0 %v2659
        %4048 = vmatprep.subr.bf16.mxu0 0
        %4049 = vmatpush1.bf16.msra.mxu0 %v2660
        %4050 = vmatprep.subr.bf16.mxu0 0
        %4051 = vmatpush1.bf16.msra.mxu0 %v2661
        %4052 = vmatprep.subr.bf16.mxu0 0
        %4053 = vmatpush1.bf16.msra.mxu0 %v2662
        %4054 = vmatprep.subr.bf16.mxu0 0
        %4055 = vmatpush1.bf16.msra.mxu0 %v2663
        %4056 = vmatprep.subr.bf16.mxu0 0
        %4057 = vmatpush1.bf16.msra.mxu0 %v2664
        %4058 = vmatprep.subr.bf16.mxu0 0
        %4059 = vmatpush1.bf16.msra.mxu0 %v2665
        %4060 = vmatprep.subr.bf16.mxu0 0
        %4061 = vmatpush1.bf16.msra.mxu0 %v2666
        %4062 = vmatprep.subr.bf16.mxu0 0
        %4063 = vmatpush1.bf16.msra.mxu0 %v2667
        %4064 = vmatprep.subr.bf16.mxu0 0
        %4065 = vmatpush1.bf16.msra.mxu0 %v2668
        %4066 = vmatprep.subr.bf16.mxu0 0
        %4067 = vmatpush1.bf16.msra.mxu0 %v2669
        %4068 = vmatprep.mubr.bf16.mxu0 %v3211
        %4069 = vmatmul.mubr.bf16.gmra.mrb[0].mxu0 %v3210
        %v4070 = vpop.f32.mrb[0].mxu0
        %v4071 = vadd.f32 %v3974, %v4070
        %v4072 = vpop.f32.mrb[0].mxu0
        %v4073 = vpop.f32.mrb[0].mxu0
        %v4074 = vadd.f32 %v3977, %v4073
        %v4075 = vpop.f32.mrb[0].mxu0
        %4076 = vmatprep.mubr.bf16.mxu0 %v3227
        %4077 = vmatmul.mubr.bf16.gmra.mrb[0].mxu0 %v3226
        %v4078 = vpop.f32.mrb[0].mxu0
        %v4079 = vadd.f32 %v3982, %v4078
        %v4080 = vpop.f32.mrb[0].mxu0
        %v4081 = vpop.f32.mrb[0].mxu0
        %v4082 = vadd.f32 %v3985, %v4081
        %v4083 = vpop.f32.mrb[0].mxu0
        %4084 = vmatprep.mubr.bf16.mxu0 %v3243
        %4085 = vmatmul.mubr.bf16.gmra.mrb[0].mxu0 %v3242
        %v4086 = vpop.f32.mrb[0].mxu0
        %v4087 = vadd.f32 %v3990, %v4086
        %v4088 = vpop.f32.mrb[0].mxu0
        %v4089 = vpop.f32.mrb[0].mxu0
        %v4090 = vadd.f32 %v3993, %v4089
        %v4091 = vpop.f32.mrb[0].mxu0
        %4092 = vmatprep.mubr.bf16.mxu0 %v3259
        %4093 = vmatmul.mubr.bf16.gmra.mrb[0].mxu0 %v3258
        %v4094 = vpop.f32.mrb[0].mxu0
        %v4095 = vadd.f32 %v3998, %v4094
        %v4096 = vpop.f32.mrb[0].mxu0
        %v4097 = vpop.f32.mrb[0].mxu0
        %v4098 = vadd.f32 %v4001, %v4097
        %v4099 = vpop.f32.mrb[0].mxu0
        %4100 = vmatprep.mubr.bf16.mxu0 %v3275
        %4101 = vmatmul.mubr.bf16.gmra.mrb[0].mxu0 %v3274
        %v4102 = vpop.f32.mrb[0].mxu0
        %v4103 = vadd.f32 %v4006, %v4102
        %v4104 = vpop.f32.mrb[0].mxu0
        %v4105 = vpop.f32.mrb[0].mxu0
        %v4106 = vadd.f32 %v4009, %v4105
        %v4107 = vpop.f32.mrb[0].mxu0
        %4108 = vmatprep.mubr.bf16.mxu0 %v3291
        %4109 = vmatmul.mubr.bf16.gmra.mrb[0].mxu0 %v3290
        %v4110 = vpop.f32.mrb[0].mxu0
        %v4111 = vadd.f32 %v4014, %v4110
        %v4112 = vpop.f32.mrb[0].mxu0
        %v4113 = vpop.f32.mrb[0].mxu0
        %v4114 = vadd.f32 %v4017, %v4113
        %v4115 = vpop.f32.mrb[0].mxu0
        %4116 = vmatprep.mubr.bf16.mxu0 %v3307
        %4117 = vmatmul.mubr.bf16.gmra.mrb[0].mxu0 %v3306
        %v4118 = vpop.f32.mrb[0].mxu0
        %v4119 = vadd.f32 %v4022, %v4118
        %v4120 = vpop.f32.mrb[0].mxu0
        %v4121 = vpop.f32.mrb[0].mxu0
        %v4122 = vadd.f32 %v4025, %v4121
        %v4123 = vpop.f32.mrb[0].mxu0
        %4124 = vmatprep.mubr.bf16.mxu0 %v3323
        %4125 = vmatmul.mubr.bf16.gmra.mrb[0].mxu0 %v3322
        %v4126 = vpop.f32.mrb[0].mxu0
        %v4127 = vadd.f32 %v4030, %v4126
        %v4128 = vpop.f32.mrb[0].mxu0
        %v4129 = vpop.f32.mrb[0].mxu0
        %v4130 = vadd.f32 %v4033, %v4129
        %v4131 = vpop.f32.mrb[0].mxu0
        %4132 = vdwg.mxu0
        %4133 = vmatprep.subr.bf16.mxu0 0
        %4134 = vmatpush1.bf16.msra.mxu0 %v2670
        %4135 = vmatprep.subr.bf16.mxu0 0
        %4136 = vmatpush1.bf16.msra.mxu0 %v2671
        %4137 = vmatprep.subr.bf16.mxu0 0
        %4138 = vmatpush1.bf16.msra.mxu0 %v2672
        %4139 = vmatprep.subr.bf16.mxu0 0
        %4140 = vmatpush1.bf16.msra.mxu0 %v2673
        %4141 = vmatprep.subr.bf16.mxu0 0
        %4142 = vmatpush1.bf16.msra.mxu0 %v2674
        %4143 = vmatprep.subr.bf16.mxu0 0
        %4144 = vmatpush1.bf16.msra.mxu0 %v2675
        %4145 = vmatprep.subr.bf16.mxu0 0
        %4146 = vmatpush1.bf16.msra.mxu0 %v2676
        %4147 = vmatprep.subr.bf16.mxu0 0
        %4148 = vmatpush1.bf16.msra.mxu0 %v2677
        %4149 = vmatprep.subr.bf16.mxu0 0
        %4150 = vmatpush1.bf16.msra.mxu0 %v2678
        %4151 = vmatprep.subr.bf16.mxu0 0
        %4152 = vmatpush1.bf16.msra.mxu0 %v2679
        %4153 = vmatprep.subr.bf16.mxu0 0
        %4154 = vmatpush1.bf16.msra.mxu0 %v2680
        %4155 = vmatprep.subr.bf16.mxu0 0
        %4156 = vmatpush1.bf16.msra.mxu0 %v2681
        %4157 = vmatprep.subr.bf16.mxu0 0
        %4158 = vmatpush1.bf16.msra.mxu0 %v2682
        %4159 = vmatprep.subr.bf16.mxu0 0
        %4160 = vmatpush1.bf16.msra.mxu0 %v2683
        %4161 = vmatprep.subr.bf16.mxu0 0
        %4162 = vmatpush1.bf16.msra.mxu0 %v2684
        %4163 = vmatprep.subr.bf16.mxu0 0
        %4164 = vmatpush1.bf16.msra.mxu0 %v2685
        %4165 = vmatprep.mubr.bf16.mxu0 %v3213
        %4166 = vmatmul.mubr.bf16.gmra.mrb[0].mxu0 %v3212
        %v4167 = vpop.f32.mrb[0].mxu0
        %v4168 = vadd.f32 %v4071, %v4167
        %v4169 = vpop.f32.mrb[0].mxu0
        %v4170 = vpop.f32.mrb[0].mxu0
        %v4171 = vadd.f32 %v4074, %v4170
        %v4172 = vpop.f32.mrb[0].mxu0
        %4173 = vmatprep.mubr.bf16.mxu0 %v3229
        %4174 = vmatmul.mubr.bf16.gmra.mrb[0].mxu0 %v3228
        %v4175 = vpop.f32.mrb[0].mxu0
        %v4176 = vadd.f32 %v4079, %v4175
        %v4177 = vpop.f32.mrb[0].mxu0
        %v4178 = vpop.f32.mrb[0].mxu0
        %v4179 = vadd.f32 %v4082, %v4178
        %v4180 = vpop.f32.mrb[0].mxu0
        %4181 = vmatprep.mubr.bf16.mxu0 %v3245
        %4182 = vmatmul.mubr.bf16.gmra.mrb[0].mxu0 %v3244
        %v4183 = vpop.f32.mrb[0].mxu0
        %v4184 = vadd.f32 %v4087, %v4183
        %v4185 = vpop.f32.mrb[0].mxu0
        %v4186 = vpop.f32.mrb[0].mxu0
        %v4187 = vadd.f32 %v4090, %v4186
        %v4188 = vpop.f32.mrb[0].mxu0
        %4189 = vmatprep.mubr.bf16.mxu0 %v3261
        %4190 = vmatmul.mubr.bf16.gmra.mrb[0].mxu0 %v3260
        %v4191 = vpop.f32.mrb[0].mxu0
        %v4192 = vadd.f32 %v4095, %v4191
        %v4193 = vpop.f32.mrb[0].mxu0
        %v4194 = vpop.f32.mrb[0].mxu0
        %v4195 = vadd.f32 %v4098, %v4194
        %v4196 = vpop.f32.mrb[0].mxu0
        %4197 = vmatprep.mubr.bf16.mxu0 %v3277
        %4198 = vmatmul.mubr.bf16.gmra.mrb[0].mxu0 %v3276
        %v4199 = vpop.f32.mrb[0].mxu0
        %v4200 = vadd.f32 %v4103, %v4199
        %v4201 = vpop.f32.mrb[0].mxu0
        %v4202 = vpop.f32.mrb[0].mxu0
        %v4203 = vadd.f32 %v4106, %v4202
        %v4204 = vpop.f32.mrb[0].mxu0
        %4205 = vmatprep.mubr.bf16.mxu0 %v3293
        %4206 = vmatmul.mubr.bf16.gmra.mrb[0].mxu0 %v3292
        %v4207 = vpop.f32.mrb[0].mxu0
        %v4208 = vadd.f32 %v4111, %v4207
        %v4209 = vpop.f32.mrb[0].mxu0
        %v4210 = vpop.f32.mrb[0].mxu0
        %v4211 = vadd.f32 %v4114, %v4210
        %v4212 = vpop.f32.mrb[0].mxu0
        %4213 = vmatprep.mubr.bf16.mxu0 %v3309
        %4214 = vmatmul.mubr.bf16.gmra.mrb[0].mxu0 %v3308
        %v4215 = vpop.f32.mrb[0].mxu0
        %v4216 = vadd.f32 %v4119, %v4215
        %v4217 = vpop.f32.mrb[0].mxu0
        %v4218 = vpop.f32.mrb[0].mxu0
        %v4219 = vadd.f32 %v4122, %v4218
        %v4220 = vpop.f32.mrb[0].mxu0
        %4221 = vmatprep.mubr.bf16.mxu0 %v3325
        %4222 = vmatmul.mubr.bf16.gmra.mrb[0].mxu0 %v3324
        %v4223 = vpop.f32.mrb[0].mxu0
        %v4224 = vadd.f32 %v4127, %v4223
        %v4225 = vpop.f32.mrb[0].mxu0
        %v4226 = vpop.f32.mrb[0].mxu0
        %v4227 = vadd.f32 %v4130, %v4226
        %v4228 = vpop.f32.mrb[0].mxu0
        %4229 = vdwg.mxu0
        %4230 = vst [vmem:[%s240] sm:$0xff] %v4168
        %4231 = vst [vmem:[%s240 + $0x8] sm:$0xff] %v4171
        %4232 = vst [vmem:[%s240 + $0x10] sm:$0xff] %v4176
        %4233 = vst [vmem:[%s240 + $0x18] sm:$0xff] %v4179
        %4234 = vst [vmem:[%s240 + $0x20] sm:$0xff] %v4184
        %4235 = vst [vmem:[%s240 + $0x28] sm:$0xff] %v4187
        %4236 = vst [vmem:[%s240 + $0x30] sm:$0xff] %v4192
        %4237 = vst [vmem:[%s240 + $0x38] sm:$0xff] %v4195
        %4238 = vst [vmem:[%s240 + $0x40] sm:$0xff] %v4200
        %4239 = vst [vmem:[%s240 + $0x48] sm:$0xff] %v4203
        %4240 = vst [vmem:[%s240 + $0x50] sm:$0xff] %v4208
        %4241 = vst [vmem:[%s240 + $0x58] sm:$0xff] %v4211
        %4242 = vst [vmem:[%s240 + $0x60] sm:$0xff] %v4216
        %4243 = vst [vmem:[%s240 + $0x68] sm:$0xff] %v4219
        %4244 = vst [vmem:[%s240 + $0x70] sm:$0xff] %v4224
        %4245 = vst [vmem:[%s240 + $0x78] sm:$0xff] %v4227
        %p4246 = scmp.lt.s32.totalorder %s21, 1
        %s4247 = scalar_select %p4246, %s21, 1
        %s4248 = smul.addr %s4247, 256
        %s4249 = smul.addr %s4248, 8
        %s4250 = scalar_lea.vmem %s4, %s4249
        %s4251 = sand.u32 %s144, 1
        %s4252 = scalar_lea.sflag [#allocation4], %s4251
        %s4253 = sand.u32 %s144, 1
        %s4254 = smul.addr %s4253, 128
        %s4255 = scalar_lea.vmem [#allocation5], %s4254
        // Predicated region
        $region41: #{tpu_custom_call.1} parent=35 // pred_check
          %p4256 = pneg %p128
        $region42: #{tpu_custom_call.1} parent=35 // pred_check_branch
          %4258 = sbr.rel (%p4256) target = $region44
        $region43: #{tpu_custom_call.1} parent=35 // pred_region
          _
        $region44: #{tpu_custom_call.1} parent=35 // pred_fallthru
          _
        // Predicated region
        $region45: #{tpu_custom_call.1} parent=35 // pred_check
          %p4259 = pneg %p154
        $region46: #{tpu_custom_call.1} parent=35 // pred_check_branch
          %4261 = sbr.rel (%p4259) target = $region48
        $region47: #{tpu_custom_call.1} parent=35 // pred_region
          %s4263 = ssub.s32 2048, 2048
          %4264 = vsyncadd %s4252, %s4263
          %s4265 = smul.addr %s21, 16
          %s4266 = smul.addr %s4265, 128
          %s4267 = scalar_lea.hbm %s5, %s4266
          %s4268 = sshll.u32 %s4255, 4
          %s4269 = int_to_ptr.vmem [resolvable:$true] %s4268
          %4274 = dma.vmem_to_hbm [thread:$0]  %s4269, 2048, %s4267, %s4252, 128, 128, 8
        $region48: #{tpu_custom_call.1} parent=35 // pred_fallthru
          _
      $region36: #{tpu_custom_call.1} parent=5 // pred_fallthru
        _
      %p4275 = scmp.le.s32.totalorder 2, %s16
      // Predicated region
      $region49: #{tpu_custom_call.1} parent=5 // pred_check
        %p4276 = pneg %p4275
      $region50: #{tpu_custom_call.1} parent=5 // pred_check_branch
        %4278 = sbr.rel (%p4276) target = $region52
      $region51: #{tpu_custom_call.1} parent=5 // pred_region
        %s4279 = ssub.s32 %s16, 2
        // Predicated region
        $region53: #{tpu_custom_call.1} parent=51 // pred_check
          %p4280 = pneg %p134
        $region54: #{tpu_custom_call.1} parent=51 // pred_check_branch
          %4282 = sbr.rel (%p4280) target = $region56
        $region55: #{tpu_custom_call.1} parent=51 // pred_region
          %p4283 = scmp.lt.s32.totalorder %s22, 1
          %s4284 = scalar_select %p4283, %s22, 1
          %s4285 = smul.addr %s4284, 256
          %s4286 = smul.addr %s4285, 8
          %s4287 = scalar_lea.vmem %s4, %s4286
        $region56: #{tpu_custom_call.1} parent=51 // pred_fallthru
          _
        // Predicated region
        $region57: #{tpu_custom_call.1} parent=51 // pred_check
          %p4288 = pneg %p160
        $region58: #{tpu_custom_call.1} parent=51 // pred_check_branch
          %4290 = sbr.rel (%p4288) target = $region60
        $region59: #{tpu_custom_call.1} parent=51 // pred_region
          %s4291 = sand.u32 %s145, 1
          %s4292 = scalar_lea.sflag [#allocation4], %s4291
          %s4293 = sand.u32 %s145, 1
          %s4294 = smul.addr %s4293, 128
          %s4295 = scalar_lea.vmem [#allocation5], %s4294
          %4296 = dma.done %s4292, 2048
        $region60: #{tpu_custom_call.1} parent=51 // pred_fallthru
          _
      $region52: #{tpu_custom_call.1} parent=5 // pred_fallthru
        _
    $region6: #{tpu_custom_call.1} parent=1 // loop_footer
      %s20 = sadd.s32 1, %s16
    $region7: #{tpu_custom_call.1} parent=1 // loop_footer_branch
      %15 = sbr.rel target = $region3
    $region8: #{tpu_custom_call.1} parent=1 // loop_exit
      _
    %4297 = vsyncpa [#allocation3], 1
    %s4298 = scalar_lea.sflag [#allocation3], 1
    %4299 = vsyncpa %s4298, 1
    %4300 = vsyncpa [#allocation4], 1
    %s4301 = scalar_lea.sflag [#allocation4], 1
    %4302 = vsyncpa %s4301, 1

</llo_original>
